<compile_context>
chip_gen: v6e
topology: v6e:2x2x1
jax: 0.10.0
libtpu: 0.0.40
codegen_flags: <defaults>
</compile_context>

<pallas_src>
import functools

import jax
import jax.numpy as jnp
from jax.experimental import pallas as pl
from jax.experimental.pallas import tpu as pltpu


# ----------------------------------------------------------------------------
# Fused forward kernel: all encoder blocks + final projection + argmax.
# One grid step = one batch element (whole sequence + all weights fit VMEM).
# ----------------------------------------------------------------------------
def fused_forward_kernel(x_ref, wqkv_ref, bqkv_ref, wo_ref, wl_ref, vec_ref,
                         wf_ref, bf_ref, o_ref, *, n_heads, n_block):
    x = x_ref[0]                                     # (T, D) f32
    T, D = x.shape
    hd = D // n_heads
    scale = 1.0 / (float(hd) ** 0.5)

    def layernorm(z, g, b):
        mu = jnp.mean(z, axis=-1, keepdims=True)
        var = jnp.mean((z - mu) ** 2, axis=-1, keepdims=True)
        zn = (z - mu) * jax.lax.rsqrt(var + 1e-5)    # torch LayerNorm eps=1e-5
        return zn * g[None, :] + b[None, :]

    # Static layer loop: stacked weights are VMEM-resident across layers.
    for l in range(n_block):
        wqkv = wqkv_ref[l]                           # (H, D, 3*hd)
        bqkv = bqkv_ref[l]                           # (H, 3*hd)
        wo_h = wo_ref[l]                             # (H, hd, D)
        w_ff = wl_ref[l]                             # (D, D)
        vec = vec_ref[l]                             # (8, D) packed vectors
        b_o, b_ff, ln_g, ln_b = vec[0], vec[1], vec[2], vec[3]

        # ---- multi-head attention (single batched contraction per step) ----
        x_b = jnp.broadcast_to(x[None, :, :], (n_heads, T, D))      # (H, T, D)
        qkv = jnp.einsum('htd,hdf->htf', x_b, wqkv,
                         preferred_element_type=jnp.float32)
        qkv = qkv + bqkv[:, None, :]                                 # (H, T, 3hd)
        q = qkv[:, :, 0 * hd:1 * hd]
        k = qkv[:, :, 1 * hd:2 * hd]
        v = qkv[:, :, 2 * hd:3 * hd]

        s = jnp.einsum('hqd,hkd->hqk', q, k,
                       preferred_element_type=jnp.float32) * scale  # (H, T, T)
        s = s - jnp.max(s, axis=-1, keepdims=True)
        p = jnp.exp(s)
        p = p * pl.reciprocal(jnp.sum(p, axis=-1, keepdims=True), approx=True)
        ctx = jnp.einsum('hqk,hkd->hqd', p, v,
                         preferred_element_type=jnp.float32)         # (H, T, hd)

        # Head-concat + output projection fused: sum_h ctx_h @ wo[h*hd:(h+1)*hd, :]
        attn = jnp.sum(jnp.einsum('htd,hdf->htf', ctx, wo_h,
                                  preferred_element_type=jnp.float32),
                       axis=0) + b_o[None, :]                        # (T, D)

        # ---- residual + LN, FFN + residual + LN (shared LN params) ---------
        x = layernorm(x + attn, ln_g, ln_b)
        ff = jnp.dot(x, w_ff, preferred_element_type=jnp.float32) + b_ff[None, :]
        x = layernorm(x + ff, ln_g, ln_b)

    # ---- final projection + argmax (lane-dense output) ---------------------
    logits = jnp.dot(x, wf_ref[...], preferred_element_type=jnp.float32) + bf_ref[...]
    preds = jnp.argmax(logits, axis=-1).astype(jnp.int32)            # (T,)
    o_ref[...] = preds.reshape(1, 1, T)


def nano_transformer_forward(token_ids, params, n_heads_eff):
    B, T = token_ids.shape
    # Embedding lookups (gather) stay in plain JAX glue; note the positional
    # table is indexed by token ids, matching the original PyTorch forward.
    x = params["tok_emb"][token_ids] + params["pos_emb"][token_ids]  # (B, T, D)

    packed = params["packed"]
    D = x.shape[-1]
    L = packed["wqkv_h"].shape[0]
    H = n_heads_eff
    hd = D // H
    V = packed["wf"].shape[1]

    out = pl.pallas_call(
        functools.partial(fused_forward_kernel, n_heads=H, n_block=L),
        out_shape=jax.ShapeDtypeStruct((B, 1, T), jnp.int32),
        grid=(B,),
        in_specs=[
            pl.BlockSpec((1, T, D), lambda b: (b, 0, 0)),            # activation
            pl.BlockSpec((L, H, D, 3 * hd), lambda b: (0, 0, 0, 0)), # fused QKV (head-packed)
            pl.BlockSpec((L, H, 3 * hd), lambda b: (0, 0, 0)),       # fused QKV bias
            pl.BlockSpec((L, H, hd, D), lambda b: (0, 0, 0, 0)),     # out-proj (head-packed)
            pl.BlockSpec((L, D, D), lambda b: (0, 0, 0)),            # FFN linear
            pl.BlockSpec((L, 8, D), lambda b: (0, 0, 0)),            # packed b_o,b_ff,ln_g,ln_b
            pl.BlockSpec((D, V), lambda b: (0, 0)),                  # final_mlp weight
            pl.BlockSpec((1, V), lambda b: (0, 0)),                  # final_mlp bias
        ],
        out_specs=pl.BlockSpec((1, 1, T), lambda b: (b, 0, 0)),
        compiler_params=pltpu.CompilerParams(dimension_semantics=("parallel",)),
    )(x, packed["wqkv_h"], packed["bqkv_h"], packed["wo_h"], packed["wl"],
      packed["vec"], packed["wf"], packed["bf"])

    return out.reshape(B, T), None                                   # (argmax, loss=None)


# ----------------------------------------------------------------------------
# Parameter init (torch-like layout) + packing into fused / stacked kernel args.
# ----------------------------------------------------------------------------
def init_params(key, token_size, emb_dim, n_block, n_heads_eff):
    D, H = emb_dim, n_heads_eff
    hd = D // H

    def lin(k, din, dout, scale=0.05):
        return jax.random.normal(k, (din, dout), jnp.float32) * scale

    keys = jax.random.split(key, 4 + n_block)
    tok_emb = jax.random.normal(keys[0], (token_size, D), jnp.float32) * 0.02
    pos_emb = jax.random.normal(keys[1], (token_size, D), jnp.float32) * 0.02
    wf = lin(keys[2], D, token_size)
    bf = jax.random.normal(keys[3], (1, token_size), jnp.float32) * 0.01

    def to_heads(w):                       # (D, D)[in,out] -> (H, D, hd)
        return jnp.transpose(w.reshape(D, H, hd), (1, 0, 2))

    wqkv_h, bqkv_h, wo_h, wl_s, vec_s = [], [], [], [], []
    for i in range(n_block):
        bk_ = jax.random.split(keys[4 + i], 10)
        wq = lin(bk_[0], D, D); bq = jax.random.normal(bk_[1], (D,), jnp.float32) * 0.01
        wk = lin(bk_[2], D, D); bk = jax.random.normal(bk_[3], (D,), jnp.float32) * 0.01
        wv = lin(bk_[4], D, D); bv = jax.random.normal(bk_[5], (D,), jnp.float32) * 0.01
        wo = lin(bk_[6], D, D); bo = jax.random.normal(bk_[7], (D,), jnp.float32) * 0.01
        wl = lin(bk_[8], D, D); bl = jax.random.normal(bk_[9], (D,), jnp.float32) * 0.01
        ln_g = jnp.ones((D,), jnp.float32)                  # torch LayerNorm init
        ln_b = jnp.zeros((D,), jnp.float32)

        wqkv_h.append(jnp.concatenate([to_heads(wq), to_heads(wk), to_heads(wv)],
                                      axis=-1))             # (H, D, 3*hd)
        bqkv_h.append(jnp.concatenate([bq.reshape(H, hd), bk.reshape(H, hd),
                                       bv.reshape(H, hd)], axis=-1))   # (H, 3*hd)
        wo_h.append(wo.reshape(H, hd, D))                   # (H, hd, D)
        wl_s.append(wl)
        pad = jnp.zeros((D,), jnp.float32)
        vec_s.append(jnp.stack([bo, bl, ln_g, ln_b, pad, pad, pad, pad]))  # (8, D)

    packed = dict(wqkv_h=jnp.stack(wqkv_h), bqkv_h=jnp.stack(bqkv_h),
                  wo_h=jnp.stack(wo_h), wl=jnp.stack(wl_s), vec=jnp.stack(vec_s),
                  wf=wf, bf=bf)
    return dict(tok_emb=tok_emb, pos_emb=pos_emb, packed=packed)


if __name__ == "__main__":
    # Small shapes consistent with the module's forward.
    token_size, max_len, heads, emb_dim, n_block = 64, 8, 4, 32, 2
    B, T = 2, max_len

    # Faithful reproduction of the (max_len, heads) argument swap in
    # NanoTransformer.__init__: effective head count inside attention = max_len.
    n_heads_eff = max_len
    assert emb_dim % n_heads_eff == 0   # keep this next to the kernel usage

    key = jax.random.PRNGKey(0)
    pkey, dkey = jax.random.split(key)
    params = init_params(pkey, token_size, emb_dim, n_block, n_heads_eff)
    token_ids = jax.random.randint(dkey, (B, T), 0, token_size, dtype=jnp.int32)

    fwd = jax.jit(functools.partial(nano_transformer_forward,
                                    n_heads_eff=n_heads_eff))
    preds, loss = fwd(token_ids, params)
    preds = jax.block_until_ready(preds)
    assert preds.shape == (B, T) and preds.dtype == jnp.int32
    assert loss is None
    # TODO(synk): loss path (CrossEntropyLoss with padding mask) is skipped, as in
    # the reference forward(x, y=None).
    print("KERNEL_OK")
</pallas_src>

<mosaic_0001>
module attributes {stable_mosaic.version = 11 : i64} {
  func.func @fused_forward_kernel(%arg0: i32, %arg1: memref<1x8x32xf32, #tpu.memory_space<vmem>>, %arg2: memref<2x8x32x12xf32, #tpu.memory_space<vmem>>, %arg3: memref<2x8x12xf32, #tpu.memory_space<vmem>>, %arg4: memref<2x8x4x32xf32, #tpu.memory_space<vmem>>, %arg5: memref<2x32x32xf32, #tpu.memory_space<vmem>>, %arg6: memref<2x8x32xf32, #tpu.memory_space<vmem>>, %arg7: memref<32x64xf32, #tpu.memory_space<vmem>>, %arg8: memref<1x64xf32, #tpu.memory_space<vmem>>, %arg9: memref<1x1x8xi32, #tpu.memory_space<vmem>>) attributes {dimension_semantics = [#tpu.dimension_semantics<parallel>], iteration_bounds = array<i64: 2>, scalar_prefetch = 0 : i64, scratch_operands = 0 : i64, tpu.core_type = #tpu.core_type<tc>, window_params = [{transform_indices = @transform_0, window_bounds = array<i64: 1, 8, 32>}, {pipeline_mode = #tpu.pipeline_mode<synchronous>, transform_indices = @transform_1, window_bounds = array<i64: 2, 8, 32, 12>}, {pipeline_mode = #tpu.pipeline_mode<synchronous>, transform_indices = @transform_2, window_bounds = array<i64: 2, 8, 12>}, {pipeline_mode = #tpu.pipeline_mode<synchronous>, transform_indices = @transform_3, window_bounds = array<i64: 2, 8, 4, 32>}, {pipeline_mode = #tpu.pipeline_mode<synchronous>, transform_indices = @transform_4, window_bounds = array<i64: 2, 32, 32>}, {pipeline_mode = #tpu.pipeline_mode<synchronous>, transform_indices = @transform_5, window_bounds = array<i64: 2, 8, 32>}, {pipeline_mode = #tpu.pipeline_mode<synchronous>, transform_indices = @transform_6, window_bounds = array<i64: 32, 64>}, {pipeline_mode = #tpu.pipeline_mode<synchronous>, transform_indices = @transform_7, window_bounds = array<i64: 1, 64>}, {transform_indices = @transform_8, window_bounds = array<i64: 1, 1, 8>}]} {
    %c0 = arith.constant 0 : index
    %c0_0 = arith.constant 0 : index
    %c0_1 = arith.constant 0 : index
    %0 = vector.load %arg1[%c0, %c0_0, %c0_1] : memref<1x8x32xf32, #tpu.memory_space<vmem>>, vector<1x8x32xf32>
    %1 = vector.shape_cast %0 : vector<1x8x32xf32> to vector<8x32xf32>
    %c0_2 = arith.constant 0 : index
    %c0_3 = arith.constant 0 : index
    %c0_4 = arith.constant 0 : index
    %c0_5 = arith.constant 0 : index
    %2 = vector.load %arg2[%c0_2, %c0_3, %c0_4, %c0_5] : memref<2x8x32x12xf32, #tpu.memory_space<vmem>>, vector<1x8x32x12xf32>
    %3 = vector.shape_cast %2 : vector<1x8x32x12xf32> to vector<8x32x12xf32>
    %c0_6 = arith.constant 0 : index
    %c0_7 = arith.constant 0 : index
    %c0_8 = arith.constant 0 : index
    %4 = vector.load %arg3[%c0_6, %c0_7, %c0_8] : memref<2x8x12xf32, #tpu.memory_space<vmem>>, vector<1x8x12xf32>
    %5 = vector.shape_cast %4 : vector<1x8x12xf32> to vector<8x12xf32>
    %c0_9 = arith.constant 0 : index
    %c0_10 = arith.constant 0 : index
    %c0_11 = arith.constant 0 : index
    %c0_12 = arith.constant 0 : index
    %6 = vector.load %arg4[%c0_9, %c0_10, %c0_11, %c0_12] : memref<2x8x4x32xf32, #tpu.memory_space<vmem>>, vector<1x8x4x32xf32>
    %7 = vector.shape_cast %6 : vector<1x8x4x32xf32> to vector<8x4x32xf32>
    %c0_13 = arith.constant 0 : index
    %c0_14 = arith.constant 0 : index
    %c0_15 = arith.constant 0 : index
    %8 = vector.load %arg5[%c0_13, %c0_14, %c0_15] : memref<2x32x32xf32, #tpu.memory_space<vmem>>, vector<1x32x32xf32>
    %9 = vector.shape_cast %8 : vector<1x32x32xf32> to vector<32x32xf32>
    %c0_16 = arith.constant 0 : index
    %c0_17 = arith.constant 0 : index
    %c0_18 = arith.constant 0 : index
    %10 = vector.load %arg6[%c0_16, %c0_17, %c0_18] : memref<2x8x32xf32, #tpu.memory_space<vmem>>, vector<1x8x32xf32>
    %11 = vector.shape_cast %10 : vector<1x8x32xf32> to vector<8x32xf32>
    %12 = vector.extract_strided_slice %11 {offsets = [0, 0], sizes = [1, 32], strides = [1, 1]} : vector<8x32xf32> to vector<1x32xf32>
    %13 = vector.shape_cast %12 : vector<1x32xf32> to vector<32xf32>
    %14 = vector.extract_strided_slice %11 {offsets = [1, 0], sizes = [1, 32], strides = [1, 1]} : vector<8x32xf32> to vector<1x32xf32>
    %15 = vector.shape_cast %14 : vector<1x32xf32> to vector<32xf32>
    %16 = vector.extract_strided_slice %11 {offsets = [2, 0], sizes = [1, 32], strides = [1, 1]} : vector<8x32xf32> to vector<1x32xf32>
    %17 = vector.shape_cast %16 : vector<1x32xf32> to vector<32xf32>
    %18 = vector.extract_strided_slice %11 {offsets = [3, 0], sizes = [1, 32], strides = [1, 1]} : vector<8x32xf32> to vector<1x32xf32>
    %19 = vector.shape_cast %18 : vector<1x32xf32> to vector<32xf32>
    %20 = vector.shape_cast %1 : vector<8x32xf32> to vector<1x8x32xf32>
    %21 = vector.shape_cast %20 : vector<1x8x32xf32> to vector<1x8x32xf32>
    %22 = vector.broadcast %21 : vector<1x8x32xf32> to vector<8x8x32xf32>
    "tpu.trace_start"() <{level = 10 : i32, message = "htd,hdf->htf"}> : () -> ()
    %cst = arith.constant dense<0.000000e+00> : vector<8x8x12xf32>
    %23 = tpu.matmul %22, %3, %cst {dimension_numbers = #tpu.dot_dimension_numbers<[2], [1], [1], [2], [0, 0, 0, 1, 1, 2], [0], [0]>} : vector<8x8x32xf32>, vector<8x32x12xf32>, vector<8x8x12xf32> -> vector<8x8x12xf32>
    "tpu.trace_stop"() : () -> ()
    %24 = vector.shape_cast %5 : vector<8x12xf32> to vector<8x1x12xf32>
    %25 = vector.broadcast %24 : vector<8x1x12xf32> to vector<8x8x12xf32>
    %26 = arith.addf %23, %25 : vector<8x8x12xf32>
    %27 = vector.extract_strided_slice %26 {offsets = [0, 0, 0], sizes = [8, 8, 4], strides = [1, 1, 1]} : vector<8x8x12xf32> to vector<8x8x4xf32>
    %28 = vector.extract_strided_slice %26 {offsets = [0, 0, 4], sizes = [8, 8, 4], strides = [1, 1, 1]} : vector<8x8x12xf32> to vector<8x8x4xf32>
    %29 = vector.extract_strided_slice %26 {offsets = [0, 0, 8], sizes = [8, 8, 4], strides = [1, 1, 1]} : vector<8x8x12xf32> to vector<8x8x4xf32>
    "tpu.trace_start"() <{level = 10 : i32, message = "hqd,hkd->hqk"}> : () -> ()
    %cst_19 = arith.constant dense<0.000000e+00> : vector<8x8x8xf32>
    %30 = tpu.matmul %27, %28, %cst_19 {dimension_numbers = #tpu.dot_dimension_numbers<[2], [2], [1], [1], [0, 0, 0, 1, 1, 1], [0], [0]>} : vector<8x8x4xf32>, vector<8x8x4xf32>, vector<8x8x8xf32> -> vector<8x8x8xf32>
    "tpu.trace_stop"() : () -> ()
    %cst_20 = arith.constant 5.000000e-01 : f32
    %31 = vector.broadcast %cst_20 : f32 to vector<8x8x8xf32>
    %32 = arith.mulf %30, %31 : vector<8x8x8xf32>
    %cst_21 = arith.constant dense<0xFF800000> : vector<8x8xf32>
    %33 = vector.multi_reduction <maximumf>, %32, %cst_21 [2] : vector<8x8x8xf32> to vector<8x8xf32>
    %34 = vector.shape_cast %33 : vector<8x8xf32> to vector<8x8x1xf32>
    %35 = vector.broadcast %34 : vector<8x8x1xf32> to vector<8x8x8xf32>
    %36 = arith.subf %32, %35 : vector<8x8x8xf32>
    %37 = math.exp %36 : vector<8x8x8xf32>
    %cst_22 = arith.constant dense<0.000000e+00> : vector<8x8xf32>
    %38 = vector.multi_reduction <add>, %37, %cst_22 [2] : vector<8x8x8xf32> to vector<8x8xf32>
    %39 = vector.shape_cast %38 : vector<8x8xf32> to vector<8x8x1xf32>
    %40 = tpu.reciprocal %39 {approx = true} : vector<8x8x1xf32> -> vector<8x8x1xf32>
    %41 = vector.broadcast %40 : vector<8x8x1xf32> to vector<8x8x8xf32>
    %42 = arith.mulf %37, %41 : vector<8x8x8xf32>
    "tpu.trace_start"() <{level = 10 : i32, message = "hqk,hkd->hqd"}> : () -> ()
    %cst_23 = arith.constant dense<0.000000e+00> : vector<8x8x4xf32>
    %43 = tpu.matmul %42, %29, %cst_23 {dimension_numbers = #tpu.dot_dimension_numbers<[2], [1], [1], [2], [0, 0, 0, 1, 1, 2], [0], [0]>} : vector<8x8x8xf32>, vector<8x8x4xf32>, vector<8x8x4xf32> -> vector<8x8x4xf32>
    "tpu.trace_stop"() : () -> ()
    "tpu.trace_start"() <{level = 10 : i32, message = "htd,hdf->htf"}> : () -> ()
    %cst_24 = arith.constant dense<0.000000e+00> : vector<8x8x32xf32>
    %44 = tpu.matmul %43, %7, %cst_24 {dimension_numbers = #tpu.dot_dimension_numbers<[2], [1], [1], [2], [0, 0, 0, 1, 1, 2], [0], [0]>} : vector<8x8x4xf32>, vector<8x4x32xf32>, vector<8x8x32xf32> -> vector<8x8x32xf32>
    "tpu.trace_stop"() : () -> ()
    %cst_25 = arith.constant dense<0.000000e+00> : vector<8x32xf32>
    %45 = vector.multi_reduction <add>, %44, %cst_25 [0] : vector<8x8x32xf32> to vector<8x32xf32>
    %46 = vector.shape_cast %13 : vector<32xf32> to vector<1x32xf32>
    %47 = vector.broadcast %46 : vector<1x32xf32> to vector<8x32xf32>
    %48 = arith.addf %45, %47 : vector<8x32xf32>
    %49 = arith.addf %1, %48 : vector<8x32xf32>
    %cst_26 = arith.constant dense<0.000000e+00> : vector<8xf32>
    %50 = vector.multi_reduction <add>, %49, %cst_26 [1] : vector<8x32xf32> to vector<8xf32>
    %51 = vector.shape_cast %50 : vector<8xf32> to vector<8x1xf32>
    %cst_27 = arith.constant 3.200000e+01 : f32
    %52 = vector.broadcast %cst_27 : f32 to vector<8x1xf32>
    %53 = arith.divf %51, %52 : vector<8x1xf32>
    %54 = vector.broadcast %53 : vector<8x1xf32> to vector<8x32xf32>
    %55 = arith.subf %49, %54 : vector<8x32xf32>
    %56 = arith.mulf %55, %55 : vector<8x32xf32>
    %cst_28 = arith.constant dense<0.000000e+00> : vector<8xf32>
    %57 = vector.multi_reduction <add>, %56, %cst_28 [1] : vector<8x32xf32> to vector<8xf32>
    %58 = vector.shape_cast %57 : vector<8xf32> to vector<8x1xf32>
    %cst_29 = arith.constant 3.200000e+01 : f32
    %59 = vector.broadcast %cst_29 : f32 to vector<8x1xf32>
    %60 = arith.divf %58, %59 : vector<8x1xf32>
    %61 = vector.broadcast %53 : vector<8x1xf32> to vector<8x32xf32>
    %62 = arith.subf %49, %61 : vector<8x32xf32>
    %cst_30 = arith.constant 9.99999974E-6 : f32
    %63 = vector.broadcast %cst_30 : f32 to vector<8x1xf32>
    %64 = arith.addf %60, %63 : vector<8x1xf32>
    %65 = math.rsqrt %64 : vector<8x1xf32>
    %66 = vector.broadcast %65 : vector<8x1xf32> to vector<8x32xf32>
    %67 = arith.mulf %62, %66 : vector<8x32xf32>
    %68 = vector.shape_cast %17 : vector<32xf32> to vector<1x32xf32>
    %69 = vector.broadcast %68 : vector<1x32xf32> to vector<8x32xf32>
    %70 = arith.mulf %67, %69 : vector<8x32xf32>
    %71 = vector.shape_cast %19 : vector<32xf32> to vector<1x32xf32>
    %72 = vector.broadcast %71 : vector<1x32xf32> to vector<8x32xf32>
    %73 = arith.addf %70, %72 : vector<8x32xf32>
    %cst_31 = arith.constant dense<0.000000e+00> : vector<8x32xf32>
    %74 = tpu.matmul %73, %9, %cst_31 {dimension_numbers = #tpu.dot_dimension_numbers<[1], [0], [0], [1], [0, 0, 1, 1], [], []>} : vector<8x32xf32>, vector<32x32xf32>, vector<8x32xf32> -> vector<8x32xf32>
    %75 = vector.shape_cast %15 : vector<32xf32> to vector<1x32xf32>
    %76 = vector.broadcast %75 : vector<1x32xf32> to vector<8x32xf32>
    %77 = arith.addf %74, %76 : vector<8x32xf32>
    %78 = arith.addf %73, %77 : vector<8x32xf32>
    %cst_32 = arith.constant dense<0.000000e+00> : vector<8xf32>
    %79 = vector.multi_reduction <add>, %78, %cst_32 [1] : vector<8x32xf32> to vector<8xf32>
    %80 = vector.shape_cast %79 : vector<8xf32> to vector<8x1xf32>
    %cst_33 = arith.constant 3.200000e+01 : f32
    %81 = vector.broadcast %cst_33 : f32 to vector<8x1xf32>
    %82 = arith.divf %80, %81 : vector<8x1xf32>
    %83 = vector.broadcast %82 : vector<8x1xf32> to vector<8x32xf32>
    %84 = arith.subf %78, %83 : vector<8x32xf32>
    %85 = arith.mulf %84, %84 : vector<8x32xf32>
    %cst_34 = arith.constant dense<0.000000e+00> : vector<8xf32>
    %86 = vector.multi_reduction <add>, %85, %cst_34 [1] : vector<8x32xf32> to vector<8xf32>
    %87 = vector.shape_cast %86 : vector<8xf32> to vector<8x1xf32>
    %cst_35 = arith.constant 3.200000e+01 : f32
    %88 = vector.broadcast %cst_35 : f32 to vector<8x1xf32>
    %89 = arith.divf %87, %88 : vector<8x1xf32>
    %90 = vector.broadcast %82 : vector<8x1xf32> to vector<8x32xf32>
    %91 = arith.subf %78, %90 : vector<8x32xf32>
    %cst_36 = arith.constant 9.99999974E-6 : f32
    %92 = vector.broadcast %cst_36 : f32 to vector<8x1xf32>
    %93 = arith.addf %89, %92 : vector<8x1xf32>
    %94 = math.rsqrt %93 : vector<8x1xf32>
    %95 = vector.broadcast %94 : vector<8x1xf32> to vector<8x32xf32>
    %96 = arith.mulf %91, %95 : vector<8x32xf32>
    %97 = vector.shape_cast %17 : vector<32xf32> to vector<1x32xf32>
    %98 = vector.broadcast %97 : vector<1x32xf32> to vector<8x32xf32>
    %99 = arith.mulf %96, %98 : vector<8x32xf32>
    %100 = vector.shape_cast %19 : vector<32xf32> to vector<1x32xf32>
    %101 = vector.broadcast %100 : vector<1x32xf32> to vector<8x32xf32>
    %102 = arith.addf %99, %101 : vector<8x32xf32>
    %c1 = arith.constant 1 : index
    %c0_37 = arith.constant 0 : index
    %c0_38 = arith.constant 0 : index
    %c0_39 = arith.constant 0 : index
    %103 = vector.load %arg2[%c1, %c0_37, %c0_38, %c0_39] : memref<2x8x32x12xf32, #tpu.memory_space<vmem>>, vector<1x8x32x12xf32>
    %104 = vector.shape_cast %103 : vector<1x8x32x12xf32> to vector<8x32x12xf32>
    %c1_40 = arith.constant 1 : index
    %c0_41 = arith.constant 0 : index
    %c0_42 = arith.constant 0 : index
    %105 = vector.load %arg3[%c1_40, %c0_41, %c0_42] : memref<2x8x12xf32, #tpu.memory_space<vmem>>, vector<1x8x12xf32>
    %106 = vector.shape_cast %105 : vector<1x8x12xf32> to vector<8x12xf32>
    %c1_43 = arith.constant 1 : index
    %c0_44 = arith.constant 0 : index
    %c0_45 = arith.constant 0 : index
    %c0_46 = arith.constant 0 : index
    %107 = vector.load %arg4[%c1_43, %c0_44, %c0_45, %c0_46] : memref<2x8x4x32xf32, #tpu.memory_space<vmem>>, vector<1x8x4x32xf32>
    %108 = vector.shape_cast %107 : vector<1x8x4x32xf32> to vector<8x4x32xf32>
    %c1_47 = arith.constant 1 : index
    %c0_48 = arith.constant 0 : index
    %c0_49 = arith.constant 0 : index
    %109 = vector.load %arg5[%c1_47, %c0_48, %c0_49] : memref<2x32x32xf32, #tpu.memory_space<vmem>>, vector<1x32x32xf32>
    %110 = vector.shape_cast %109 : vector<1x32x32xf32> to vector<32x32xf32>
    %c1_50 = arith.constant 1 : index
    %c0_51 = arith.constant 0 : index
    %c0_52 = arith.constant 0 : index
    %111 = vector.load %arg6[%c1_50, %c0_51, %c0_52] : memref<2x8x32xf32, #tpu.memory_space<vmem>>, vector<1x8x32xf32>
    %112 = vector.shape_cast %111 : vector<1x8x32xf32> to vector<8x32xf32>
    %113 = vector.extract_strided_slice %112 {offsets = [0, 0], sizes = [1, 32], strides = [1, 1]} : vector<8x32xf32> to vector<1x32xf32>
    %114 = vector.shape_cast %113 : vector<1x32xf32> to vector<32xf32>
    %115 = vector.extract_strided_slice %112 {offsets = [1, 0], sizes = [1, 32], strides = [1, 1]} : vector<8x32xf32> to vector<1x32xf32>
    %116 = vector.shape_cast %115 : vector<1x32xf32> to vector<32xf32>
    %117 = vector.extract_strided_slice %112 {offsets = [2, 0], sizes = [1, 32], strides = [1, 1]} : vector<8x32xf32> to vector<1x32xf32>
    %118 = vector.shape_cast %117 : vector<1x32xf32> to vector<32xf32>
    %119 = vector.extract_strided_slice %112 {offsets = [3, 0], sizes = [1, 32], strides = [1, 1]} : vector<8x32xf32> to vector<1x32xf32>
    %120 = vector.shape_cast %119 : vector<1x32xf32> to vector<32xf32>
    %121 = vector.shape_cast %102 : vector<8x32xf32> to vector<1x8x32xf32>
    %122 = vector.shape_cast %121 : vector<1x8x32xf32> to vector<1x8x32xf32>
    %123 = vector.broadcast %122 : vector<1x8x32xf32> to vector<8x8x32xf32>
    "tpu.trace_start"() <{level = 10 : i32, message = "htd,hdf->htf"}> : () -> ()
    %cst_53 = arith.constant dense<0.000000e+00> : vector<8x8x12xf32>
    %124 = tpu.matmul %123, %104, %cst_53 {dimension_numbers = #tpu.dot_dimension_numbers<[2], [1], [1], [2], [0, 0, 0, 1, 1, 2], [0], [0]>} : vector<8x8x32xf32>, vector<8x32x12xf32>, vector<8x8x12xf32> -> vector<8x8x12xf32>
    "tpu.trace_stop"() : () -> ()
    %125 = vector.shape_cast %106 : vector<8x12xf32> to vector<8x1x12xf32>
    %126 = vector.broadcast %125 : vector<8x1x12xf32> to vector<8x8x12xf32>
    %127 = arith.addf %124, %126 : vector<8x8x12xf32>
    %128 = vector.extract_strided_slice %127 {offsets = [0, 0, 0], sizes = [8, 8, 4], strides = [1, 1, 1]} : vector<8x8x12xf32> to vector<8x8x4xf32>
    %129 = vector.extract_strided_slice %127 {offsets = [0, 0, 4], sizes = [8, 8, 4], strides = [1, 1, 1]} : vector<8x8x12xf32> to vector<8x8x4xf32>
    %130 = vector.extract_strided_slice %127 {offsets = [0, 0, 8], sizes = [8, 8, 4], strides = [1, 1, 1]} : vector<8x8x12xf32> to vector<8x8x4xf32>
    "tpu.trace_start"() <{level = 10 : i32, message = "hqd,hkd->hqk"}> : () -> ()
    %cst_54 = arith.constant dense<0.000000e+00> : vector<8x8x8xf32>
    %131 = tpu.matmul %128, %129, %cst_54 {dimension_numbers = #tpu.dot_dimension_numbers<[2], [2], [1], [1], [0, 0, 0, 1, 1, 1], [0], [0]>} : vector<8x8x4xf32>, vector<8x8x4xf32>, vector<8x8x8xf32> -> vector<8x8x8xf32>
    "tpu.trace_stop"() : () -> ()
    %cst_55 = arith.constant 5.000000e-01 : f32
    %132 = vector.broadcast %cst_55 : f32 to vector<8x8x8xf32>
    %133 = arith.mulf %131, %132 : vector<8x8x8xf32>
    %cst_56 = arith.constant dense<0xFF800000> : vector<8x8xf32>
    %134 = vector.multi_reduction <maximumf>, %133, %cst_56 [2] : vector<8x8x8xf32> to vector<8x8xf32>
    %135 = vector.shape_cast %134 : vector<8x8xf32> to vector<8x8x1xf32>
    %136 = vector.broadcast %135 : vector<8x8x1xf32> to vector<8x8x8xf32>
    %137 = arith.subf %133, %136 : vector<8x8x8xf32>
    %138 = math.exp %137 : vector<8x8x8xf32>
    %cst_57 = arith.constant dense<0.000000e+00> : vector<8x8xf32>
    %139 = vector.multi_reduction <add>, %138, %cst_57 [2] : vector<8x8x8xf32> to vector<8x8xf32>
    %140 = vector.shape_cast %139 : vector<8x8xf32> to vector<8x8x1xf32>
    %141 = tpu.reciprocal %140 {approx = true} : vector<8x8x1xf32> -> vector<8x8x1xf32>
    %142 = vector.broadcast %141 : vector<8x8x1xf32> to vector<8x8x8xf32>
    %143 = arith.mulf %138, %142 : vector<8x8x8xf32>
    "tpu.trace_start"() <{level = 10 : i32, message = "hqk,hkd->hqd"}> : () -> ()
    %cst_58 = arith.constant dense<0.000000e+00> : vector<8x8x4xf32>
    %144 = tpu.matmul %143, %130, %cst_58 {dimension_numbers = #tpu.dot_dimension_numbers<[2], [1], [1], [2], [0, 0, 0, 1, 1, 2], [0], [0]>} : vector<8x8x8xf32>, vector<8x8x4xf32>, vector<8x8x4xf32> -> vector<8x8x4xf32>
    "tpu.trace_stop"() : () -> ()
    "tpu.trace_start"() <{level = 10 : i32, message = "htd,hdf->htf"}> : () -> ()
    %cst_59 = arith.constant dense<0.000000e+00> : vector<8x8x32xf32>
    %145 = tpu.matmul %144, %108, %cst_59 {dimension_numbers = #tpu.dot_dimension_numbers<[2], [1], [1], [2], [0, 0, 0, 1, 1, 2], [0], [0]>} : vector<8x8x4xf32>, vector<8x4x32xf32>, vector<8x8x32xf32> -> vector<8x8x32xf32>
    "tpu.trace_stop"() : () -> ()
    %cst_60 = arith.constant dense<0.000000e+00> : vector<8x32xf32>
    %146 = vector.multi_reduction <add>, %145, %cst_60 [0] : vector<8x8x32xf32> to vector<8x32xf32>
    %147 = vector.shape_cast %114 : vector<32xf32> to vector<1x32xf32>
    %148 = vector.broadcast %147 : vector<1x32xf32> to vector<8x32xf32>
    %149 = arith.addf %146, %148 : vector<8x32xf32>
    %150 = arith.addf %102, %149 : vector<8x32xf32>
    %cst_61 = arith.constant dense<0.000000e+00> : vector<8xf32>
    %151 = vector.multi_reduction <add>, %150, %cst_61 [1] : vector<8x32xf32> to vector<8xf32>
    %152 = vector.shape_cast %151 : vector<8xf32> to vector<8x1xf32>
    %cst_62 = arith.constant 3.200000e+01 : f32
    %153 = vector.broadcast %cst_62 : f32 to vector<8x1xf32>
    %154 = arith.divf %152, %153 : vector<8x1xf32>
    %155 = vector.broadcast %154 : vector<8x1xf32> to vector<8x32xf32>
    %156 = arith.subf %150, %155 : vector<8x32xf32>
    %157 = arith.mulf %156, %156 : vector<8x32xf32>
    %cst_63 = arith.constant dense<0.000000e+00> : vector<8xf32>
    %158 = vector.multi_reduction <add>, %157, %cst_63 [1] : vector<8x32xf32> to vector<8xf32>
    %159 = vector.shape_cast %158 : vector<8xf32> to vector<8x1xf32>
    %cst_64 = arith.constant 3.200000e+01 : f32
    %160 = vector.broadcast %cst_64 : f32 to vector<8x1xf32>
    %161 = arith.divf %159, %160 : vector<8x1xf32>
    %162 = vector.broadcast %154 : vector<8x1xf32> to vector<8x32xf32>
    %163 = arith.subf %150, %162 : vector<8x32xf32>
    %cst_65 = arith.constant 9.99999974E-6 : f32
    %164 = vector.broadcast %cst_65 : f32 to vector<8x1xf32>
    %165 = arith.addf %161, %164 : vector<8x1xf32>
    %166 = math.rsqrt %165 : vector<8x1xf32>
    %167 = vector.broadcast %166 : vector<8x1xf32> to vector<8x32xf32>
    %168 = arith.mulf %163, %167 : vector<8x32xf32>
    %169 = vector.shape_cast %118 : vector<32xf32> to vector<1x32xf32>
    %170 = vector.broadcast %169 : vector<1x32xf32> to vector<8x32xf32>
    %171 = arith.mulf %168, %170 : vector<8x32xf32>
    %172 = vector.shape_cast %120 : vector<32xf32> to vector<1x32xf32>
    %173 = vector.broadcast %172 : vector<1x32xf32> to vector<8x32xf32>
    %174 = arith.addf %171, %173 : vector<8x32xf32>
    %cst_66 = arith.constant dense<0.000000e+00> : vector<8x32xf32>
    %175 = tpu.matmul %174, %110, %cst_66 {dimension_numbers = #tpu.dot_dimension_numbers<[1], [0], [0], [1], [0, 0, 1, 1], [], []>} : vector<8x32xf32>, vector<32x32xf32>, vector<8x32xf32> -> vector<8x32xf32>
    %176 = vector.shape_cast %116 : vector<32xf32> to vector<1x32xf32>
    %177 = vector.broadcast %176 : vector<1x32xf32> to vector<8x32xf32>
    %178 = arith.addf %175, %177 : vector<8x32xf32>
    %179 = arith.addf %174, %178 : vector<8x32xf32>
    %cst_67 = arith.constant dense<0.000000e+00> : vector<8xf32>
    %180 = vector.multi_reduction <add>, %179, %cst_67 [1] : vector<8x32xf32> to vector<8xf32>
    %181 = vector.shape_cast %180 : vector<8xf32> to vector<8x1xf32>
    %cst_68 = arith.constant 3.200000e+01 : f32
    %182 = vector.broadcast %cst_68 : f32 to vector<8x1xf32>
    %183 = arith.divf %181, %182 : vector<8x1xf32>
    %184 = vector.broadcast %183 : vector<8x1xf32> to vector<8x32xf32>
    %185 = arith.subf %179, %184 : vector<8x32xf32>
    %186 = arith.mulf %185, %185 : vector<8x32xf32>
    %cst_69 = arith.constant dense<0.000000e+00> : vector<8xf32>
    %187 = vector.multi_reduction <add>, %186, %cst_69 [1] : vector<8x32xf32> to vector<8xf32>
    %188 = vector.shape_cast %187 : vector<8xf32> to vector<8x1xf32>
    %cst_70 = arith.constant 3.200000e+01 : f32
    %189 = vector.broadcast %cst_70 : f32 to vector<8x1xf32>
    %190 = arith.divf %188, %189 : vector<8x1xf32>
    %191 = vector.broadcast %183 : vector<8x1xf32> to vector<8x32xf32>
    %192 = arith.subf %179, %191 : vector<8x32xf32>
    %cst_71 = arith.constant 9.99999974E-6 : f32
    %193 = vector.broadcast %cst_71 : f32 to vector<8x1xf32>
    %194 = arith.addf %190, %193 : vector<8x1xf32>
    %195 = math.rsqrt %194 : vector<8x1xf32>
    %196 = vector.broadcast %195 : vector<8x1xf32> to vector<8x32xf32>
    %197 = arith.mulf %192, %196 : vector<8x32xf32>
    %198 = vector.shape_cast %118 : vector<32xf32> to vector<1x32xf32>
    %199 = vector.broadcast %198 : vector<1x32xf32> to vector<8x32xf32>
    %200 = arith.mulf %197, %199 : vector<8x32xf32>
    %201 = vector.shape_cast %120 : vector<32xf32> to vector<1x32xf32>
    %202 = vector.broadcast %201 : vector<1x32xf32> to vector<8x32xf32>
    %203 = arith.addf %200, %202 : vector<8x32xf32>
    %c0_72 = arith.constant 0 : index
    %c0_73 = arith.constant 0 : index
    %204 = vector.load %arg7[%c0_72, %c0_73] : memref<32x64xf32, #tpu.memory_space<vmem>>, vector<32x64xf32>
    %cst_74 = arith.constant dense<0.000000e+00> : vector<8x64xf32>
    %205 = tpu.matmul %203, %204, %cst_74 {dimension_numbers = #tpu.dot_dimension_numbers<[1], [0], [0], [1], [0, 0, 1, 1], [], []>} : vector<8x32xf32>, vector<32x64xf32>, vector<8x64xf32> -> vector<8x64xf32>
    %c0_75 = arith.constant 0 : index
    %c0_76 = arith.constant 0 : index
    %206 = vector.load %arg8[%c0_75, %c0_76] : memref<1x64xf32, #tpu.memory_space<vmem>>, vector<1x64xf32>
    %207 = vector.broadcast %206 : vector<1x64xf32> to vector<8x64xf32>
    %208 = arith.addf %205, %207 : vector<8x64xf32>
    %209 = tpu.reduce_index %208 {axis = 1 : i32, kind = #tpu.reduction_kind<arg_max>} : vector<8x64xf32> -> vector<8xi32>
    %210 = vector.shape_cast %209 : vector<8xi32> to vector<1x1x8xi32>
    %c0_77 = arith.constant 0 : index
    %c0_78 = arith.constant 0 : index
    %c0_79 = arith.constant 0 : index
    %211 = vector.load %arg9[%c0_77, %c0_78, %c0_79] : memref<1x1x8xi32, #tpu.memory_space<vmem>>, vector<1x1x8xi32>
    tpu.vector_store %arg9[%c0_77, %c0_78, %c0_79], %210 {strides = array<i32>} : memref<1x1x8xi32, #tpu.memory_space<vmem>>, vector<1x1x8xi32>,
    return
  }
  func.func @transform_0(%arg0: i32) -> (i32, i32, i32) {
    %c0_i32 = arith.constant 0 : i32
    %c0_i32_0 = arith.constant 0 : i32
    %c0_i32_1 = arith.constant 0 : i32
    return %arg0, %c0_i32, %c0_i32_0 : i32, i32, i32
  }
  func.func @transform_1(%arg0: i32) -> (i32, i32, i32, i32) {
    %c0_i32 = arith.constant 0 : i32
    %c0_i32_0 = arith.constant 0 : i32
    %c0_i32_1 = arith.constant 0 : i32
    %c0_i32_2 = arith.constant 0 : i32
    %c0_i32_3 = arith.constant 0 : i32
    return %c0_i32, %c0_i32_0, %c0_i32_1, %c0_i32_2 : i32, i32, i32, i32
  }
  func.func @transform_2(%arg0: i32) -> (i32, i32, i32) {
    %c0_i32 = arith.constant 0 : i32
    %c0_i32_0 = arith.constant 0 : i32
    %c0_i32_1 = arith.constant 0 : i32
    %c0_i32_2 = arith.constant 0 : i32
    return %c0_i32, %c0_i32_0, %c0_i32_1 : i32, i32, i32
  }
  func.func @transform_3(%arg0: i32) -> (i32, i32, i32, i32) {
    %c0_i32 = arith.constant 0 : i32
    %c0_i32_0 = arith.constant 0 : i32
    %c0_i32_1 = arith.constant 0 : i32
    %c0_i32_2 = arith.constant 0 : i32
    %c0_i32_3 = arith.constant 0 : i32
    return %c0_i32, %c0_i32_0, %c0_i32_1, %c0_i32_2 : i32, i32, i32, i32
  }
  func.func @transform_4(%arg0: i32) -> (i32, i32, i32) {
    %c0_i32 = arith.constant 0 : i32
    %c0_i32_0 = arith.constant 0 : i32
    %c0_i32_1 = arith.constant 0 : i32
    %c0_i32_2 = arith.constant 0 : i32
    return %c0_i32, %c0_i32_0, %c0_i32_1 : i32, i32, i32
  }
  func.func @transform_5(%arg0: i32) -> (i32, i32, i32) {
    %c0_i32 = arith.constant 0 : i32
    %c0_i32_0 = arith.constant 0 : i32
    %c0_i32_1 = arith.constant 0 : i32
    %c0_i32_2 = arith.constant 0 : i32
    return %c0_i32, %c0_i32_0, %c0_i32_1 : i32, i32, i32
  }
  func.func @transform_6(%arg0: i32) -> (i32, i32) {
    %c0_i32 = arith.constant 0 : i32
    %c0_i32_0 = arith.constant 0 : i32
    %c0_i32_1 = arith.constant 0 : i32
    return %c0_i32, %c0_i32_0 : i32, i32
  }
  func.func @transform_7(%arg0: i32) -> (i32, i32) {
    %c0_i32 = arith.constant 0 : i32
    %c0_i32_0 = arith.constant 0 : i32
    %c0_i32_1 = arith.constant 0 : i32
    return %c0_i32, %c0_i32_0 : i32, i32
  }
  func.func @transform_8(%arg0: i32) -> (i32, i32, i32) {
    %c0_i32 = arith.constant 0 : i32
    %c0_i32_0 = arith.constant 0 : i32
    %c0_i32_1 = arith.constant 0 : i32
    return %arg0, %c0_i32, %c0_i32_0 : i32, i32, i32
  }
}

</mosaic_0001>

<llo_original>
// kernel: nano_transformer_forward.1
$region0: #{nano_transformer_forward.1}
  #allocation0 [shape = 'u32[]', space=smem, size = 0x4, offset = 0x4, fixed_abs, tag = 'smem constant byte address 0x4 - core index']
  #allocation1 [shape = 'u32[144,128]{1,0:T(1,128)}', space=vmem, size = 0x12000, scoped, tag = 'internal scratch']
  %s0 = inlined_call_operand.vmem [shape: f32[2,8,32], index: 0, kind: input, shape index: {}]
  %s1 = inlined_call_operand.vmem [shape: f32[2,8,32,12], index: 1, kind: input, shape index: {}]
  %s2 = inlined_call_operand.vmem [shape: f32[2,8,12], index: 2, kind: input, shape index: {}]
  %s3 = inlined_call_operand.vmem [shape: f32[2,8,4,32], index: 3, kind: input, shape index: {}]
  %s4 = inlined_call_operand.vmem [shape: f32[2,32,32], index: 4, kind: input, shape index: {}]
  %s5 = inlined_call_operand.vmem [shape: f32[2,8,32], index: 5, kind: input, shape index: {}]
  %s6 = inlined_call_operand.vmem [shape: f32[32,64], index: 6, kind: input, shape index: {}]
  %s7 = inlined_call_operand.vmem [shape: f32[1,64], index: 7, kind: input, shape index: {}]
  %s8 = inlined_call_operand.hbm [shape: s32[2,1,8], index: 8, kind: output, shape index: {}]
  %s9 = sld [smem:[#allocation0]]
  $region65: #{nano_transformer_forward.1} parent=0
    _
  %s11 = ssub.s32 1, %s9
  %s12 = scalar_select 0, %s11, %s9
  $region1: #{nano_transformer_forward.1} parent=0
    #allocation2 [shape = 'u8[1024]{0}', space=vmem, size = 0x400, scoped, tag = 'output window, operand 0']
    #allocation3 [shape = 's32[2]{0}', space=sflag, size = 0x8, scoped, tag = 'scoped memory for nano_transformer_forward.1']
    %13 = vsyncpa [#allocation3], 0
    %s14 = scalar_lea.sflag [#allocation3], 1
    %15 = vsyncpa %s14, 0
    loop: start=0, step=1, limit=4
    $region2: #{nano_transformer_forward.1} parent=1 // loop_pre_header
      _
    $region3: #{nano_transformer_forward.1} parent=1 // loop_header
      %s17 = sphi 0, %s21
      %p18 = scmp.ge.s32.totalorder %s17, 4
      %s27 = sphi 0, %s29
      %s30 = sphi 0, %s27
      %s31 = sphi 0, %s30
      %s47 = sphi 0, %s31
      %s51 = sphi 0, %s51
      %s53 = sphi 0, %s51
      %s54 = sphi 0, %s53
      %s68 = sphi 0, %s54
      %s72 = sphi 0, %s72
      %s74 = sphi 0, %s72
      %s75 = sphi 0, %s74
      %s89 = sphi 0, %s75
      %s93 = sphi 0, %s93
      %s95 = sphi 0, %s93
      %s96 = sphi 0, %s95
      %s110 = sphi 0, %s96
      %s114 = sphi 0, %s114
      %s116 = sphi 0, %s114
      %s117 = sphi 0, %s116
      %s131 = sphi 0, %s117
      %s135 = sphi 0, %s135
      %s137 = sphi 0, %s135
      %s138 = sphi 0, %s137
      %s152 = sphi 0, %s138
      %s156 = sphi 0, %s156
      %s158 = sphi 0, %s156
      %s159 = sphi 0, %s158
      %s173 = sphi 0, %s159
      %s177 = sphi 0, %s177
      %s179 = sphi 0, %s177
      %s180 = sphi 0, %s179
      %s194 = sphi 0, %s180
      %s200 = sphi 0, %s202
      %s203 = sphi 0, %s200
      %s204 = sphi 0, %s203
      %s220 = sphi 0, %s204
    $region4: #{nano_transformer_forward.1} parent=1 // loop_header_branch
      %20 = sbr.rel (%p18) target = $region8
    $region5: #{nano_transformer_forward.1} parent=1 // loop_body
      %s22 = ssub.s32 %s17, 1
      %s23 = ssub.s32 %s17, 2
      %s24 = sadd.s32 %s17, 1
      %s25 = ssub.s32 %s17, %s24
      %p26 = scmp.eq.s32.totalorder %s25, 0
      %s28 = sadd.s32 %s27, 1
      %s29 = scalar_select %p26, %s27, %s28
      %p32 = pneg %p26
      %p33 = scmp.eq.s32.totalorder %s17, 1
      %p34 = por %p32, %p33
      %p35 = scmp.ne.s32.totalorder %s27, %s30
      %p36 = scmp.eq.s32.totalorder %s17, 0
      %p37 = por %p35, %p36
      %p38 = scmp.ne.s32.totalorder %s27, %s30
      %p39 = scmp.eq.s32.totalorder %s22, 1
      %p40 = por %p38, %p39
      %p41 = scmp.ne.s32.totalorder %s30, %s31
      %p42 = scmp.eq.s32.totalorder %s22, 0
      %p43 = por %p41, %p42
      %p44 = scmp.ne.s32.totalorder %s30, %s31
      %p45 = scmp.eq.s32.totalorder %s23, 1
      %p46 = por %p44, %p45
      %p48 = scmp.ne.s32.totalorder %s31, %s47
      %p49 = scmp.eq.s32.totalorder %s23, 0
      %p50 = por %p48, %p49
      %s52 = sadd.s32 %s51, 1
      %p55 = scmp.eq.s32.totalorder %s17, 1
      %p56 = scmp.ne.s32.totalorder %s51, %s53
      %p57 = scmp.eq.s32.totalorder %s17, 0
      %p58 = por %p56, %p57
      %p59 = scmp.ne.s32.totalorder %s51, %s53
      %p60 = scmp.eq.s32.totalorder %s22, 1
      %p61 = por %p59, %p60
      %p62 = scmp.ne.s32.totalorder %s53, %s54
      %p63 = scmp.eq.s32.totalorder %s22, 0
      %p64 = por %p62, %p63
      %p65 = scmp.ne.s32.totalorder %s53, %s54
      %p66 = scmp.eq.s32.totalorder %s23, 1
      %p67 = por %p65, %p66
      %p69 = scmp.ne.s32.totalorder %s54, %s68
      %p70 = scmp.eq.s32.totalorder %s23, 0
      %p71 = por %p69, %p70
      %s73 = sadd.s32 %s72, 1
      %p76 = scmp.eq.s32.totalorder %s17, 1
      %p77 = scmp.ne.s32.totalorder %s72, %s74
      %p78 = scmp.eq.s32.totalorder %s17, 0
      %p79 = por %p77, %p78
      %p80 = scmp.ne.s32.totalorder %s72, %s74
      %p81 = scmp.eq.s32.totalorder %s22, 1
      %p82 = por %p80, %p81
      %p83 = scmp.ne.s32.totalorder %s74, %s75
      %p84 = scmp.eq.s32.totalorder %s22, 0
      %p85 = por %p83, %p84
      %p86 = scmp.ne.s32.totalorder %s74, %s75
      %p87 = scmp.eq.s32.totalorder %s23, 1
      %p88 = por %p86, %p87
      %p90 = scmp.ne.s32.totalorder %s75, %s89
      %p91 = scmp.eq.s32.totalorder %s23, 0
      %p92 = por %p90, %p91
      %s94 = sadd.s32 %s93, 1
      %p97 = scmp.eq.s32.totalorder %s17, 1
      %p98 = scmp.ne.s32.totalorder %s93, %s95
      %p99 = scmp.eq.s32.totalorder %s17, 0
      %p100 = por %p98, %p99
      %p101 = scmp.ne.s32.totalorder %s93, %s95
      %p102 = scmp.eq.s32.totalorder %s22, 1
      %p103 = por %p101, %p102
      %p104 = scmp.ne.s32.totalorder %s95, %s96
      %p105 = scmp.eq.s32.totalorder %s22, 0
      %p106 = por %p104, %p105
      %p107 = scmp.ne.s32.totalorder %s95, %s96
      %p108 = scmp.eq.s32.totalorder %s23, 1
      %p109 = por %p107, %p108
      %p111 = scmp.ne.s32.totalorder %s96, %s110
      %p112 = scmp.eq.s32.totalorder %s23, 0
      %p113 = por %p111, %p112
      %s115 = sadd.s32 %s114, 1
      %p118 = scmp.eq.s32.totalorder %s17, 1
      %p119 = scmp.ne.s32.totalorder %s114, %s116
      %p120 = scmp.eq.s32.totalorder %s17, 0
      %p121 = por %p119, %p120
      %p122 = scmp.ne.s32.totalorder %s114, %s116
      %p123 = scmp.eq.s32.totalorder %s22, 1
      %p124 = por %p122, %p123
      %p125 = scmp.ne.s32.totalorder %s116, %s117
      %p126 = scmp.eq.s32.totalorder %s22, 0
      %p127 = por %p125, %p126
      %p128 = scmp.ne.s32.totalorder %s116, %s117
      %p129 = scmp.eq.s32.totalorder %s23, 1
      %p130 = por %p128, %p129
      %p132 = scmp.ne.s32.totalorder %s117, %s131
      %p133 = scmp.eq.s32.totalorder %s23, 0
      %p134 = por %p132, %p133
      %s136 = sadd.s32 %s135, 1
      %p139 = scmp.eq.s32.totalorder %s17, 1
      %p140 = scmp.ne.s32.totalorder %s135, %s137
      %p141 = scmp.eq.s32.totalorder %s17, 0
      %p142 = por %p140, %p141
      %p143 = scmp.ne.s32.totalorder %s135, %s137
      %p144 = scmp.eq.s32.totalorder %s22, 1
      %p145 = por %p143, %p144
      %p146 = scmp.ne.s32.totalorder %s137, %s138
      %p147 = scmp.eq.s32.totalorder %s22, 0
      %p148 = por %p146, %p147
      %p149 = scmp.ne.s32.totalorder %s137, %s138
      %p150 = scmp.eq.s32.totalorder %s23, 1
      %p151 = por %p149, %p150
      %p153 = scmp.ne.s32.totalorder %s138, %s152
      %p154 = scmp.eq.s32.totalorder %s23, 0
      %p155 = por %p153, %p154
      %s157 = sadd.s32 %s156, 1
      %p160 = scmp.eq.s32.totalorder %s17, 1
      %p161 = scmp.ne.s32.totalorder %s156, %s158
      %p162 = scmp.eq.s32.totalorder %s17, 0
      %p163 = por %p161, %p162
      %p164 = scmp.ne.s32.totalorder %s156, %s158
      %p165 = scmp.eq.s32.totalorder %s22, 1
      %p166 = por %p164, %p165
      %p167 = scmp.ne.s32.totalorder %s158, %s159
      %p168 = scmp.eq.s32.totalorder %s22, 0
      %p169 = por %p167, %p168
      %p170 = scmp.ne.s32.totalorder %s158, %s159
      %p171 = scmp.eq.s32.totalorder %s23, 1
      %p172 = por %p170, %p171
      %p174 = scmp.ne.s32.totalorder %s159, %s173
      %p175 = scmp.eq.s32.totalorder %s23, 0
      %p176 = por %p174, %p175
      %s178 = sadd.s32 %s177, 1
      %p181 = scmp.eq.s32.totalorder %s17, 1
      %p182 = scmp.ne.s32.totalorder %s177, %s179
      %p183 = scmp.eq.s32.totalorder %s17, 0
      %p184 = por %p182, %p183
      %p185 = scmp.ne.s32.totalorder %s177, %s179
      %p186 = scmp.eq.s32.totalorder %s22, 1
      %p187 = por %p185, %p186
      %p188 = scmp.ne.s32.totalorder %s179, %s180
      %p189 = scmp.eq.s32.totalorder %s22, 0
      %p190 = por %p188, %p189
      %p191 = scmp.ne.s32.totalorder %s179, %s180
      %p192 = scmp.eq.s32.totalorder %s23, 1
      %p193 = por %p191, %p192
      %p195 = scmp.ne.s32.totalorder %s180, %s194
      %p196 = scmp.eq.s32.totalorder %s23, 0
      %p197 = por %p195, %p196
      %s198 = ssub.s32 %s17, %s24
      %p199 = scmp.eq.s32.totalorder %s198, 0
      %s201 = sadd.s32 %s200, 1
      %s202 = scalar_select %p199, %s200, %s201
      %p205 = pneg %p199
      %p206 = scmp.eq.s32.totalorder %s17, 1
      %p207 = por %p205, %p206
      %p208 = scmp.ne.s32.totalorder %s200, %s203
      %p209 = scmp.eq.s32.totalorder %s17, 0
      %p210 = por %p208, %p209
      %p211 = scmp.ne.s32.totalorder %s200, %s203
      %p212 = scmp.eq.s32.totalorder %s22, 1
      %p213 = por %p211, %p212
      %p214 = scmp.ne.s32.totalorder %s203, %s204
      %p215 = scmp.eq.s32.totalorder %s22, 0
      %p216 = por %p214, %p215
      %p217 = scmp.ne.s32.totalorder %s203, %s204
      %p218 = scmp.eq.s32.totalorder %s23, 1
      %p219 = por %p217, %p218
      %p221 = scmp.ne.s32.totalorder %s204, %s220
      %p222 = scmp.eq.s32.totalorder %s23, 0
      %p223 = por %p221, %p222
      %p224 = scmp.le.s32.totalorder 1, %s17
      %p225 = scmp.lt.s32.totalorder %s17, 3
      %p226 = pnand %p224, %p225
      %p227 = pneg %p226
      // Predicated region
      $region9: #{nano_transformer_forward.1} parent=5 // pred_check
        _
      $region10: #{nano_transformer_forward.1} parent=5 // pred_check_branch
        %229 = sbr.rel (%p226) target = $region12
      $region11: #{nano_transformer_forward.1} parent=5 // pred_region
        %s230 = ssub.s32 %s17, 1
        // Predicated region
        $region13: #{nano_transformer_forward.1} parent=11 // pred_check
          %p231 = pneg %p64
        $region14: #{nano_transformer_forward.1} parent=11 // pred_check_branch
          %233 = sbr.rel (%p231) target = $region16
        $region15: #{nano_transformer_forward.1} parent=11 // pred_region
          _
        $region16: #{nano_transformer_forward.1} parent=11 // pred_fallthru
          _
        // Predicated region
        $region17: #{nano_transformer_forward.1} parent=11 // pred_check
          %p234 = pneg %p85
        $region18: #{nano_transformer_forward.1} parent=11 // pred_check_branch
          %236 = sbr.rel (%p234) target = $region20
        $region19: #{nano_transformer_forward.1} parent=11 // pred_region
          _
        $region20: #{nano_transformer_forward.1} parent=11 // pred_fallthru
          _
        // Predicated region
        $region21: #{nano_transformer_forward.1} parent=11 // pred_check
          %p237 = pneg %p106
        $region22: #{nano_transformer_forward.1} parent=11 // pred_check_branch
          %239 = sbr.rel (%p237) target = $region24
        $region23: #{nano_transformer_forward.1} parent=11 // pred_region
          _
        $region24: #{nano_transformer_forward.1} parent=11 // pred_fallthru
          _
        // Predicated region
        $region25: #{nano_transformer_forward.1} parent=11 // pred_check
          %p240 = pneg %p127
        $region26: #{nano_transformer_forward.1} parent=11 // pred_check_branch
          %242 = sbr.rel (%p240) target = $region28
        $region27: #{nano_transformer_forward.1} parent=11 // pred_region
          _
        $region28: #{nano_transformer_forward.1} parent=11 // pred_fallthru
          _
        // Predicated region
        $region29: #{nano_transformer_forward.1} parent=11 // pred_check
          %p243 = pneg %p148
        $region30: #{nano_transformer_forward.1} parent=11 // pred_check_branch
          %245 = sbr.rel (%p243) target = $region32
        $region31: #{nano_transformer_forward.1} parent=11 // pred_region
          _
        $region32: #{nano_transformer_forward.1} parent=11 // pred_fallthru
          _
        // Predicated region
        $region33: #{nano_transformer_forward.1} parent=11 // pred_check
          %p246 = pneg %p169
        $region34: #{nano_transformer_forward.1} parent=11 // pred_check_branch
          %248 = sbr.rel (%p246) target = $region36
        $region35: #{nano_transformer_forward.1} parent=11 // pred_region
          _
        $region36: #{nano_transformer_forward.1} parent=11 // pred_fallthru
          _
        // Predicated region
        $region37: #{nano_transformer_forward.1} parent=11 // pred_check
          %p249 = pneg %p190
        $region38: #{nano_transformer_forward.1} parent=11 // pred_check_branch
          %251 = sbr.rel (%p249) target = $region40
        $region39: #{nano_transformer_forward.1} parent=11 // pred_region
          _
        $region40: #{nano_transformer_forward.1} parent=11 // pred_fallthru
          _
      $region12: #{nano_transformer_forward.1} parent=5 // pred_fallthru
        _
      %p252 = scmp.lt.s32.totalorder %s17, 2
      // Predicated region
      $region41: #{nano_transformer_forward.1} parent=5 // pred_check
        %p253 = pneg %p252
      $region42: #{nano_transformer_forward.1} parent=5 // pred_check_branch
        %255 = sbr.rel (%p253) target = $region44
      $region43: #{nano_transformer_forward.1} parent=5 // pred_region
        // Predicated region
        $region45: #{nano_transformer_forward.1} parent=43 // pred_check
          %p256 = pneg %p37
        $region46: #{nano_transformer_forward.1} parent=43 // pred_check_branch
          %258 = sbr.rel (%p256) target = $region48
        $region47: #{nano_transformer_forward.1} parent=43 // pred_region
          %p259 = scmp.lt.s32.totalorder %s17, 1
          %s260 = scalar_select %p259, %s17, 1
          %s261 = smul.addr %s260, 8
          %s262 = scalar_lea.vmem %s0, %s261
        $region48: #{nano_transformer_forward.1} parent=43 // pred_fallthru
          _
      $region44: #{nano_transformer_forward.1} parent=5 // pred_fallthru
        _
      %p263 = scmp.le.s32.totalorder 1, %s17
      %p264 = scmp.lt.s32.totalorder %s17, 3
      %p265 = pnand %p263, %p264
      %p266 = pneg %p265
      // Predicated region
      $region49: #{nano_transformer_forward.1} parent=5 // pred_check
        _
      $region50: #{nano_transformer_forward.1} parent=5 // pred_check_branch
        %268 = sbr.rel (%p265) target = $region52
      $region51: #{nano_transformer_forward.1} parent=5 // pred_region
        %s269 = ssub.s32 %s17, 1
        %p270 = scmp.lt.s32.totalorder %s22, 1
        %s271 = scalar_select %p270, %s22, 1
        %s272 = smul.addr %s271, 8
        %s273 = scalar_lea.vmem %s0, %s272
        %p274 = pneg %p43
        %p275 = pneg %p40
        %p276 = pneg %p64
        %p277 = pneg %p61
        %p278 = pneg %p85
        %p279 = pneg %p82
        %p280 = pneg %p106
        %p281 = pneg %p103
        %p282 = pneg %p127
        %p283 = pneg %p124
        %p284 = pneg %p148
        %p285 = pneg %p145
        %p286 = pneg %p169
        %p287 = pneg %p166
        %p288 = pneg %p190
        %p289 = pneg %p187
        %p290 = pneg %p216
        %p291 = pneg %p213
        %s292 = sand.u32 %s203, 1
        %s293 = scalar_lea.sflag [#allocation3], %s292
        %s294 = sand.u32 %s203, 1
        %s295 = scalar_lea.vmem [#allocation2], %s294
        %p296 = scmp.lt.s32.totalorder %s22, 1
        %s297 = scalar_select %p296, %s22, 1
        %s298 = smul.addr %s297, 8
        %s299 = scalar_lea.vmem %s0, %s298
        %v300 = vld [vmem:[%s299] sm:$0xff]
        %v301 = vld [vmem:[%s1] sm:$0xff]
        %v302 = vld [vmem:[%s1 + $0x8] sm:$0xff]
        %v303 = vld [vmem:[%s1 + $0x10] sm:$0xff]
        %v304 = vld [vmem:[%s1 + $0x18] sm:$0xff]
        %v305 = vld [vmem:[%s1 + $0x20] sm:$0xff]
        %v306 = vld [vmem:[%s1 + $0x28] sm:$0xff]
        %v307 = vld [vmem:[%s1 + $0x30] sm:$0xff]
        %v308 = vld [vmem:[%s1 + $0x38] sm:$0xff]
        %v309 = vld [vmem:[%s1 + $0x40] sm:$0xff]
        %v310 = vld [vmem:[%s1 + $0x48] sm:$0xff]
        %v311 = vld [vmem:[%s1 + $0x50] sm:$0xff]
        %v312 = vld [vmem:[%s1 + $0x58] sm:$0xff]
        %v313 = vld [vmem:[%s1 + $0x60] sm:$0xff]
        %v314 = vld [vmem:[%s1 + $0x68] sm:$0xff]
        %v315 = vld [vmem:[%s1 + $0x70] sm:$0xff]
        %v316 = vld [vmem:[%s1 + $0x78] sm:$0xff]
        %v317 = vld [vmem:[%s1 + $0x80] sm:$0xff]
        %v318 = vld [vmem:[%s1 + $0x88] sm:$0xff]
        %v319 = vld [vmem:[%s1 + $0x90] sm:$0xff]
        %v320 = vld [vmem:[%s1 + $0x98] sm:$0xff]
        %v321 = vld [vmem:[%s1 + $0xa0] sm:$0xff]
        %v322 = vld [vmem:[%s1 + $0xa8] sm:$0xff]
        %v323 = vld [vmem:[%s1 + $0xb0] sm:$0xff]
        %v324 = vld [vmem:[%s1 + $0xb8] sm:$0xff]
        %v325 = vld [vmem:[%s1 + $0xc0] sm:$0xff]
        %v326 = vld [vmem:[%s1 + $0xc8] sm:$0xff]
        %v327 = vld [vmem:[%s1 + $0xd0] sm:$0xff]
        %v328 = vld [vmem:[%s1 + $0xd8] sm:$0xff]
        %v329 = vld [vmem:[%s1 + $0xe0] sm:$0xff]
        %v330 = vld [vmem:[%s1 + $0xe8] sm:$0xff]
        %v331 = vld [vmem:[%s1 + $0xf0] sm:$0xff]
        %v332 = vld [vmem:[%s1 + $0xf8] sm:$0xff]
        %v333 = vld [vmem:[%s2] sm:$0xff]
        %v334 = vld [vmem:[%s3] sm:$0xf]
        %v335 = vld [vmem:[%s3 + $0x4] sm:$0xf]
        %v336 = vld [vmem:[%s3 + $0x8] sm:$0xf]
        %v337 = vld [vmem:[%s3 + $0xc] sm:$0xf]
        %v338 = vld [vmem:[%s3 + $0x10] sm:$0xf]
        %v339 = vld [vmem:[%s3 + $0x14] sm:$0xf]
        %v340 = vld [vmem:[%s3 + $0x18] sm:$0xf]
        %v341 = vld [vmem:[%s3 + $0x1c] sm:$0xf]
        %v342 = vld [vmem:[%s4] sm:$0xff]
        %v343 = vld [vmem:[%s4 + $0x8] sm:$0xff]
        %v344 = vld [vmem:[%s4 + $0x10] sm:$0xff]
        %v345 = vld [vmem:[%s4 + $0x18] sm:$0xff]
        %v346 = vld [vmem:[%s5] sm:$0xff]
        %v348 = vcombine.high %v333, %v333
        %v350 = vunpack.c.l.s4 1966171168
        %v351 = vunpack.c.0.s8 %v350
        %v352 = vlaneseq
        %v353 = vshrl.u32 %v352, 7
        %v354 = vsub.s32 %v351, %v353
        %v355 = vrot.slane %v333, %v354
        %v357 = vunpack.c.l.s4 1966171168
        %v358 = vunpack.c.0.s8 %v357
        %v359 = vlaneseq
        %v360 = vshrl.u32 %v359, 7
        %v361 = vsub.s32 %v358, %v360
        %v362 = vrot.slane %v348, %v361
        %v363 = vcombine.high %v355, %v355
        %v364 = vcombine.high %v362, %v362
        %v366 = vunpack.c.l.s4 1966171168
        %v367 = vunpack.c.0.s8 %v366
        %v368 = vlaneseq
        %v369 = vshrl.u32 %v368, 7
        %v370 = vsub.s32 %v367, %v369
        %v371 = vrot.slane %v355, %v370
        %v373 = vunpack.c.l.s4 1966171168
        %v374 = vunpack.c.0.s8 %v373
        %v375 = vlaneseq
        %v376 = vshrl.u32 %v375, 7
        %v377 = vsub.s32 %v374, %v376
        %v378 = vrot.slane %v362, %v377
        %v380 = vunpack.c.l.s4 1966171168
        %v381 = vunpack.c.0.s8 %v380
        %v382 = vlaneseq
        %v383 = vshrl.u32 %v382, 7
        %v384 = vsub.s32 %v381, %v383
        %v385 = vrot.slane %v363, %v384
        %v387 = vunpack.c.l.s4 1966171168
        %v388 = vunpack.c.0.s8 %v387
        %v389 = vlaneseq
        %v390 = vshrl.u32 %v389, 7
        %v391 = vsub.s32 %v388, %v390
        %v392 = vrot.slane %v364, %v391
        %v393 = vcombine.high %v371, %v371
        %v394 = vcombine.high %v378, %v378
        %v395 = vcombine.high %v385, %v385
        %v396 = vcombine.high %v392, %v392
        %v397 = vlaneseq
        %v398 = vshrl.u32 %v397, 7
        %v399 = vsub.s32 0, %v398
        %v400 = vrot.slane %v371, %v399
        %v401 = vlaneseq
        %v402 = vshrl.u32 %v401, 7
        %v403 = vsub.s32 0, %v402
        %v404 = vrot.slane %v385, %v403
        %v405 = vlaneseq
        %v406 = vshrl.u32 %v405, 7
        %v407 = vsub.s32 0, %v406
        %v408 = vrot.slane %v393, %v407
        %v409 = vlaneseq
        %v410 = vshrl.u32 %v409, 7
        %v411 = vsub.s32 0, %v410
        %v412 = vrot.slane %v395, %v411
        %v413 = vlaneseq
        %v414 = vshrl.u32 %v413, 7
        %v415 = vsub.s32 0, %v414
        %v416 = vrot.slane %v378, %v415
        %v417 = vlaneseq
        %v418 = vshrl.u32 %v417, 7
        %v419 = vsub.s32 0, %v418
        %v420 = vrot.slane %v392, %v419
        %v421 = vlaneseq
        %v422 = vshrl.u32 %v421, 7
        %v423 = vsub.s32 0, %v422
        %v424 = vrot.slane %v394, %v423
        %v425 = vlaneseq
        %v426 = vshrl.u32 %v425, 7
        %v427 = vsub.s32 0, %v426
        %v428 = vrot.slane %v396, %v427
        %vm437 = vcmask 261120
        %v439 = vsel %vm437, %v300, 0
        %441 = vmatprep.subr.mxu0 0.0
        %442 = vmatpush1.msra.mxu0 0.0
        %443 = vmatprep.subr.mxu0 0.0
        %444 = vmatpush1.msra.mxu0 0.0
        %445 = vmatprep.subr.mxu0 0.0
        %446 = vmatpush1.msra.mxu0 0.0
        %447 = vmatprep.subr.mxu0 0.0
        %448 = vmatpush1.msra.mxu0 0.0
        %449 = vmatprep.subr.mxu0 0.0
        %450 = vmatpush1.msra.mxu0 0.0
        %451 = vmatprep.subr.mxu0 0.0
        %452 = vmatpush1.msra.mxu0 0.0
        %453 = vmatprep.subr.mxu0 0.0
        %454 = vmatpush1.msra.mxu0 0.0
        %455 = vmatprep.subr.mxu0 0.0
        %456 = vmatpush1.msra.mxu0 0.0
        %457 = vmatprep.subr.mxu0 0.0
        %458 = vmatpush1.msra.mxu0 0.0
        %459 = vmatprep.subr.mxu0 0.0
        %460 = vmatpush1.msra.mxu0 0.0
        %461 = vmatprep.subr.mxu0 0.0
        %462 = vmatpush1.msra.mxu0 0.0
        %463 = vmatprep.subr.mxu0 0.0
        %464 = vmatpush1.msra.mxu0 0.0
        %465 = vmatprep.subr.mxu0 0.0
        %466 = vmatpush1.msra.mxu0 %v304
        %467 = vmatprep.subr.mxu0 0.0
        %468 = vmatpush1.msra.mxu0 %v303
        %469 = vmatprep.subr.mxu0 0.0
        %470 = vmatpush1.msra.mxu0 %v302
        %471 = vmatprep.subr.mxu0 0.0
        %472 = vmatpush1.msra.mxu0 %v301
        %473 = vmatprep.subr.mxu0 0.0
        %474 = vmatpush2.msra.mxu0 0.0
        %475 = vmatprep.subr.mxu0 0.0
        %476 = vmatpush2.msra.mxu0 0.0
        %477 = vmatprep.subr.mxu0 0.0
        %478 = vmatpush2.msra.mxu0 0.0
        %479 = vmatprep.subr.mxu0 0.0
        %480 = vmatpush2.msra.mxu0 0.0
        %481 = vmatprep.subr.mxu0 0.0
        %482 = vmatpush2.msra.mxu0 0.0
        %483 = vmatprep.subr.mxu0 0.0
        %484 = vmatpush2.msra.mxu0 0.0
        %485 = vmatprep.subr.mxu0 0.0
        %486 = vmatpush2.msra.mxu0 0.0
        %487 = vmatprep.subr.mxu0 0.0
        %488 = vmatpush2.msra.mxu0 0.0
        %489 = vmatprep.subr.mxu0 0.0
        %490 = vmatpush2.msra.mxu0 0.0
        %491 = vmatprep.subr.mxu0 0.0
        %492 = vmatpush2.msra.mxu0 0.0
        %493 = vmatprep.subr.mxu0 0.0
        %494 = vmatpush2.msra.mxu0 0.0
        %495 = vmatprep.subr.mxu0 0.0
        %496 = vmatpush2.msra.mxu0 0.0
        %497 = vmatprep.subr.mxu0 0.0
        %498 = vmatpush2.msra.mxu0 0.0
        %499 = vmatprep.subr.mxu0 0.0
        %500 = vmatpush2.msra.mxu0 0.0
        %501 = vmatprep.subr.mxu0 0.0
        %502 = vmatpush2.msra.mxu0 0.0
        %503 = vmatprep.subr.mxu0 0.0
        %504 = vmatpush2.msra.mxu0 0.0
        %505 = vmatprep.mubr.f32.mxu0 0.0
        %506 = vmatmul.mubr.f32.gmra.mxu0 %v439
        %v507 = vpop.f32.mrf.mxu0
        %v508 = vadd.f32 %v400, %v507
        %v509 = vpop.f32.mrf.mxu0
        %510 = vdwg.mxu0
        %511 = vmatprep.subr.mxu0 0.0
        %512 = vmatpush1.msra.mxu0 0.0
        %513 = vmatprep.subr.mxu0 0.0
        %514 = vmatpush1.msra.mxu0 0.0
        %515 = vmatprep.subr.mxu0 0.0
        %516 = vmatpush1.msra.mxu0 0.0
        %517 = vmatprep.subr.mxu0 0.0
        %518 = vmatpush1.msra.mxu0 0.0
        %519 = vmatprep.subr.mxu0 0.0
        %520 = vmatpush1.msra.mxu0 0.0
        %521 = vmatprep.subr.mxu0 0.0
        %522 = vmatpush1.msra.mxu0 0.0
        %523 = vmatprep.subr.mxu0 0.0
        %524 = vmatpush1.msra.mxu0 0.0
        %525 = vmatprep.subr.mxu0 0.0
        %526 = vmatpush1.msra.mxu0 0.0
        %527 = vmatprep.subr.mxu0 0.0
        %528 = vmatpush1.msra.mxu0 0.0
        %529 = vmatprep.subr.mxu0 0.0
        %530 = vmatpush1.msra.mxu0 0.0
        %531 = vmatprep.subr.mxu0 0.0
        %532 = vmatpush1.msra.mxu0 0.0
        %533 = vmatprep.subr.mxu0 0.0
        %534 = vmatpush1.msra.mxu0 0.0
        %535 = vmatprep.subr.mxu0 0.0
        %536 = vmatpush1.msra.mxu0 %v308
        %537 = vmatprep.subr.mxu0 0.0
        %538 = vmatpush1.msra.mxu0 %v307
        %539 = vmatprep.subr.mxu0 0.0
        %540 = vmatpush1.msra.mxu0 %v306
        %541 = vmatprep.subr.mxu0 0.0
        %542 = vmatpush1.msra.mxu0 %v305
        %543 = vmatprep.subr.mxu0 0.0
        %544 = vmatpush2.msra.mxu0 0.0
        %545 = vmatprep.subr.mxu0 0.0
        %546 = vmatpush2.msra.mxu0 0.0
        %547 = vmatprep.subr.mxu0 0.0
        %548 = vmatpush2.msra.mxu0 0.0
        %549 = vmatprep.subr.mxu0 0.0
        %550 = vmatpush2.msra.mxu0 0.0
        %551 = vmatprep.subr.mxu0 0.0
        %552 = vmatpush2.msra.mxu0 0.0
        %553 = vmatprep.subr.mxu0 0.0
        %554 = vmatpush2.msra.mxu0 0.0
        %555 = vmatprep.subr.mxu0 0.0
        %556 = vmatpush2.msra.mxu0 0.0
        %557 = vmatprep.subr.mxu0 0.0
        %558 = vmatpush2.msra.mxu0 0.0
        %559 = vmatprep.subr.mxu0 0.0
        %560 = vmatpush2.msra.mxu0 0.0
        %561 = vmatprep.subr.mxu0 0.0
        %562 = vmatpush2.msra.mxu0 0.0
        %563 = vmatprep.subr.mxu0 0.0
        %564 = vmatpush2.msra.mxu0 0.0
        %565 = vmatprep.subr.mxu0 0.0
        %566 = vmatpush2.msra.mxu0 0.0
        %567 = vmatprep.subr.mxu0 0.0
        %568 = vmatpush2.msra.mxu0 0.0
        %569 = vmatprep.subr.mxu0 0.0
        %570 = vmatpush2.msra.mxu0 0.0
        %571 = vmatprep.subr.mxu0 0.0
        %572 = vmatpush2.msra.mxu0 0.0
        %573 = vmatprep.subr.mxu0 0.0
        %574 = vmatpush2.msra.mxu0 0.0
        %575 = vmatprep.mubr.f32.mxu0 0.0
        %576 = vmatmul.mubr.f32.gmra.mxu0 %v439
        %v577 = vpop.f32.mrf.mxu0
        %v578 = vadd.f32 %v404, %v577
        %v579 = vpop.f32.mrf.mxu0
        %580 = vdwg.mxu0
        %581 = vmatprep.subr.mxu0 0.0
        %582 = vmatpush1.msra.mxu0 0.0
        %583 = vmatprep.subr.mxu0 0.0
        %584 = vmatpush1.msra.mxu0 0.0
        %585 = vmatprep.subr.mxu0 0.0
        %586 = vmatpush1.msra.mxu0 0.0
        %587 = vmatprep.subr.mxu0 0.0
        %588 = vmatpush1.msra.mxu0 0.0
        %589 = vmatprep.subr.mxu0 0.0
        %590 = vmatpush1.msra.mxu0 0.0
        %591 = vmatprep.subr.mxu0 0.0
        %592 = vmatpush1.msra.mxu0 0.0
        %593 = vmatprep.subr.mxu0 0.0
        %594 = vmatpush1.msra.mxu0 0.0
        %595 = vmatprep.subr.mxu0 0.0
        %596 = vmatpush1.msra.mxu0 0.0
        %597 = vmatprep.subr.mxu0 0.0
        %598 = vmatpush1.msra.mxu0 0.0
        %599 = vmatprep.subr.mxu0 0.0
        %600 = vmatpush1.msra.mxu0 0.0
        %601 = vmatprep.subr.mxu0 0.0
        %602 = vmatpush1.msra.mxu0 0.0
        %603 = vmatprep.subr.mxu0 0.0
        %604 = vmatpush1.msra.mxu0 0.0
        %605 = vmatprep.subr.mxu0 0.0
        %606 = vmatpush1.msra.mxu0 %v312
        %607 = vmatprep.subr.mxu0 0.0
        %608 = vmatpush1.msra.mxu0 %v311
        %609 = vmatprep.subr.mxu0 0.0
        %610 = vmatpush1.msra.mxu0 %v310
        %611 = vmatprep.subr.mxu0 0.0
        %612 = vmatpush1.msra.mxu0 %v309
        %613 = vmatprep.subr.mxu0 0.0
        %614 = vmatpush2.msra.mxu0 0.0
        %615 = vmatprep.subr.mxu0 0.0
        %616 = vmatpush2.msra.mxu0 0.0
        %617 = vmatprep.subr.mxu0 0.0
        %618 = vmatpush2.msra.mxu0 0.0
        %619 = vmatprep.subr.mxu0 0.0
        %620 = vmatpush2.msra.mxu0 0.0
        %621 = vmatprep.subr.mxu0 0.0
        %622 = vmatpush2.msra.mxu0 0.0
        %623 = vmatprep.subr.mxu0 0.0
        %624 = vmatpush2.msra.mxu0 0.0
        %625 = vmatprep.subr.mxu0 0.0
        %626 = vmatpush2.msra.mxu0 0.0
        %627 = vmatprep.subr.mxu0 0.0
        %628 = vmatpush2.msra.mxu0 0.0
        %629 = vmatprep.subr.mxu0 0.0
        %630 = vmatpush2.msra.mxu0 0.0
        %631 = vmatprep.subr.mxu0 0.0
        %632 = vmatpush2.msra.mxu0 0.0
        %633 = vmatprep.subr.mxu0 0.0
        %634 = vmatpush2.msra.mxu0 0.0
        %635 = vmatprep.subr.mxu0 0.0
        %636 = vmatpush2.msra.mxu0 0.0
        %637 = vmatprep.subr.mxu0 0.0
        %638 = vmatpush2.msra.mxu0 0.0
        %639 = vmatprep.subr.mxu0 0.0
        %640 = vmatpush2.msra.mxu0 0.0
        %641 = vmatprep.subr.mxu0 0.0
        %642 = vmatpush2.msra.mxu0 0.0
        %643 = vmatprep.subr.mxu0 0.0
        %644 = vmatpush2.msra.mxu0 0.0
        %645 = vmatprep.mubr.f32.mxu0 0.0
        %646 = vmatmul.mubr.f32.gmra.mxu0 %v439
        %v647 = vpop.f32.mrf.mxu0
        %v648 = vadd.f32 %v408, %v647
        %v649 = vpop.f32.mrf.mxu0
        %650 = vdwg.mxu0
        %651 = vmatprep.subr.mxu0 0.0
        %652 = vmatpush1.msra.mxu0 0.0
        %653 = vmatprep.subr.mxu0 0.0
        %654 = vmatpush1.msra.mxu0 0.0
        %655 = vmatprep.subr.mxu0 0.0
        %656 = vmatpush1.msra.mxu0 0.0
        %657 = vmatprep.subr.mxu0 0.0
        %658 = vmatpush1.msra.mxu0 0.0
        %659 = vmatprep.subr.mxu0 0.0
        %660 = vmatpush1.msra.mxu0 0.0
        %661 = vmatprep.subr.mxu0 0.0
        %662 = vmatpush1.msra.mxu0 0.0
        %663 = vmatprep.subr.mxu0 0.0
        %664 = vmatpush1.msra.mxu0 0.0
        %665 = vmatprep.subr.mxu0 0.0
        %666 = vmatpush1.msra.mxu0 0.0
        %667 = vmatprep.subr.mxu0 0.0
        %668 = vmatpush1.msra.mxu0 0.0
        %669 = vmatprep.subr.mxu0 0.0
        %670 = vmatpush1.msra.mxu0 0.0
        %671 = vmatprep.subr.mxu0 0.0
        %672 = vmatpush1.msra.mxu0 0.0
        %673 = vmatprep.subr.mxu0 0.0
        %674 = vmatpush1.msra.mxu0 0.0
        %675 = vmatprep.subr.mxu0 0.0
        %676 = vmatpush1.msra.mxu0 %v316
        %677 = vmatprep.subr.mxu0 0.0
        %678 = vmatpush1.msra.mxu0 %v315
        %679 = vmatprep.subr.mxu0 0.0
        %680 = vmatpush1.msra.mxu0 %v314
        %681 = vmatprep.subr.mxu0 0.0
        %682 = vmatpush1.msra.mxu0 %v313
        %683 = vmatprep.subr.mxu0 0.0
        %684 = vmatpush2.msra.mxu0 0.0
        %685 = vmatprep.subr.mxu0 0.0
        %686 = vmatpush2.msra.mxu0 0.0
        %687 = vmatprep.subr.mxu0 0.0
        %688 = vmatpush2.msra.mxu0 0.0
        %689 = vmatprep.subr.mxu0 0.0
        %690 = vmatpush2.msra.mxu0 0.0
        %691 = vmatprep.subr.mxu0 0.0
        %692 = vmatpush2.msra.mxu0 0.0
        %693 = vmatprep.subr.mxu0 0.0
        %694 = vmatpush2.msra.mxu0 0.0
        %695 = vmatprep.subr.mxu0 0.0
        %696 = vmatpush2.msra.mxu0 0.0
        %697 = vmatprep.subr.mxu0 0.0
        %698 = vmatpush2.msra.mxu0 0.0
        %699 = vmatprep.subr.mxu0 0.0
        %700 = vmatpush2.msra.mxu0 0.0
        %701 = vmatprep.subr.mxu0 0.0
        %702 = vmatpush2.msra.mxu0 0.0
        %703 = vmatprep.subr.mxu0 0.0
        %704 = vmatpush2.msra.mxu0 0.0
        %705 = vmatprep.subr.mxu0 0.0
        %706 = vmatpush2.msra.mxu0 0.0
        %707 = vmatprep.subr.mxu0 0.0
        %708 = vmatpush2.msra.mxu0 0.0
        %709 = vmatprep.subr.mxu0 0.0
        %710 = vmatpush2.msra.mxu0 0.0
        %711 = vmatprep.subr.mxu0 0.0
        %712 = vmatpush2.msra.mxu0 0.0
        %713 = vmatprep.subr.mxu0 0.0
        %714 = vmatpush2.msra.mxu0 0.0
        %715 = vmatprep.mubr.f32.mxu0 0.0
        %716 = vmatmul.mubr.f32.gmra.mxu0 %v439
        %v717 = vpop.f32.mrf.mxu0
        %v718 = vadd.f32 %v412, %v717
        %v719 = vpop.f32.mrf.mxu0
        %720 = vdwg.mxu0
        %721 = vmatprep.subr.mxu0 0.0
        %722 = vmatpush1.msra.mxu0 0.0
        %723 = vmatprep.subr.mxu0 0.0
        %724 = vmatpush1.msra.mxu0 0.0
        %725 = vmatprep.subr.mxu0 0.0
        %726 = vmatpush1.msra.mxu0 0.0
        %727 = vmatprep.subr.mxu0 0.0
        %728 = vmatpush1.msra.mxu0 0.0
        %729 = vmatprep.subr.mxu0 0.0
        %730 = vmatpush1.msra.mxu0 0.0
        %731 = vmatprep.subr.mxu0 0.0
        %732 = vmatpush1.msra.mxu0 0.0
        %733 = vmatprep.subr.mxu0 0.0
        %734 = vmatpush1.msra.mxu0 0.0
        %735 = vmatprep.subr.mxu0 0.0
        %736 = vmatpush1.msra.mxu0 0.0
        %737 = vmatprep.subr.mxu0 0.0
        %738 = vmatpush1.msra.mxu0 0.0
        %739 = vmatprep.subr.mxu0 0.0
        %740 = vmatpush1.msra.mxu0 0.0
        %741 = vmatprep.subr.mxu0 0.0
        %742 = vmatpush1.msra.mxu0 0.0
        %743 = vmatprep.subr.mxu0 0.0
        %744 = vmatpush1.msra.mxu0 0.0
        %745 = vmatprep.subr.mxu0 0.0
        %746 = vmatpush1.msra.mxu0 %v320
        %747 = vmatprep.subr.mxu0 0.0
        %748 = vmatpush1.msra.mxu0 %v319
        %749 = vmatprep.subr.mxu0 0.0
        %750 = vmatpush1.msra.mxu0 %v318
        %751 = vmatprep.subr.mxu0 0.0
        %752 = vmatpush1.msra.mxu0 %v317
        %753 = vmatprep.subr.mxu0 0.0
        %754 = vmatpush2.msra.mxu0 0.0
        %755 = vmatprep.subr.mxu0 0.0
        %756 = vmatpush2.msra.mxu0 0.0
        %757 = vmatprep.subr.mxu0 0.0
        %758 = vmatpush2.msra.mxu0 0.0
        %759 = vmatprep.subr.mxu0 0.0
        %760 = vmatpush2.msra.mxu0 0.0
        %761 = vmatprep.subr.mxu0 0.0
        %762 = vmatpush2.msra.mxu0 0.0
        %763 = vmatprep.subr.mxu0 0.0
        %764 = vmatpush2.msra.mxu0 0.0
        %765 = vmatprep.subr.mxu0 0.0
        %766 = vmatpush2.msra.mxu0 0.0
        %767 = vmatprep.subr.mxu0 0.0
        %768 = vmatpush2.msra.mxu0 0.0
        %769 = vmatprep.subr.mxu0 0.0
        %770 = vmatpush2.msra.mxu0 0.0
        %771 = vmatprep.subr.mxu0 0.0
        %772 = vmatpush2.msra.mxu0 0.0
        %773 = vmatprep.subr.mxu0 0.0
        %774 = vmatpush2.msra.mxu0 0.0
        %775 = vmatprep.subr.mxu0 0.0
        %776 = vmatpush2.msra.mxu0 0.0
        %777 = vmatprep.subr.mxu0 0.0
        %778 = vmatpush2.msra.mxu0 0.0
        %779 = vmatprep.subr.mxu0 0.0
        %780 = vmatpush2.msra.mxu0 0.0
        %781 = vmatprep.subr.mxu0 0.0
        %782 = vmatpush2.msra.mxu0 0.0
        %783 = vmatprep.subr.mxu0 0.0
        %784 = vmatpush2.msra.mxu0 0.0
        %785 = vmatprep.mubr.f32.mxu0 0.0
        %786 = vmatmul.mubr.f32.gmra.mxu0 %v439
        %v787 = vpop.f32.mrf.mxu0
        %v788 = vadd.f32 %v416, %v787
        %v789 = vpop.f32.mrf.mxu0
        %790 = vdwg.mxu0
        %791 = vmatprep.subr.mxu0 0.0
        %792 = vmatpush1.msra.mxu0 0.0
        %793 = vmatprep.subr.mxu0 0.0
        %794 = vmatpush1.msra.mxu0 0.0
        %795 = vmatprep.subr.mxu0 0.0
        %796 = vmatpush1.msra.mxu0 0.0
        %797 = vmatprep.subr.mxu0 0.0
        %798 = vmatpush1.msra.mxu0 0.0
        %799 = vmatprep.subr.mxu0 0.0
        %800 = vmatpush1.msra.mxu0 0.0
        %801 = vmatprep.subr.mxu0 0.0
        %802 = vmatpush1.msra.mxu0 0.0
        %803 = vmatprep.subr.mxu0 0.0
        %804 = vmatpush1.msra.mxu0 0.0
        %805 = vmatprep.subr.mxu0 0.0
        %806 = vmatpush1.msra.mxu0 0.0
        %807 = vmatprep.subr.mxu0 0.0
        %808 = vmatpush1.msra.mxu0 0.0
        %809 = vmatprep.subr.mxu0 0.0
        %810 = vmatpush1.msra.mxu0 0.0
        %811 = vmatprep.subr.mxu0 0.0
        %812 = vmatpush1.msra.mxu0 0.0
        %813 = vmatprep.subr.mxu0 0.0
        %814 = vmatpush1.msra.mxu0 0.0
        %815 = vmatprep.subr.mxu0 0.0
        %816 = vmatpush1.msra.mxu0 %v324
        %817 = vmatprep.subr.mxu0 0.0
        %818 = vmatpush1.msra.mxu0 %v323
        %819 = vmatprep.subr.mxu0 0.0
        %820 = vmatpush1.msra.mxu0 %v322
        %821 = vmatprep.subr.mxu0 0.0
        %822 = vmatpush1.msra.mxu0 %v321
        %823 = vmatprep.subr.mxu0 0.0
        %824 = vmatpush2.msra.mxu0 0.0
        %825 = vmatprep.subr.mxu0 0.0
        %826 = vmatpush2.msra.mxu0 0.0
        %827 = vmatprep.subr.mxu0 0.0
        %828 = vmatpush2.msra.mxu0 0.0
        %829 = vmatprep.subr.mxu0 0.0
        %830 = vmatpush2.msra.mxu0 0.0
        %831 = vmatprep.subr.mxu0 0.0
        %832 = vmatpush2.msra.mxu0 0.0
        %833 = vmatprep.subr.mxu0 0.0
        %834 = vmatpush2.msra.mxu0 0.0
        %835 = vmatprep.subr.mxu0 0.0
        %836 = vmatpush2.msra.mxu0 0.0
        %837 = vmatprep.subr.mxu0 0.0
        %838 = vmatpush2.msra.mxu0 0.0
        %839 = vmatprep.subr.mxu0 0.0
        %840 = vmatpush2.msra.mxu0 0.0
        %841 = vmatprep.subr.mxu0 0.0
        %842 = vmatpush2.msra.mxu0 0.0
        %843 = vmatprep.subr.mxu0 0.0
        %844 = vmatpush2.msra.mxu0 0.0
        %845 = vmatprep.subr.mxu0 0.0
        %846 = vmatpush2.msra.mxu0 0.0
        %847 = vmatprep.subr.mxu0 0.0
        %848 = vmatpush2.msra.mxu0 0.0
        %849 = vmatprep.subr.mxu0 0.0
        %850 = vmatpush2.msra.mxu0 0.0
        %851 = vmatprep.subr.mxu0 0.0
        %852 = vmatpush2.msra.mxu0 0.0
        %853 = vmatprep.subr.mxu0 0.0
        %854 = vmatpush2.msra.mxu0 0.0
        %855 = vmatprep.mubr.f32.mxu0 0.0
        %856 = vmatmul.mubr.f32.gmra.mxu0 %v439
        %v857 = vpop.f32.mrf.mxu0
        %v858 = vadd.f32 %v420, %v857
        %v859 = vpop.f32.mrf.mxu0
        %860 = vdwg.mxu0
        %861 = vmatprep.subr.mxu0 0.0
        %862 = vmatpush1.msra.mxu0 0.0
        %863 = vmatprep.subr.mxu0 0.0
        %864 = vmatpush1.msra.mxu0 0.0
        %865 = vmatprep.subr.mxu0 0.0
        %866 = vmatpush1.msra.mxu0 0.0
        %867 = vmatprep.subr.mxu0 0.0
        %868 = vmatpush1.msra.mxu0 0.0
        %869 = vmatprep.subr.mxu0 0.0
        %870 = vmatpush1.msra.mxu0 0.0
        %871 = vmatprep.subr.mxu0 0.0
        %872 = vmatpush1.msra.mxu0 0.0
        %873 = vmatprep.subr.mxu0 0.0
        %874 = vmatpush1.msra.mxu0 0.0
        %875 = vmatprep.subr.mxu0 0.0
        %876 = vmatpush1.msra.mxu0 0.0
        %877 = vmatprep.subr.mxu0 0.0
        %878 = vmatpush1.msra.mxu0 0.0
        %879 = vmatprep.subr.mxu0 0.0
        %880 = vmatpush1.msra.mxu0 0.0
        %881 = vmatprep.subr.mxu0 0.0
        %882 = vmatpush1.msra.mxu0 0.0
        %883 = vmatprep.subr.mxu0 0.0
        %884 = vmatpush1.msra.mxu0 0.0
        %885 = vmatprep.subr.mxu0 0.0
        %886 = vmatpush1.msra.mxu0 %v328
        %887 = vmatprep.subr.mxu0 0.0
        %888 = vmatpush1.msra.mxu0 %v327
        %889 = vmatprep.subr.mxu0 0.0
        %890 = vmatpush1.msra.mxu0 %v326
        %891 = vmatprep.subr.mxu0 0.0
        %892 = vmatpush1.msra.mxu0 %v325
        %893 = vmatprep.subr.mxu0 0.0
        %894 = vmatpush2.msra.mxu0 0.0
        %895 = vmatprep.subr.mxu0 0.0
        %896 = vmatpush2.msra.mxu0 0.0
        %897 = vmatprep.subr.mxu0 0.0
        %898 = vmatpush2.msra.mxu0 0.0
        %899 = vmatprep.subr.mxu0 0.0
        %900 = vmatpush2.msra.mxu0 0.0
        %901 = vmatprep.subr.mxu0 0.0
        %902 = vmatpush2.msra.mxu0 0.0
        %903 = vmatprep.subr.mxu0 0.0
        %904 = vmatpush2.msra.mxu0 0.0
        %905 = vmatprep.subr.mxu0 0.0
        %906 = vmatpush2.msra.mxu0 0.0
        %907 = vmatprep.subr.mxu0 0.0
        %908 = vmatpush2.msra.mxu0 0.0
        %909 = vmatprep.subr.mxu0 0.0
        %910 = vmatpush2.msra.mxu0 0.0
        %911 = vmatprep.subr.mxu0 0.0
        %912 = vmatpush2.msra.mxu0 0.0
        %913 = vmatprep.subr.mxu0 0.0
        %914 = vmatpush2.msra.mxu0 0.0
        %915 = vmatprep.subr.mxu0 0.0
        %916 = vmatpush2.msra.mxu0 0.0
        %917 = vmatprep.subr.mxu0 0.0
        %918 = vmatpush2.msra.mxu0 0.0
        %919 = vmatprep.subr.mxu0 0.0
        %920 = vmatpush2.msra.mxu0 0.0
        %921 = vmatprep.subr.mxu0 0.0
        %922 = vmatpush2.msra.mxu0 0.0
        %923 = vmatprep.subr.mxu0 0.0
        %924 = vmatpush2.msra.mxu0 0.0
        %925 = vmatprep.mubr.f32.mxu0 0.0
        %926 = vmatmul.mubr.f32.gmra.mxu0 %v439
        %v927 = vpop.f32.mrf.mxu0
        %v928 = vadd.f32 %v424, %v927
        %v929 = vpop.f32.mrf.mxu0
        %930 = vdwg.mxu0
        %931 = vmatprep.subr.mxu0 0.0
        %932 = vmatpush1.msra.mxu0 0.0
        %933 = vmatprep.subr.mxu0 0.0
        %934 = vmatpush1.msra.mxu0 0.0
        %935 = vmatprep.subr.mxu0 0.0
        %936 = vmatpush1.msra.mxu0 0.0
        %937 = vmatprep.subr.mxu0 0.0
        %938 = vmatpush1.msra.mxu0 0.0
        %939 = vmatprep.subr.mxu0 0.0
        %940 = vmatpush1.msra.mxu0 0.0
        %941 = vmatprep.subr.mxu0 0.0
        %942 = vmatpush1.msra.mxu0 0.0
        %943 = vmatprep.subr.mxu0 0.0
        %944 = vmatpush1.msra.mxu0 0.0
        %945 = vmatprep.subr.mxu0 0.0
        %946 = vmatpush1.msra.mxu0 0.0
        %947 = vmatprep.subr.mxu0 0.0
        %948 = vmatpush1.msra.mxu0 0.0
        %949 = vmatprep.subr.mxu0 0.0
        %950 = vmatpush1.msra.mxu0 0.0
        %951 = vmatprep.subr.mxu0 0.0
        %952 = vmatpush1.msra.mxu0 0.0
        %953 = vmatprep.subr.mxu0 0.0
        %954 = vmatpush1.msra.mxu0 0.0
        %955 = vmatprep.subr.mxu0 0.0
        %956 = vmatpush1.msra.mxu0 %v332
        %957 = vmatprep.subr.mxu0 0.0
        %958 = vmatpush1.msra.mxu0 %v331
        %959 = vmatprep.subr.mxu0 0.0
        %960 = vmatpush1.msra.mxu0 %v330
        %961 = vmatprep.subr.mxu0 0.0
        %962 = vmatpush1.msra.mxu0 %v329
        %963 = vmatprep.subr.mxu0 0.0
        %964 = vmatpush2.msra.mxu0 0.0
        %965 = vmatprep.subr.mxu0 0.0
        %966 = vmatpush2.msra.mxu0 0.0
        %967 = vmatprep.subr.mxu0 0.0
        %968 = vmatpush2.msra.mxu0 0.0
        %969 = vmatprep.subr.mxu0 0.0
        %970 = vmatpush2.msra.mxu0 0.0
        %971 = vmatprep.subr.mxu0 0.0
        %972 = vmatpush2.msra.mxu0 0.0
        %973 = vmatprep.subr.mxu0 0.0
        %974 = vmatpush2.msra.mxu0 0.0
        %975 = vmatprep.subr.mxu0 0.0
        %976 = vmatpush2.msra.mxu0 0.0
        %977 = vmatprep.subr.mxu0 0.0
        %978 = vmatpush2.msra.mxu0 0.0
        %979 = vmatprep.subr.mxu0 0.0
        %980 = vmatpush2.msra.mxu0 0.0
        %981 = vmatprep.subr.mxu0 0.0
        %982 = vmatpush2.msra.mxu0 0.0
        %983 = vmatprep.subr.mxu0 0.0
        %984 = vmatpush2.msra.mxu0 0.0
        %985 = vmatprep.subr.mxu0 0.0
        %986 = vmatpush2.msra.mxu0 0.0
        %987 = vmatprep.subr.mxu0 0.0
        %988 = vmatpush2.msra.mxu0 0.0
        %989 = vmatprep.subr.mxu0 0.0
        %990 = vmatpush2.msra.mxu0 0.0
        %991 = vmatprep.subr.mxu0 0.0
        %992 = vmatpush2.msra.mxu0 0.0
        %993 = vmatprep.subr.mxu0 0.0
        %994 = vmatpush2.msra.mxu0 0.0
        %995 = vmatprep.mubr.f32.mxu0 0.0
        %996 = vmatmul.mubr.f32.gmra.mxu0 %v439
        %v997 = vpop.f32.mrf.mxu0
        %v998 = vadd.f32 %v428, %v997
        %v999 = vpop.f32.mrf.mxu0
        %1000 = vdwg.mxu0
        %1002 = vrot.lane.b32.xlu0 %v508, 124
        %v1003 = vpop.permute.xlu0 %1002
        %vm1004 = vcmask 31744
        %v1005 = vsel %vm1004, %v508, 0
        %v1007 = vsel %vm1004, %v1003, 0
        %1009 = vmatprep.subr.mxu0 0.0
        %1010 = vmatpush1.xpose.msra.mxu0 0.0
        %1011 = vmatprep.subr.mxu0 0.0
        %1012 = vmatpush1.xpose.msra.mxu0 0.0
        %1013 = vmatprep.subr.mxu0 0.0
        %1014 = vmatpush1.xpose.msra.mxu0 0.0
        %1015 = vmatprep.subr.mxu0 0.0
        %1016 = vmatpush1.xpose.msra.mxu0 0.0
        %1017 = vmatprep.subr.mxu0 0.0
        %1018 = vmatpush1.xpose.msra.mxu0 0.0
        %1019 = vmatprep.subr.mxu0 0.0
        %1020 = vmatpush1.xpose.msra.mxu0 0.0
        %1021 = vmatprep.subr.mxu0 0.0
        %1022 = vmatpush1.xpose.msra.mxu0 0.0
        %1023 = vmatprep.subr.mxu0 0.0
        %1024 = vmatpush1.xpose.msra.mxu0 0.0
        %1025 = vmatprep.subr.mxu0 0.0
        %1026 = vmatpush1.xpose.msra.mxu0 0.0
        %1027 = vmatprep.subr.mxu0 0.0
        %1028 = vmatpush1.xpose.msra.mxu0 0.0
        %1029 = vmatprep.subr.mxu0 0.0
        %1030 = vmatpush1.xpose.msra.mxu0 0.0
        %1031 = vmatprep.subr.mxu0 0.0
        %1032 = vmatpush1.xpose.msra.mxu0 0.0
        %1033 = vmatprep.subr.mxu0 0.0
        %1034 = vmatpush1.xpose.msra.mxu0 0.0
        %1035 = vmatprep.subr.mxu0 0.0
        %1036 = vmatpush1.xpose.msra.mxu0 0.0
        %1037 = vmatprep.subr.mxu0 0.0
        %1038 = vmatpush1.xpose.msra.mxu0 0.0
        %1039 = vmatprep.subr.mxu0 0.0
        %1040 = vmatpush1.xpose.msra.mxu0 %v1007
        %1041 = vmatprep.subr.mxu0 0.0
        %1042 = vmatpush2.xpose.msra.mxu0 0.0
        %1043 = vmatprep.subr.mxu0 0.0
        %1044 = vmatpush2.xpose.msra.mxu0 0.0
        %1045 = vmatprep.subr.mxu0 0.0
        %1046 = vmatpush2.xpose.msra.mxu0 0.0
        %1047 = vmatprep.subr.mxu0 0.0
        %1048 = vmatpush2.xpose.msra.mxu0 0.0
        %1049 = vmatprep.subr.mxu0 0.0
        %1050 = vmatpush2.xpose.msra.mxu0 0.0
        %1051 = vmatprep.subr.mxu0 0.0
        %1052 = vmatpush2.xpose.msra.mxu0 0.0
        %1053 = vmatprep.subr.mxu0 0.0
        %1054 = vmatpush2.xpose.msra.mxu0 0.0
        %1055 = vmatprep.subr.mxu0 0.0
        %1056 = vmatpush2.xpose.msra.mxu0 0.0
        %1057 = vmatprep.subr.mxu0 0.0
        %1058 = vmatpush2.xpose.msra.mxu0 0.0
        %1059 = vmatprep.subr.mxu0 0.0
        %1060 = vmatpush2.xpose.msra.mxu0 0.0
        %1061 = vmatprep.subr.mxu0 0.0
        %1062 = vmatpush2.xpose.msra.mxu0 0.0
        %1063 = vmatprep.subr.mxu0 0.0
        %1064 = vmatpush2.xpose.msra.mxu0 0.0
        %1065 = vmatprep.subr.mxu0 0.0
        %1066 = vmatpush2.xpose.msra.mxu0 0.0
        %1067 = vmatprep.subr.mxu0 0.0
        %1068 = vmatpush2.xpose.msra.mxu0 0.0
        %1069 = vmatprep.subr.mxu0 0.0
        %1070 = vmatpush2.xpose.msra.mxu0 0.0
        %1071 = vmatprep.subr.mxu0 0.0
        %1072 = vmatpush2.xpose.msra.mxu0 0.0
        %1073 = vmatprep.mubr.f32.mxu0 0.0
        %1074 = vmatmul.mubr.f32.gmra.mxu0 %v1005
        %v1075 = vpop.f32.mrf.mxu0
        %v1076 = vadd.f32 0.0, %v1075
        %v1077 = vpop.f32.mrf.mxu0
        %1078 = vdwg.mxu0
        %1080 = vrot.lane.b32.xlu0 %v578, 124
        %v1081 = vpop.permute.xlu0 %1080
        %v1082 = vsel %vm1004, %v578, 0
        %v1084 = vsel %vm1004, %v1081, 0
        %1086 = vmatprep.subr.mxu0 0.0
        %1087 = vmatpush1.xpose.msra.mxu0 0.0
        %1088 = vmatprep.subr.mxu0 0.0
        %1089 = vmatpush1.xpose.msra.mxu0 0.0
        %1090 = vmatprep.subr.mxu0 0.0
        %1091 = vmatpush1.xpose.msra.mxu0 0.0
        %1092 = vmatprep.subr.mxu0 0.0
        %1093 = vmatpush1.xpose.msra.mxu0 0.0
        %1094 = vmatprep.subr.mxu0 0.0
        %1095 = vmatpush1.xpose.msra.mxu0 0.0
        %1096 = vmatprep.subr.mxu0 0.0
        %1097 = vmatpush1.xpose.msra.mxu0 0.0
        %1098 = vmatprep.subr.mxu0 0.0
        %1099 = vmatpush1.xpose.msra.mxu0 0.0
        %1100 = vmatprep.subr.mxu0 0.0
        %1101 = vmatpush1.xpose.msra.mxu0 0.0
        %1102 = vmatprep.subr.mxu0 0.0
        %1103 = vmatpush1.xpose.msra.mxu0 0.0
        %1104 = vmatprep.subr.mxu0 0.0
        %1105 = vmatpush1.xpose.msra.mxu0 0.0
        %1106 = vmatprep.subr.mxu0 0.0
        %1107 = vmatpush1.xpose.msra.mxu0 0.0
        %1108 = vmatprep.subr.mxu0 0.0
        %1109 = vmatpush1.xpose.msra.mxu0 0.0
        %1110 = vmatprep.subr.mxu0 0.0
        %1111 = vmatpush1.xpose.msra.mxu0 0.0
        %1112 = vmatprep.subr.mxu0 0.0
        %1113 = vmatpush1.xpose.msra.mxu0 0.0
        %1114 = vmatprep.subr.mxu0 0.0
        %1115 = vmatpush1.xpose.msra.mxu0 0.0
        %1116 = vmatprep.subr.mxu0 0.0
        %1117 = vmatpush1.xpose.msra.mxu0 %v1084
        %1118 = vmatprep.subr.mxu0 0.0
        %1119 = vmatpush2.xpose.msra.mxu0 0.0
        %1120 = vmatprep.subr.mxu0 0.0
        %1121 = vmatpush2.xpose.msra.mxu0 0.0
        %1122 = vmatprep.subr.mxu0 0.0
        %1123 = vmatpush2.xpose.msra.mxu0 0.0
        %1124 = vmatprep.subr.mxu0 0.0
        %1125 = vmatpush2.xpose.msra.mxu0 0.0
        %1126 = vmatprep.subr.mxu0 0.0
        %1127 = vmatpush2.xpose.msra.mxu0 0.0
        %1128 = vmatprep.subr.mxu0 0.0
        %1129 = vmatpush2.xpose.msra.mxu0 0.0
        %1130 = vmatprep.subr.mxu0 0.0
        %1131 = vmatpush2.xpose.msra.mxu0 0.0
        %1132 = vmatprep.subr.mxu0 0.0
        %1133 = vmatpush2.xpose.msra.mxu0 0.0
        %1134 = vmatprep.subr.mxu0 0.0
        %1135 = vmatpush2.xpose.msra.mxu0 0.0
        %1136 = vmatprep.subr.mxu0 0.0
        %1137 = vmatpush2.xpose.msra.mxu0 0.0
        %1138 = vmatprep.subr.mxu0 0.0
        %1139 = vmatpush2.xpose.msra.mxu0 0.0
        %1140 = vmatprep.subr.mxu0 0.0
        %1141 = vmatpush2.xpose.msra.mxu0 0.0
        %1142 = vmatprep.subr.mxu0 0.0
        %1143 = vmatpush2.xpose.msra.mxu0 0.0
        %1144 = vmatprep.subr.mxu0 0.0
        %1145 = vmatpush2.xpose.msra.mxu0 0.0
        %1146 = vmatprep.subr.mxu0 0.0
        %1147 = vmatpush2.xpose.msra.mxu0 0.0
        %1148 = vmatprep.subr.mxu0 0.0
        %1149 = vmatpush2.xpose.msra.mxu0 0.0
        %1150 = vmatprep.mubr.f32.mxu0 0.0
        %1151 = vmatmul.mubr.f32.gmra.mxu0 %v1082
        %v1152 = vpop.f32.mrf.mxu0
        %v1153 = vadd.f32 0.0, %v1152
        %v1154 = vpop.f32.mrf.mxu0
        %1155 = vdwg.mxu0
        %1157 = vrot.lane.b32.xlu0 %v648, 124
        %v1158 = vpop.permute.xlu0 %1157
        %v1159 = vsel %vm1004, %v648, 0
        %v1161 = vsel %vm1004, %v1158, 0
        %1163 = vmatprep.subr.mxu0 0.0
        %1164 = vmatpush1.xpose.msra.mxu0 0.0
        %1165 = vmatprep.subr.mxu0 0.0
        %1166 = vmatpush1.xpose.msra.mxu0 0.0
        %1167 = vmatprep.subr.mxu0 0.0
        %1168 = vmatpush1.xpose.msra.mxu0 0.0
        %1169 = vmatprep.subr.mxu0 0.0
        %1170 = vmatpush1.xpose.msra.mxu0 0.0
        %1171 = vmatprep.subr.mxu0 0.0
        %1172 = vmatpush1.xpose.msra.mxu0 0.0
        %1173 = vmatprep.subr.mxu0 0.0
        %1174 = vmatpush1.xpose.msra.mxu0 0.0
        %1175 = vmatprep.subr.mxu0 0.0
        %1176 = vmatpush1.xpose.msra.mxu0 0.0
        %1177 = vmatprep.subr.mxu0 0.0
        %1178 = vmatpush1.xpose.msra.mxu0 0.0
        %1179 = vmatprep.subr.mxu0 0.0
        %1180 = vmatpush1.xpose.msra.mxu0 0.0
        %1181 = vmatprep.subr.mxu0 0.0
        %1182 = vmatpush1.xpose.msra.mxu0 0.0
        %1183 = vmatprep.subr.mxu0 0.0
        %1184 = vmatpush1.xpose.msra.mxu0 0.0
        %1185 = vmatprep.subr.mxu0 0.0
        %1186 = vmatpush1.xpose.msra.mxu0 0.0
        %1187 = vmatprep.subr.mxu0 0.0
        %1188 = vmatpush1.xpose.msra.mxu0 0.0
        %1189 = vmatprep.subr.mxu0 0.0
        %1190 = vmatpush1.xpose.msra.mxu0 0.0
        %1191 = vmatprep.subr.mxu0 0.0
        %1192 = vmatpush1.xpose.msra.mxu0 0.0
        %1193 = vmatprep.subr.mxu0 0.0
        %1194 = vmatpush1.xpose.msra.mxu0 %v1161
        %1195 = vmatprep.subr.mxu0 0.0
        %1196 = vmatpush2.xpose.msra.mxu0 0.0
        %1197 = vmatprep.subr.mxu0 0.0
        %1198 = vmatpush2.xpose.msra.mxu0 0.0
        %1199 = vmatprep.subr.mxu0 0.0
        %1200 = vmatpush2.xpose.msra.mxu0 0.0
        %1201 = vmatprep.subr.mxu0 0.0
        %1202 = vmatpush2.xpose.msra.mxu0 0.0
        %1203 = vmatprep.subr.mxu0 0.0
        %1204 = vmatpush2.xpose.msra.mxu0 0.0
        %1205 = vmatprep.subr.mxu0 0.0
        %1206 = vmatpush2.xpose.msra.mxu0 0.0
        %1207 = vmatprep.subr.mxu0 0.0
        %1208 = vmatpush2.xpose.msra.mxu0 0.0
        %1209 = vmatprep.subr.mxu0 0.0
        %1210 = vmatpush2.xpose.msra.mxu0 0.0
        %1211 = vmatprep.subr.mxu0 0.0
        %1212 = vmatpush2.xpose.msra.mxu0 0.0
        %1213 = vmatprep.subr.mxu0 0.0
        %1214 = vmatpush2.xpose.msra.mxu0 0.0
        %1215 = vmatprep.subr.mxu0 0.0
        %1216 = vmatpush2.xpose.msra.mxu0 0.0
        %1217 = vmatprep.subr.mxu0 0.0
        %1218 = vmatpush2.xpose.msra.mxu0 0.0
        %1219 = vmatprep.subr.mxu0 0.0
        %1220 = vmatpush2.xpose.msra.mxu0 0.0
        %1221 = vmatprep.subr.mxu0 0.0
        %1222 = vmatpush2.xpose.msra.mxu0 0.0
        %1223 = vmatprep.subr.mxu0 0.0
        %1224 = vmatpush2.xpose.msra.mxu0 0.0
        %1225 = vmatprep.subr.mxu0 0.0
        %1226 = vmatpush2.xpose.msra.mxu0 0.0
        %1227 = vmatprep.mubr.f32.mxu0 0.0
        %1228 = vmatmul.mubr.f32.gmra.mxu0 %v1159
        %v1229 = vpop.f32.mrf.mxu0
        %v1230 = vadd.f32 0.0, %v1229
        %v1231 = vpop.f32.mrf.mxu0
        %1232 = vdwg.mxu0
        %1234 = vrot.lane.b32.xlu0 %v718, 124
        %v1235 = vpop.permute.xlu0 %1234
        %v1236 = vsel %vm1004, %v718, 0
        %v1238 = vsel %vm1004, %v1235, 0
        %1240 = vmatprep.subr.mxu0 0.0
        %1241 = vmatpush1.xpose.msra.mxu0 0.0
        %1242 = vmatprep.subr.mxu0 0.0
        %1243 = vmatpush1.xpose.msra.mxu0 0.0
        %1244 = vmatprep.subr.mxu0 0.0
        %1245 = vmatpush1.xpose.msra.mxu0 0.0
        %1246 = vmatprep.subr.mxu0 0.0
        %1247 = vmatpush1.xpose.msra.mxu0 0.0
        %1248 = vmatprep.subr.mxu0 0.0
        %1249 = vmatpush1.xpose.msra.mxu0 0.0
        %1250 = vmatprep.subr.mxu0 0.0
        %1251 = vmatpush1.xpose.msra.mxu0 0.0
        %1252 = vmatprep.subr.mxu0 0.0
        %1253 = vmatpush1.xpose.msra.mxu0 0.0
        %1254 = vmatprep.subr.mxu0 0.0
        %1255 = vmatpush1.xpose.msra.mxu0 0.0
        %1256 = vmatprep.subr.mxu0 0.0
        %1257 = vmatpush1.xpose.msra.mxu0 0.0
        %1258 = vmatprep.subr.mxu0 0.0
        %1259 = vmatpush1.xpose.msra.mxu0 0.0
        %1260 = vmatprep.subr.mxu0 0.0
        %1261 = vmatpush1.xpose.msra.mxu0 0.0
        %1262 = vmatprep.subr.mxu0 0.0
        %1263 = vmatpush1.xpose.msra.mxu0 0.0
        %1264 = vmatprep.subr.mxu0 0.0
        %1265 = vmatpush1.xpose.msra.mxu0 0.0
        %1266 = vmatprep.subr.mxu0 0.0
        %1267 = vmatpush1.xpose.msra.mxu0 0.0
        %1268 = vmatprep.subr.mxu0 0.0
        %1269 = vmatpush1.xpose.msra.mxu0 0.0
        %1270 = vmatprep.subr.mxu0 0.0
        %1271 = vmatpush1.xpose.msra.mxu0 %v1238
        %1272 = vmatprep.subr.mxu0 0.0
        %1273 = vmatpush2.xpose.msra.mxu0 0.0
        %1274 = vmatprep.subr.mxu0 0.0
        %1275 = vmatpush2.xpose.msra.mxu0 0.0
        %1276 = vmatprep.subr.mxu0 0.0
        %1277 = vmatpush2.xpose.msra.mxu0 0.0
        %1278 = vmatprep.subr.mxu0 0.0
        %1279 = vmatpush2.xpose.msra.mxu0 0.0
        %1280 = vmatprep.subr.mxu0 0.0
        %1281 = vmatpush2.xpose.msra.mxu0 0.0
        %1282 = vmatprep.subr.mxu0 0.0
        %1283 = vmatpush2.xpose.msra.mxu0 0.0
        %1284 = vmatprep.subr.mxu0 0.0
        %1285 = vmatpush2.xpose.msra.mxu0 0.0
        %1286 = vmatprep.subr.mxu0 0.0
        %1287 = vmatpush2.xpose.msra.mxu0 0.0
        %1288 = vmatprep.subr.mxu0 0.0
        %1289 = vmatpush2.xpose.msra.mxu0 0.0
        %1290 = vmatprep.subr.mxu0 0.0
        %1291 = vmatpush2.xpose.msra.mxu0 0.0
        %1292 = vmatprep.subr.mxu0 0.0
        %1293 = vmatpush2.xpose.msra.mxu0 0.0
        %1294 = vmatprep.subr.mxu0 0.0
        %1295 = vmatpush2.xpose.msra.mxu0 0.0
        %1296 = vmatprep.subr.mxu0 0.0
        %1297 = vmatpush2.xpose.msra.mxu0 0.0
        %1298 = vmatprep.subr.mxu0 0.0
        %1299 = vmatpush2.xpose.msra.mxu0 0.0
        %1300 = vmatprep.subr.mxu0 0.0
        %1301 = vmatpush2.xpose.msra.mxu0 0.0
        %1302 = vmatprep.subr.mxu0 0.0
        %1303 = vmatpush2.xpose.msra.mxu0 0.0
        %1304 = vmatprep.mubr.f32.mxu0 0.0
        %1305 = vmatmul.mubr.f32.gmra.mxu0 %v1236
        %v1306 = vpop.f32.mrf.mxu0
        %v1307 = vadd.f32 0.0, %v1306
        %v1308 = vpop.f32.mrf.mxu0
        %1309 = vdwg.mxu0
        %1311 = vrot.lane.b32.xlu0 %v788, 124
        %v1312 = vpop.permute.xlu0 %1311
        %v1313 = vsel %vm1004, %v788, 0
        %v1315 = vsel %vm1004, %v1312, 0
        %1317 = vmatprep.subr.mxu0 0.0
        %1318 = vmatpush1.xpose.msra.mxu0 0.0
        %1319 = vmatprep.subr.mxu0 0.0
        %1320 = vmatpush1.xpose.msra.mxu0 0.0
        %1321 = vmatprep.subr.mxu0 0.0
        %1322 = vmatpush1.xpose.msra.mxu0 0.0
        %1323 = vmatprep.subr.mxu0 0.0
        %1324 = vmatpush1.xpose.msra.mxu0 0.0
        %1325 = vmatprep.subr.mxu0 0.0
        %1326 = vmatpush1.xpose.msra.mxu0 0.0
        %1327 = vmatprep.subr.mxu0 0.0
        %1328 = vmatpush1.xpose.msra.mxu0 0.0
        %1329 = vmatprep.subr.mxu0 0.0
        %1330 = vmatpush1.xpose.msra.mxu0 0.0
        %1331 = vmatprep.subr.mxu0 0.0
        %1332 = vmatpush1.xpose.msra.mxu0 0.0
        %1333 = vmatprep.subr.mxu0 0.0
        %1334 = vmatpush1.xpose.msra.mxu0 0.0
        %1335 = vmatprep.subr.mxu0 0.0
        %1336 = vmatpush1.xpose.msra.mxu0 0.0
        %1337 = vmatprep.subr.mxu0 0.0
        %1338 = vmatpush1.xpose.msra.mxu0 0.0
        %1339 = vmatprep.subr.mxu0 0.0
        %1340 = vmatpush1.xpose.msra.mxu0 0.0
        %1341 = vmatprep.subr.mxu0 0.0
        %1342 = vmatpush1.xpose.msra.mxu0 0.0
        %1343 = vmatprep.subr.mxu0 0.0
        %1344 = vmatpush1.xpose.msra.mxu0 0.0
        %1345 = vmatprep.subr.mxu0 0.0
        %1346 = vmatpush1.xpose.msra.mxu0 0.0
        %1347 = vmatprep.subr.mxu0 0.0
        %1348 = vmatpush1.xpose.msra.mxu0 %v1315
        %1349 = vmatprep.subr.mxu0 0.0
        %1350 = vmatpush2.xpose.msra.mxu0 0.0
        %1351 = vmatprep.subr.mxu0 0.0
        %1352 = vmatpush2.xpose.msra.mxu0 0.0
        %1353 = vmatprep.subr.mxu0 0.0
        %1354 = vmatpush2.xpose.msra.mxu0 0.0
        %1355 = vmatprep.subr.mxu0 0.0
        %1356 = vmatpush2.xpose.msra.mxu0 0.0
        %1357 = vmatprep.subr.mxu0 0.0
        %1358 = vmatpush2.xpose.msra.mxu0 0.0
        %1359 = vmatprep.subr.mxu0 0.0
        %1360 = vmatpush2.xpose.msra.mxu0 0.0
        %1361 = vmatprep.subr.mxu0 0.0
        %1362 = vmatpush2.xpose.msra.mxu0 0.0
        %1363 = vmatprep.subr.mxu0 0.0
        %1364 = vmatpush2.xpose.msra.mxu0 0.0
        %1365 = vmatprep.subr.mxu0 0.0
        %1366 = vmatpush2.xpose.msra.mxu0 0.0
        %1367 = vmatprep.subr.mxu0 0.0
        %1368 = vmatpush2.xpose.msra.mxu0 0.0
        %1369 = vmatprep.subr.mxu0 0.0
        %1370 = vmatpush2.xpose.msra.mxu0 0.0
        %1371 = vmatprep.subr.mxu0 0.0
        %1372 = vmatpush2.xpose.msra.mxu0 0.0
        %1373 = vmatprep.subr.mxu0 0.0
        %1374 = vmatpush2.xpose.msra.mxu0 0.0
        %1375 = vmatprep.subr.mxu0 0.0
        %1376 = vmatpush2.xpose.msra.mxu0 0.0
        %1377 = vmatprep.subr.mxu0 0.0
        %1378 = vmatpush2.xpose.msra.mxu0 0.0
        %1379 = vmatprep.subr.mxu0 0.0
        %1380 = vmatpush2.xpose.msra.mxu0 0.0
        %1381 = vmatprep.mubr.f32.mxu0 0.0
        %1382 = vmatmul.mubr.f32.gmra.mxu0 %v1313
        %v1383 = vpop.f32.mrf.mxu0
        %v1384 = vadd.f32 0.0, %v1383
        %v1385 = vpop.f32.mrf.mxu0
        %1386 = vdwg.mxu0
        %1388 = vrot.lane.b32.xlu0 %v858, 124
        %v1389 = vpop.permute.xlu0 %1388
        %v1390 = vsel %vm1004, %v858, 0
        %v1392 = vsel %vm1004, %v1389, 0
        %1394 = vmatprep.subr.mxu0 0.0
        %1395 = vmatpush1.xpose.msra.mxu0 0.0
        %1396 = vmatprep.subr.mxu0 0.0
        %1397 = vmatpush1.xpose.msra.mxu0 0.0
        %1398 = vmatprep.subr.mxu0 0.0
        %1399 = vmatpush1.xpose.msra.mxu0 0.0
        %1400 = vmatprep.subr.mxu0 0.0
        %1401 = vmatpush1.xpose.msra.mxu0 0.0
        %1402 = vmatprep.subr.mxu0 0.0
        %1403 = vmatpush1.xpose.msra.mxu0 0.0
        %1404 = vmatprep.subr.mxu0 0.0
        %1405 = vmatpush1.xpose.msra.mxu0 0.0
        %1406 = vmatprep.subr.mxu0 0.0
        %1407 = vmatpush1.xpose.msra.mxu0 0.0
        %1408 = vmatprep.subr.mxu0 0.0
        %1409 = vmatpush1.xpose.msra.mxu0 0.0
        %1410 = vmatprep.subr.mxu0 0.0
        %1411 = vmatpush1.xpose.msra.mxu0 0.0
        %1412 = vmatprep.subr.mxu0 0.0
        %1413 = vmatpush1.xpose.msra.mxu0 0.0
        %1414 = vmatprep.subr.mxu0 0.0
        %1415 = vmatpush1.xpose.msra.mxu0 0.0
        %1416 = vmatprep.subr.mxu0 0.0
        %1417 = vmatpush1.xpose.msra.mxu0 0.0
        %1418 = vmatprep.subr.mxu0 0.0
        %1419 = vmatpush1.xpose.msra.mxu0 0.0
        %1420 = vmatprep.subr.mxu0 0.0
        %1421 = vmatpush1.xpose.msra.mxu0 0.0
        %1422 = vmatprep.subr.mxu0 0.0
        %1423 = vmatpush1.xpose.msra.mxu0 0.0
        %1424 = vmatprep.subr.mxu0 0.0
        %1425 = vmatpush1.xpose.msra.mxu0 %v1392
        %1426 = vmatprep.subr.mxu0 0.0
        %1427 = vmatpush2.xpose.msra.mxu0 0.0
        %1428 = vmatprep.subr.mxu0 0.0
        %1429 = vmatpush2.xpose.msra.mxu0 0.0
        %1430 = vmatprep.subr.mxu0 0.0
        %1431 = vmatpush2.xpose.msra.mxu0 0.0
        %1432 = vmatprep.subr.mxu0 0.0
        %1433 = vmatpush2.xpose.msra.mxu0 0.0
        %1434 = vmatprep.subr.mxu0 0.0
        %1435 = vmatpush2.xpose.msra.mxu0 0.0
        %1436 = vmatprep.subr.mxu0 0.0
        %1437 = vmatpush2.xpose.msra.mxu0 0.0
        %1438 = vmatprep.subr.mxu0 0.0
        %1439 = vmatpush2.xpose.msra.mxu0 0.0
        %1440 = vmatprep.subr.mxu0 0.0
        %1441 = vmatpush2.xpose.msra.mxu0 0.0
        %1442 = vmatprep.subr.mxu0 0.0
        %1443 = vmatpush2.xpose.msra.mxu0 0.0
        %1444 = vmatprep.subr.mxu0 0.0
        %1445 = vmatpush2.xpose.msra.mxu0 0.0
        %1446 = vmatprep.subr.mxu0 0.0
        %1447 = vmatpush2.xpose.msra.mxu0 0.0
        %1448 = vmatprep.subr.mxu0 0.0
        %1449 = vmatpush2.xpose.msra.mxu0 0.0
        %1450 = vmatprep.subr.mxu0 0.0
        %1451 = vmatpush2.xpose.msra.mxu0 0.0
        %1452 = vmatprep.subr.mxu0 0.0
        %1453 = vmatpush2.xpose.msra.mxu0 0.0
        %1454 = vmatprep.subr.mxu0 0.0
        %1455 = vmatpush2.xpose.msra.mxu0 0.0
        %1456 = vmatprep.subr.mxu0 0.0
        %1457 = vmatpush2.xpose.msra.mxu0 0.0
        %1458 = vmatprep.mubr.f32.mxu0 0.0
        %1459 = vmatmul.mubr.f32.gmra.mxu0 %v1390
        %v1460 = vpop.f32.mrf.mxu0
        %v1461 = vadd.f32 0.0, %v1460
        %v1462 = vpop.f32.mrf.mxu0
        %1463 = vdwg.mxu0
        %1465 = vrot.lane.b32.xlu0 %v928, 124
        %v1466 = vpop.permute.xlu0 %1465
        %v1467 = vsel %vm1004, %v928, 0
        %v1469 = vsel %vm1004, %v1466, 0
        %1471 = vmatprep.subr.mxu0 0.0
        %1472 = vmatpush1.xpose.msra.mxu0 0.0
        %1473 = vmatprep.subr.mxu0 0.0
        %1474 = vmatpush1.xpose.msra.mxu0 0.0
        %1475 = vmatprep.subr.mxu0 0.0
        %1476 = vmatpush1.xpose.msra.mxu0 0.0
        %1477 = vmatprep.subr.mxu0 0.0
        %1478 = vmatpush1.xpose.msra.mxu0 0.0
        %1479 = vmatprep.subr.mxu0 0.0
        %1480 = vmatpush1.xpose.msra.mxu0 0.0
        %1481 = vmatprep.subr.mxu0 0.0
        %1482 = vmatpush1.xpose.msra.mxu0 0.0
        %1483 = vmatprep.subr.mxu0 0.0
        %1484 = vmatpush1.xpose.msra.mxu0 0.0
        %1485 = vmatprep.subr.mxu0 0.0
        %1486 = vmatpush1.xpose.msra.mxu0 0.0
        %1487 = vmatprep.subr.mxu0 0.0
        %1488 = vmatpush1.xpose.msra.mxu0 0.0
        %1489 = vmatprep.subr.mxu0 0.0
        %1490 = vmatpush1.xpose.msra.mxu0 0.0
        %1491 = vmatprep.subr.mxu0 0.0
        %1492 = vmatpush1.xpose.msra.mxu0 0.0
        %1493 = vmatprep.subr.mxu0 0.0
        %1494 = vmatpush1.xpose.msra.mxu0 0.0
        %1495 = vmatprep.subr.mxu0 0.0
        %1496 = vmatpush1.xpose.msra.mxu0 0.0
        %1497 = vmatprep.subr.mxu0 0.0
        %1498 = vmatpush1.xpose.msra.mxu0 0.0
        %1499 = vmatprep.subr.mxu0 0.0
        %1500 = vmatpush1.xpose.msra.mxu0 0.0
        %1501 = vmatprep.subr.mxu0 0.0
        %1502 = vmatpush1.xpose.msra.mxu0 %v1469
        %1503 = vmatprep.subr.mxu0 0.0
        %1504 = vmatpush2.xpose.msra.mxu0 0.0
        %1505 = vmatprep.subr.mxu0 0.0
        %1506 = vmatpush2.xpose.msra.mxu0 0.0
        %1507 = vmatprep.subr.mxu0 0.0
        %1508 = vmatpush2.xpose.msra.mxu0 0.0
        %1509 = vmatprep.subr.mxu0 0.0
        %1510 = vmatpush2.xpose.msra.mxu0 0.0
        %1511 = vmatprep.subr.mxu0 0.0
        %1512 = vmatpush2.xpose.msra.mxu0 0.0
        %1513 = vmatprep.subr.mxu0 0.0
        %1514 = vmatpush2.xpose.msra.mxu0 0.0
        %1515 = vmatprep.subr.mxu0 0.0
        %1516 = vmatpush2.xpose.msra.mxu0 0.0
        %1517 = vmatprep.subr.mxu0 0.0
        %1518 = vmatpush2.xpose.msra.mxu0 0.0
        %1519 = vmatprep.subr.mxu0 0.0
        %1520 = vmatpush2.xpose.msra.mxu0 0.0
        %1521 = vmatprep.subr.mxu0 0.0
        %1522 = vmatpush2.xpose.msra.mxu0 0.0
        %1523 = vmatprep.subr.mxu0 0.0
        %1524 = vmatpush2.xpose.msra.mxu0 0.0
        %1525 = vmatprep.subr.mxu0 0.0
        %1526 = vmatpush2.xpose.msra.mxu0 0.0
        %1527 = vmatprep.subr.mxu0 0.0
        %1528 = vmatpush2.xpose.msra.mxu0 0.0
        %1529 = vmatprep.subr.mxu0 0.0
        %1530 = vmatpush2.xpose.msra.mxu0 0.0
        %1531 = vmatprep.subr.mxu0 0.0
        %1532 = vmatpush2.xpose.msra.mxu0 0.0
        %1533 = vmatprep.subr.mxu0 0.0
        %1534 = vmatpush2.xpose.msra.mxu0 0.0
        %1535 = vmatprep.mubr.f32.mxu0 0.0
        %1536 = vmatmul.mubr.f32.gmra.mxu0 %v1467
        %v1537 = vpop.f32.mrf.mxu0
        %v1538 = vadd.f32 0.0, %v1537
        %v1539 = vpop.f32.mrf.mxu0
        %1540 = vdwg.mxu0
        %1542 = vrot.lane.b32.xlu0 %v998, 124
        %v1543 = vpop.permute.xlu0 %1542
        %v1544 = vsel %vm1004, %v998, 0
        %v1546 = vsel %vm1004, %v1543, 0
        %1548 = vmatprep.subr.mxu0 0.0
        %1549 = vmatpush1.xpose.msra.mxu0 0.0
        %1550 = vmatprep.subr.mxu0 0.0
        %1551 = vmatpush1.xpose.msra.mxu0 0.0
        %1552 = vmatprep.subr.mxu0 0.0
        %1553 = vmatpush1.xpose.msra.mxu0 0.0
        %1554 = vmatprep.subr.mxu0 0.0
        %1555 = vmatpush1.xpose.msra.mxu0 0.0
        %1556 = vmatprep.subr.mxu0 0.0
        %1557 = vmatpush1.xpose.msra.mxu0 0.0
        %1558 = vmatprep.subr.mxu0 0.0
        %1559 = vmatpush1.xpose.msra.mxu0 0.0
        %1560 = vmatprep.subr.mxu0 0.0
        %1561 = vmatpush1.xpose.msra.mxu0 0.0
        %1562 = vmatprep.subr.mxu0 0.0
        %1563 = vmatpush1.xpose.msra.mxu0 0.0
        %1564 = vmatprep.subr.mxu0 0.0
        %1565 = vmatpush1.xpose.msra.mxu0 0.0
        %1566 = vmatprep.subr.mxu0 0.0
        %1567 = vmatpush1.xpose.msra.mxu0 0.0
        %1568 = vmatprep.subr.mxu0 0.0
        %1569 = vmatpush1.xpose.msra.mxu0 0.0
        %1570 = vmatprep.subr.mxu0 0.0
        %1571 = vmatpush1.xpose.msra.mxu0 0.0
        %1572 = vmatprep.subr.mxu0 0.0
        %1573 = vmatpush1.xpose.msra.mxu0 0.0
        %1574 = vmatprep.subr.mxu0 0.0
        %1575 = vmatpush1.xpose.msra.mxu0 0.0
        %1576 = vmatprep.subr.mxu0 0.0
        %1577 = vmatpush1.xpose.msra.mxu0 0.0
        %1578 = vmatprep.subr.mxu0 0.0
        %1579 = vmatpush1.xpose.msra.mxu0 %v1546
        %1580 = vmatprep.subr.mxu0 0.0
        %1581 = vmatpush2.xpose.msra.mxu0 0.0
        %1582 = vmatprep.subr.mxu0 0.0
        %1583 = vmatpush2.xpose.msra.mxu0 0.0
        %1584 = vmatprep.subr.mxu0 0.0
        %1585 = vmatpush2.xpose.msra.mxu0 0.0
        %1586 = vmatprep.subr.mxu0 0.0
        %1587 = vmatpush2.xpose.msra.mxu0 0.0
        %1588 = vmatprep.subr.mxu0 0.0
        %1589 = vmatpush2.xpose.msra.mxu0 0.0
        %1590 = vmatprep.subr.mxu0 0.0
        %1591 = vmatpush2.xpose.msra.mxu0 0.0
        %1592 = vmatprep.subr.mxu0 0.0
        %1593 = vmatpush2.xpose.msra.mxu0 0.0
        %1594 = vmatprep.subr.mxu0 0.0
        %1595 = vmatpush2.xpose.msra.mxu0 0.0
        %1596 = vmatprep.subr.mxu0 0.0
        %1597 = vmatpush2.xpose.msra.mxu0 0.0
        %1598 = vmatprep.subr.mxu0 0.0
        %1599 = vmatpush2.xpose.msra.mxu0 0.0
        %1600 = vmatprep.subr.mxu0 0.0
        %1601 = vmatpush2.xpose.msra.mxu0 0.0
        %1602 = vmatprep.subr.mxu0 0.0
        %1603 = vmatpush2.xpose.msra.mxu0 0.0
        %1604 = vmatprep.subr.mxu0 0.0
        %1605 = vmatpush2.xpose.msra.mxu0 0.0
        %1606 = vmatprep.subr.mxu0 0.0
        %1607 = vmatpush2.xpose.msra.mxu0 0.0
        %1608 = vmatprep.subr.mxu0 0.0
        %1609 = vmatpush2.xpose.msra.mxu0 0.0
        %1610 = vmatprep.subr.mxu0 0.0
        %1611 = vmatpush2.xpose.msra.mxu0 0.0
        %1612 = vmatprep.mubr.f32.mxu0 0.0
        %1613 = vmatmul.mubr.f32.gmra.mxu0 %v1544
        %v1614 = vpop.f32.mrf.mxu0
        %v1615 = vadd.f32 0.0, %v1614
        %v1616 = vpop.f32.mrf.mxu0
        %1617 = vdwg.mxu0
        %v1618 = vmul.f32 %v1076, 0.5
        %v1619 = vmul.f32 %v1153, 0.5
        %v1620 = vmul.f32 %v1230, 0.5
        %v1621 = vmul.f32 %v1307, 0.5
        %v1622 = vmul.f32 %v1384, 0.5
        %v1623 = vmul.f32 %v1461, 0.5
        %v1624 = vmul.f32 %v1538, 0.5
        %v1625 = vmul.f32 %v1615, 0.5
        %vm1626 = vcmask 64512
        %v1627 = vsel %vm1626, %v1618, -inf
        %1628 = vmax.xlane.f32.xlu0 %v1627
        %v1629 = vpop.xlane.xlu0 %1628
        %v1630 = vsel %vm1626, %v1619, -inf
        %1631 = vmax.xlane.f32.xlu0 %v1630
        %v1632 = vpop.xlane.xlu0 %1631
        %v1633 = vsel %vm1626, %v1620, -inf
        %1634 = vmax.xlane.f32.xlu0 %v1633
        %v1635 = vpop.xlane.xlu0 %1634
        %v1636 = vsel %vm1626, %v1621, -inf
        %1637 = vmax.xlane.f32.xlu0 %v1636
        %v1638 = vpop.xlane.xlu0 %1637
        %v1639 = vsel %vm1626, %v1622, -inf
        %1640 = vmax.xlane.f32.xlu0 %v1639
        %v1641 = vpop.xlane.xlu0 %1640
        %v1642 = vsel %vm1626, %v1623, -inf
        %1643 = vmax.xlane.f32.xlu0 %v1642
        %v1644 = vpop.xlane.xlu0 %1643
        %v1645 = vsel %vm1626, %v1624, -inf
        %1646 = vmax.xlane.f32.xlu0 %v1645
        %v1647 = vpop.xlane.xlu0 %1646
        %v1648 = vsel %vm1626, %v1625, -inf
        %1649 = vmax.xlane.f32.xlu0 %v1648
        %v1650 = vpop.xlane.xlu0 %1649
        %v1651 = vsub.f32 %v1618, %v1629
        %v1652 = vsub.f32 %v1619, %v1632
        %v1653 = vsub.f32 %v1620, %v1635
        %v1654 = vsub.f32 %v1621, %v1638
        %v1655 = vsub.f32 %v1622, %v1641
        %v1656 = vsub.f32 %v1623, %v1644
        %v1657 = vsub.f32 %v1624, %v1647
        %v1658 = vsub.f32 %v1625, %v1650
        %v1659 = vmul.f32 %v1651, 1.442695
        %v1660 = vpow.pop %v1659
        %v1661 = vmul.f32 %v1652, 1.442695
        %v1662 = vpow.pop %v1661
        %v1663 = vmul.f32 %v1653, 1.442695
        %v1664 = vpow.pop %v1663
        %v1665 = vmul.f32 %v1654, 1.442695
        %v1666 = vpow.pop %v1665
        %v1667 = vmul.f32 %v1655, 1.442695
        %v1668 = vpow.pop %v1667
        %v1669 = vmul.f32 %v1656, 1.442695
        %v1670 = vpow.pop %v1669
        %v1671 = vmul.f32 %v1657, 1.442695
        %v1672 = vpow.pop %v1671
        %v1673 = vmul.f32 %v1658, 1.442695
        %v1674 = vpow.pop %v1673
        %v1675 = vsel %vm1626, %v1660, 0.0
        %1676 = vadd.xlane.f32.xlu0 %v1675
        %v1677 = vpop.xlane.xlu0 %1676
        %v1678 = vsel %vm1626, %v1662, 0.0
        %1679 = vadd.xlane.f32.xlu0 %v1678
        %v1680 = vpop.xlane.xlu0 %1679
        %v1681 = vsel %vm1626, %v1664, 0.0
        %1682 = vadd.xlane.f32.xlu0 %v1681
        %v1683 = vpop.xlane.xlu0 %1682
        %v1684 = vsel %vm1626, %v1666, 0.0
        %1685 = vadd.xlane.f32.xlu0 %v1684
        %v1686 = vpop.xlane.xlu0 %1685
        %v1687 = vsel %vm1626, %v1668, 0.0
        %1688 = vadd.xlane.f32.xlu0 %v1687
        %v1689 = vpop.xlane.xlu0 %1688
        %v1690 = vsel %vm1626, %v1670, 0.0
        %1691 = vadd.xlane.f32.xlu0 %v1690
        %v1692 = vpop.xlane.xlu0 %1691
        %v1693 = vsel %vm1626, %v1672, 0.0
        %1694 = vadd.xlane.f32.xlu0 %v1693
        %v1695 = vpop.xlane.xlu0 %1694
        %v1696 = vsel %vm1626, %v1674, 0.0
        %1697 = vadd.xlane.f32.xlu0 %v1696
        %v1698 = vpop.xlane.xlu0 %1697
        %v1699 = vrcp.pop %v1677
        %v1700 = vrcp.pop %v1680
        %v1701 = vrcp.pop %v1683
        %v1702 = vrcp.pop %v1686
        %v1703 = vrcp.pop %v1689
        %v1704 = vrcp.pop %v1692
        %v1705 = vrcp.pop %v1695
        %v1706 = vrcp.pop %v1698
        %v1707 = vmul.f32 %v1660, %v1699
        %v1708 = vmul.f32 %v1662, %v1700
        %v1709 = vmul.f32 %v1664, %v1701
        %v1710 = vmul.f32 %v1666, %v1702
        %v1711 = vmul.f32 %v1668, %v1703
        %v1712 = vmul.f32 %v1670, %v1704
        %v1713 = vmul.f32 %v1672, %v1705
        %v1714 = vmul.f32 %v1674, %v1706
        %1715 = vrot.lane.b32.xlu0 %v508, 120
        %v1716 = vpop.permute.xlu0 %1715
        %v1719 = vsel %vm1626, %v1707, 0
        %1721 = vmatprep.subr.mxu0 0.0
        %1722 = vmatpush1.msra.mxu0 0.0
        %1723 = vmatprep.subr.mxu0 0.0
        %1724 = vmatpush1.msra.mxu0 0.0
        %1725 = vmatprep.subr.mxu0 0.0
        %1726 = vmatpush1.msra.mxu0 0.0
        %1727 = vmatprep.subr.mxu0 0.0
        %1728 = vmatpush1.msra.mxu0 0.0
        %1729 = vmatprep.subr.mxu0 0.0
        %1730 = vmatpush1.msra.mxu0 0.0
        %1731 = vmatprep.subr.mxu0 0.0
        %1732 = vmatpush1.msra.mxu0 0.0
        %1733 = vmatprep.subr.mxu0 0.0
        %1734 = vmatpush1.msra.mxu0 0.0
        %1735 = vmatprep.subr.mxu0 0.0
        %1736 = vmatpush1.msra.mxu0 0.0
        %1737 = vmatprep.subr.mxu0 0.0
        %1738 = vmatpush1.msra.mxu0 0.0
        %1739 = vmatprep.subr.mxu0 0.0
        %1740 = vmatpush1.msra.mxu0 0.0
        %1741 = vmatprep.subr.mxu0 0.0
        %1742 = vmatpush1.msra.mxu0 0.0
        %1743 = vmatprep.subr.mxu0 0.0
        %1744 = vmatpush1.msra.mxu0 0.0
        %1745 = vmatprep.subr.mxu0 0.0
        %1746 = vmatpush1.msra.mxu0 0.0
        %1747 = vmatprep.subr.mxu0 0.0
        %1748 = vmatpush1.msra.mxu0 0.0
        %1749 = vmatprep.subr.mxu0 0.0
        %1750 = vmatpush1.msra.mxu0 0.0
        %1751 = vmatprep.subr.mxu0 0.0
        %1752 = vmatpush1.msra.mxu0 %v1716
        %1753 = vmatprep.subr.mxu0 0.0
        %1754 = vmatpush2.msra.mxu0 0.0
        %1755 = vmatprep.subr.mxu0 0.0
        %1756 = vmatpush2.msra.mxu0 0.0
        %1757 = vmatprep.subr.mxu0 0.0
        %1758 = vmatpush2.msra.mxu0 0.0
        %1759 = vmatprep.subr.mxu0 0.0
        %1760 = vmatpush2.msra.mxu0 0.0
        %1761 = vmatprep.subr.mxu0 0.0
        %1762 = vmatpush2.msra.mxu0 0.0
        %1763 = vmatprep.subr.mxu0 0.0
        %1764 = vmatpush2.msra.mxu0 0.0
        %1765 = vmatprep.subr.mxu0 0.0
        %1766 = vmatpush2.msra.mxu0 0.0
        %1767 = vmatprep.subr.mxu0 0.0
        %1768 = vmatpush2.msra.mxu0 0.0
        %1769 = vmatprep.subr.mxu0 0.0
        %1770 = vmatpush2.msra.mxu0 0.0
        %1771 = vmatprep.subr.mxu0 0.0
        %1772 = vmatpush2.msra.mxu0 0.0
        %1773 = vmatprep.subr.mxu0 0.0
        %1774 = vmatpush2.msra.mxu0 0.0
        %1775 = vmatprep.subr.mxu0 0.0
        %1776 = vmatpush2.msra.mxu0 0.0
        %1777 = vmatprep.subr.mxu0 0.0
        %1778 = vmatpush2.msra.mxu0 0.0
        %1779 = vmatprep.subr.mxu0 0.0
        %1780 = vmatpush2.msra.mxu0 0.0
        %1781 = vmatprep.subr.mxu0 0.0
        %1782 = vmatpush2.msra.mxu0 0.0
        %1783 = vmatprep.subr.mxu0 0.0
        %1784 = vmatpush2.msra.mxu0 0.0
        %1785 = vmatprep.mubr.f32.mxu0 0.0
        %1786 = vmatmul.mubr.f32.gmra.mxu0 %v1719
        %v1787 = vpop.f32.mrf.mxu0
        %v1788 = vadd.f32 0.0, %v1787
        %v1789 = vpop.f32.mrf.mxu0
        %1790 = vdwg.mxu0
        %1791 = vrot.lane.b32.xlu0 %v578, 120
        %v1792 = vpop.permute.xlu0 %1791
        %v1795 = vsel %vm1626, %v1708, 0
        %1797 = vmatprep.subr.mxu0 0.0
        %1798 = vmatpush1.msra.mxu0 0.0
        %1799 = vmatprep.subr.mxu0 0.0
        %1800 = vmatpush1.msra.mxu0 0.0
        %1801 = vmatprep.subr.mxu0 0.0
        %1802 = vmatpush1.msra.mxu0 0.0
        %1803 = vmatprep.subr.mxu0 0.0
        %1804 = vmatpush1.msra.mxu0 0.0
        %1805 = vmatprep.subr.mxu0 0.0
        %1806 = vmatpush1.msra.mxu0 0.0
        %1807 = vmatprep.subr.mxu0 0.0
        %1808 = vmatpush1.msra.mxu0 0.0
        %1809 = vmatprep.subr.mxu0 0.0
        %1810 = vmatpush1.msra.mxu0 0.0
        %1811 = vmatprep.subr.mxu0 0.0
        %1812 = vmatpush1.msra.mxu0 0.0
        %1813 = vmatprep.subr.mxu0 0.0
        %1814 = vmatpush1.msra.mxu0 0.0
        %1815 = vmatprep.subr.mxu0 0.0
        %1816 = vmatpush1.msra.mxu0 0.0
        %1817 = vmatprep.subr.mxu0 0.0
        %1818 = vmatpush1.msra.mxu0 0.0
        %1819 = vmatprep.subr.mxu0 0.0
        %1820 = vmatpush1.msra.mxu0 0.0
        %1821 = vmatprep.subr.mxu0 0.0
        %1822 = vmatpush1.msra.mxu0 0.0
        %1823 = vmatprep.subr.mxu0 0.0
        %1824 = vmatpush1.msra.mxu0 0.0
        %1825 = vmatprep.subr.mxu0 0.0
        %1826 = vmatpush1.msra.mxu0 0.0
        %1827 = vmatprep.subr.mxu0 0.0
        %1828 = vmatpush1.msra.mxu0 %v1792
        %1829 = vmatprep.subr.mxu0 0.0
        %1830 = vmatpush2.msra.mxu0 0.0
        %1831 = vmatprep.subr.mxu0 0.0
        %1832 = vmatpush2.msra.mxu0 0.0
        %1833 = vmatprep.subr.mxu0 0.0
        %1834 = vmatpush2.msra.mxu0 0.0
        %1835 = vmatprep.subr.mxu0 0.0
        %1836 = vmatpush2.msra.mxu0 0.0
        %1837 = vmatprep.subr.mxu0 0.0
        %1838 = vmatpush2.msra.mxu0 0.0
        %1839 = vmatprep.subr.mxu0 0.0
        %1840 = vmatpush2.msra.mxu0 0.0
        %1841 = vmatprep.subr.mxu0 0.0
        %1842 = vmatpush2.msra.mxu0 0.0
        %1843 = vmatprep.subr.mxu0 0.0
        %1844 = vmatpush2.msra.mxu0 0.0
        %1845 = vmatprep.subr.mxu0 0.0
        %1846 = vmatpush2.msra.mxu0 0.0
        %1847 = vmatprep.subr.mxu0 0.0
        %1848 = vmatpush2.msra.mxu0 0.0
        %1849 = vmatprep.subr.mxu0 0.0
        %1850 = vmatpush2.msra.mxu0 0.0
        %1851 = vmatprep.subr.mxu0 0.0
        %1852 = vmatpush2.msra.mxu0 0.0
        %1853 = vmatprep.subr.mxu0 0.0
        %1854 = vmatpush2.msra.mxu0 0.0
        %1855 = vmatprep.subr.mxu0 0.0
        %1856 = vmatpush2.msra.mxu0 0.0
        %1857 = vmatprep.subr.mxu0 0.0
        %1858 = vmatpush2.msra.mxu0 0.0
        %1859 = vmatprep.subr.mxu0 0.0
        %1860 = vmatpush2.msra.mxu0 0.0
        %1861 = vmatprep.mubr.f32.mxu0 0.0
        %1862 = vmatmul.mubr.f32.gmra.mxu0 %v1795
        %v1863 = vpop.f32.mrf.mxu0
        %v1864 = vadd.f32 0.0, %v1863
        %v1865 = vpop.f32.mrf.mxu0
        %1866 = vdwg.mxu0
        %1867 = vrot.lane.b32.xlu0 %v648, 120
        %v1868 = vpop.permute.xlu0 %1867
        %v1871 = vsel %vm1626, %v1709, 0
        %1873 = vmatprep.subr.mxu0 0.0
        %1874 = vmatpush1.msra.mxu0 0.0
        %1875 = vmatprep.subr.mxu0 0.0
        %1876 = vmatpush1.msra.mxu0 0.0
        %1877 = vmatprep.subr.mxu0 0.0
        %1878 = vmatpush1.msra.mxu0 0.0
        %1879 = vmatprep.subr.mxu0 0.0
        %1880 = vmatpush1.msra.mxu0 0.0
        %1881 = vmatprep.subr.mxu0 0.0
        %1882 = vmatpush1.msra.mxu0 0.0
        %1883 = vmatprep.subr.mxu0 0.0
        %1884 = vmatpush1.msra.mxu0 0.0
        %1885 = vmatprep.subr.mxu0 0.0
        %1886 = vmatpush1.msra.mxu0 0.0
        %1887 = vmatprep.subr.mxu0 0.0
        %1888 = vmatpush1.msra.mxu0 0.0
        %1889 = vmatprep.subr.mxu0 0.0
        %1890 = vmatpush1.msra.mxu0 0.0
        %1891 = vmatprep.subr.mxu0 0.0
        %1892 = vmatpush1.msra.mxu0 0.0
        %1893 = vmatprep.subr.mxu0 0.0
        %1894 = vmatpush1.msra.mxu0 0.0
        %1895 = vmatprep.subr.mxu0 0.0
        %1896 = vmatpush1.msra.mxu0 0.0
        %1897 = vmatprep.subr.mxu0 0.0
        %1898 = vmatpush1.msra.mxu0 0.0
        %1899 = vmatprep.subr.mxu0 0.0
        %1900 = vmatpush1.msra.mxu0 0.0
        %1901 = vmatprep.subr.mxu0 0.0
        %1902 = vmatpush1.msra.mxu0 0.0
        %1903 = vmatprep.subr.mxu0 0.0
        %1904 = vmatpush1.msra.mxu0 %v1868
        %1905 = vmatprep.subr.mxu0 0.0
        %1906 = vmatpush2.msra.mxu0 0.0
        %1907 = vmatprep.subr.mxu0 0.0
        %1908 = vmatpush2.msra.mxu0 0.0
        %1909 = vmatprep.subr.mxu0 0.0
        %1910 = vmatpush2.msra.mxu0 0.0
        %1911 = vmatprep.subr.mxu0 0.0
        %1912 = vmatpush2.msra.mxu0 0.0
        %1913 = vmatprep.subr.mxu0 0.0
        %1914 = vmatpush2.msra.mxu0 0.0
        %1915 = vmatprep.subr.mxu0 0.0
        %1916 = vmatpush2.msra.mxu0 0.0
        %1917 = vmatprep.subr.mxu0 0.0
        %1918 = vmatpush2.msra.mxu0 0.0
        %1919 = vmatprep.subr.mxu0 0.0
        %1920 = vmatpush2.msra.mxu0 0.0
        %1921 = vmatprep.subr.mxu0 0.0
        %1922 = vmatpush2.msra.mxu0 0.0
        %1923 = vmatprep.subr.mxu0 0.0
        %1924 = vmatpush2.msra.mxu0 0.0
        %1925 = vmatprep.subr.mxu0 0.0
        %1926 = vmatpush2.msra.mxu0 0.0
        %1927 = vmatprep.subr.mxu0 0.0
        %1928 = vmatpush2.msra.mxu0 0.0
        %1929 = vmatprep.subr.mxu0 0.0
        %1930 = vmatpush2.msra.mxu0 0.0
        %1931 = vmatprep.subr.mxu0 0.0
        %1932 = vmatpush2.msra.mxu0 0.0
        %1933 = vmatprep.subr.mxu0 0.0
        %1934 = vmatpush2.msra.mxu0 0.0
        %1935 = vmatprep.subr.mxu0 0.0
        %1936 = vmatpush2.msra.mxu0 0.0
        %1937 = vmatprep.mubr.f32.mxu0 0.0
        %1938 = vmatmul.mubr.f32.gmra.mxu0 %v1871
        %v1939 = vpop.f32.mrf.mxu0
        %v1940 = vadd.f32 0.0, %v1939
        %v1941 = vpop.f32.mrf.mxu0
        %1942 = vdwg.mxu0
        %1943 = vrot.lane.b32.xlu0 %v718, 120
        %v1944 = vpop.permute.xlu0 %1943
        %v1947 = vsel %vm1626, %v1710, 0
        %1949 = vmatprep.subr.mxu0 0.0
        %1950 = vmatpush1.msra.mxu0 0.0
        %1951 = vmatprep.subr.mxu0 0.0
        %1952 = vmatpush1.msra.mxu0 0.0
        %1953 = vmatprep.subr.mxu0 0.0
        %1954 = vmatpush1.msra.mxu0 0.0
        %1955 = vmatprep.subr.mxu0 0.0
        %1956 = vmatpush1.msra.mxu0 0.0
        %1957 = vmatprep.subr.mxu0 0.0
        %1958 = vmatpush1.msra.mxu0 0.0
        %1959 = vmatprep.subr.mxu0 0.0
        %1960 = vmatpush1.msra.mxu0 0.0
        %1961 = vmatprep.subr.mxu0 0.0
        %1962 = vmatpush1.msra.mxu0 0.0
        %1963 = vmatprep.subr.mxu0 0.0
        %1964 = vmatpush1.msra.mxu0 0.0
        %1965 = vmatprep.subr.mxu0 0.0
        %1966 = vmatpush1.msra.mxu0 0.0
        %1967 = vmatprep.subr.mxu0 0.0
        %1968 = vmatpush1.msra.mxu0 0.0
        %1969 = vmatprep.subr.mxu0 0.0
        %1970 = vmatpush1.msra.mxu0 0.0
        %1971 = vmatprep.subr.mxu0 0.0
        %1972 = vmatpush1.msra.mxu0 0.0
        %1973 = vmatprep.subr.mxu0 0.0
        %1974 = vmatpush1.msra.mxu0 0.0
        %1975 = vmatprep.subr.mxu0 0.0
        %1976 = vmatpush1.msra.mxu0 0.0
        %1977 = vmatprep.subr.mxu0 0.0
        %1978 = vmatpush1.msra.mxu0 0.0
        %1979 = vmatprep.subr.mxu0 0.0
        %1980 = vmatpush1.msra.mxu0 %v1944
        %1981 = vmatprep.subr.mxu0 0.0
        %1982 = vmatpush2.msra.mxu0 0.0
        %1983 = vmatprep.subr.mxu0 0.0
        %1984 = vmatpush2.msra.mxu0 0.0
        %1985 = vmatprep.subr.mxu0 0.0
        %1986 = vmatpush2.msra.mxu0 0.0
        %1987 = vmatprep.subr.mxu0 0.0
        %1988 = vmatpush2.msra.mxu0 0.0
        %1989 = vmatprep.subr.mxu0 0.0
        %1990 = vmatpush2.msra.mxu0 0.0
        %1991 = vmatprep.subr.mxu0 0.0
        %1992 = vmatpush2.msra.mxu0 0.0
        %1993 = vmatprep.subr.mxu0 0.0
        %1994 = vmatpush2.msra.mxu0 0.0
        %1995 = vmatprep.subr.mxu0 0.0
        %1996 = vmatpush2.msra.mxu0 0.0
        %1997 = vmatprep.subr.mxu0 0.0
        %1998 = vmatpush2.msra.mxu0 0.0
        %1999 = vmatprep.subr.mxu0 0.0
        %2000 = vmatpush2.msra.mxu0 0.0
        %2001 = vmatprep.subr.mxu0 0.0
        %2002 = vmatpush2.msra.mxu0 0.0
        %2003 = vmatprep.subr.mxu0 0.0
        %2004 = vmatpush2.msra.mxu0 0.0
        %2005 = vmatprep.subr.mxu0 0.0
        %2006 = vmatpush2.msra.mxu0 0.0
        %2007 = vmatprep.subr.mxu0 0.0
        %2008 = vmatpush2.msra.mxu0 0.0
        %2009 = vmatprep.subr.mxu0 0.0
        %2010 = vmatpush2.msra.mxu0 0.0
        %2011 = vmatprep.subr.mxu0 0.0
        %2012 = vmatpush2.msra.mxu0 0.0
        %2013 = vmatprep.mubr.f32.mxu0 0.0
        %2014 = vmatmul.mubr.f32.gmra.mxu0 %v1947
        %v2015 = vpop.f32.mrf.mxu0
        %v2016 = vadd.f32 0.0, %v2015
        %v2017 = vpop.f32.mrf.mxu0
        %2018 = vdwg.mxu0
        %2019 = vrot.lane.b32.xlu0 %v788, 120
        %v2020 = vpop.permute.xlu0 %2019
        %v2023 = vsel %vm1626, %v1711, 0
        %2025 = vmatprep.subr.mxu0 0.0
        %2026 = vmatpush1.msra.mxu0 0.0
        %2027 = vmatprep.subr.mxu0 0.0
        %2028 = vmatpush1.msra.mxu0 0.0
        %2029 = vmatprep.subr.mxu0 0.0
        %2030 = vmatpush1.msra.mxu0 0.0
        %2031 = vmatprep.subr.mxu0 0.0
        %2032 = vmatpush1.msra.mxu0 0.0
        %2033 = vmatprep.subr.mxu0 0.0
        %2034 = vmatpush1.msra.mxu0 0.0
        %2035 = vmatprep.subr.mxu0 0.0
        %2036 = vmatpush1.msra.mxu0 0.0
        %2037 = vmatprep.subr.mxu0 0.0
        %2038 = vmatpush1.msra.mxu0 0.0
        %2039 = vmatprep.subr.mxu0 0.0
        %2040 = vmatpush1.msra.mxu0 0.0
        %2041 = vmatprep.subr.mxu0 0.0
        %2042 = vmatpush1.msra.mxu0 0.0
        %2043 = vmatprep.subr.mxu0 0.0
        %2044 = vmatpush1.msra.mxu0 0.0
        %2045 = vmatprep.subr.mxu0 0.0
        %2046 = vmatpush1.msra.mxu0 0.0
        %2047 = vmatprep.subr.mxu0 0.0
        %2048 = vmatpush1.msra.mxu0 0.0
        %2049 = vmatprep.subr.mxu0 0.0
        %2050 = vmatpush1.msra.mxu0 0.0
        %2051 = vmatprep.subr.mxu0 0.0
        %2052 = vmatpush1.msra.mxu0 0.0
        %2053 = vmatprep.subr.mxu0 0.0
        %2054 = vmatpush1.msra.mxu0 0.0
        %2055 = vmatprep.subr.mxu0 0.0
        %2056 = vmatpush1.msra.mxu0 %v2020
        %2057 = vmatprep.subr.mxu0 0.0
        %2058 = vmatpush2.msra.mxu0 0.0
        %2059 = vmatprep.subr.mxu0 0.0
        %2060 = vmatpush2.msra.mxu0 0.0
        %2061 = vmatprep.subr.mxu0 0.0
        %2062 = vmatpush2.msra.mxu0 0.0
        %2063 = vmatprep.subr.mxu0 0.0
        %2064 = vmatpush2.msra.mxu0 0.0
        %2065 = vmatprep.subr.mxu0 0.0
        %2066 = vmatpush2.msra.mxu0 0.0
        %2067 = vmatprep.subr.mxu0 0.0
        %2068 = vmatpush2.msra.mxu0 0.0
        %2069 = vmatprep.subr.mxu0 0.0
        %2070 = vmatpush2.msra.mxu0 0.0
        %2071 = vmatprep.subr.mxu0 0.0
        %2072 = vmatpush2.msra.mxu0 0.0
        %2073 = vmatprep.subr.mxu0 0.0
        %2074 = vmatpush2.msra.mxu0 0.0
        %2075 = vmatprep.subr.mxu0 0.0
        %2076 = vmatpush2.msra.mxu0 0.0
        %2077 = vmatprep.subr.mxu0 0.0
        %2078 = vmatpush2.msra.mxu0 0.0
        %2079 = vmatprep.subr.mxu0 0.0
        %2080 = vmatpush2.msra.mxu0 0.0
        %2081 = vmatprep.subr.mxu0 0.0
        %2082 = vmatpush2.msra.mxu0 0.0
        %2083 = vmatprep.subr.mxu0 0.0
        %2084 = vmatpush2.msra.mxu0 0.0
        %2085 = vmatprep.subr.mxu0 0.0
        %2086 = vmatpush2.msra.mxu0 0.0
        %2087 = vmatprep.subr.mxu0 0.0
        %2088 = vmatpush2.msra.mxu0 0.0
        %2089 = vmatprep.mubr.f32.mxu0 0.0
        %2090 = vmatmul.mubr.f32.gmra.mxu0 %v2023
        %v2091 = vpop.f32.mrf.mxu0
        %v2092 = vadd.f32 0.0, %v2091
        %v2093 = vpop.f32.mrf.mxu0
        %2094 = vdwg.mxu0
        %2095 = vrot.lane.b32.xlu0 %v858, 120
        %v2096 = vpop.permute.xlu0 %2095
        %v2099 = vsel %vm1626, %v1712, 0
        %2101 = vmatprep.subr.mxu0 0.0
        %2102 = vmatpush1.msra.mxu0 0.0
        %2103 = vmatprep.subr.mxu0 0.0
        %2104 = vmatpush1.msra.mxu0 0.0
        %2105 = vmatprep.subr.mxu0 0.0
        %2106 = vmatpush1.msra.mxu0 0.0
        %2107 = vmatprep.subr.mxu0 0.0
        %2108 = vmatpush1.msra.mxu0 0.0
        %2109 = vmatprep.subr.mxu0 0.0
        %2110 = vmatpush1.msra.mxu0 0.0
        %2111 = vmatprep.subr.mxu0 0.0
        %2112 = vmatpush1.msra.mxu0 0.0
        %2113 = vmatprep.subr.mxu0 0.0
        %2114 = vmatpush1.msra.mxu0 0.0
        %2115 = vmatprep.subr.mxu0 0.0
        %2116 = vmatpush1.msra.mxu0 0.0
        %2117 = vmatprep.subr.mxu0 0.0
        %2118 = vmatpush1.msra.mxu0 0.0
        %2119 = vmatprep.subr.mxu0 0.0
        %2120 = vmatpush1.msra.mxu0 0.0
        %2121 = vmatprep.subr.mxu0 0.0
        %2122 = vmatpush1.msra.mxu0 0.0
        %2123 = vmatprep.subr.mxu0 0.0
        %2124 = vmatpush1.msra.mxu0 0.0
        %2125 = vmatprep.subr.mxu0 0.0
        %2126 = vmatpush1.msra.mxu0 0.0
        %2127 = vmatprep.subr.mxu0 0.0
        %2128 = vmatpush1.msra.mxu0 0.0
        %2129 = vmatprep.subr.mxu0 0.0
        %2130 = vmatpush1.msra.mxu0 0.0
        %2131 = vmatprep.subr.mxu0 0.0
        %2132 = vmatpush1.msra.mxu0 %v2096
        %2133 = vmatprep.subr.mxu0 0.0
        %2134 = vmatpush2.msra.mxu0 0.0
        %2135 = vmatprep.subr.mxu0 0.0
        %2136 = vmatpush2.msra.mxu0 0.0
        %2137 = vmatprep.subr.mxu0 0.0
        %2138 = vmatpush2.msra.mxu0 0.0
        %2139 = vmatprep.subr.mxu0 0.0
        %2140 = vmatpush2.msra.mxu0 0.0
        %2141 = vmatprep.subr.mxu0 0.0
        %2142 = vmatpush2.msra.mxu0 0.0
        %2143 = vmatprep.subr.mxu0 0.0
        %2144 = vmatpush2.msra.mxu0 0.0
        %2145 = vmatprep.subr.mxu0 0.0
        %2146 = vmatpush2.msra.mxu0 0.0
        %2147 = vmatprep.subr.mxu0 0.0
        %2148 = vmatpush2.msra.mxu0 0.0
        %2149 = vmatprep.subr.mxu0 0.0
        %2150 = vmatpush2.msra.mxu0 0.0
        %2151 = vmatprep.subr.mxu0 0.0
        %2152 = vmatpush2.msra.mxu0 0.0
        %2153 = vmatprep.subr.mxu0 0.0
        %2154 = vmatpush2.msra.mxu0 0.0
        %2155 = vmatprep.subr.mxu0 0.0
        %2156 = vmatpush2.msra.mxu0 0.0
        %2157 = vmatprep.subr.mxu0 0.0
        %2158 = vmatpush2.msra.mxu0 0.0
        %2159 = vmatprep.subr.mxu0 0.0
        %2160 = vmatpush2.msra.mxu0 0.0
        %2161 = vmatprep.subr.mxu0 0.0
        %2162 = vmatpush2.msra.mxu0 0.0
        %2163 = vmatprep.subr.mxu0 0.0
        %2164 = vmatpush2.msra.mxu0 0.0
        %2165 = vmatprep.mubr.f32.mxu0 0.0
        %2166 = vmatmul.mubr.f32.gmra.mxu0 %v2099
        %v2167 = vpop.f32.mrf.mxu0
        %v2168 = vadd.f32 0.0, %v2167
        %v2169 = vpop.f32.mrf.mxu0
        %2170 = vdwg.mxu0
        %2171 = vrot.lane.b32.xlu0 %v928, 120
        %v2172 = vpop.permute.xlu0 %2171
        %v2175 = vsel %vm1626, %v1713, 0
        %2177 = vmatprep.subr.mxu0 0.0
        %2178 = vmatpush1.msra.mxu0 0.0
        %2179 = vmatprep.subr.mxu0 0.0
        %2180 = vmatpush1.msra.mxu0 0.0
        %2181 = vmatprep.subr.mxu0 0.0
        %2182 = vmatpush1.msra.mxu0 0.0
        %2183 = vmatprep.subr.mxu0 0.0
        %2184 = vmatpush1.msra.mxu0 0.0
        %2185 = vmatprep.subr.mxu0 0.0
        %2186 = vmatpush1.msra.mxu0 0.0
        %2187 = vmatprep.subr.mxu0 0.0
        %2188 = vmatpush1.msra.mxu0 0.0
        %2189 = vmatprep.subr.mxu0 0.0
        %2190 = vmatpush1.msra.mxu0 0.0
        %2191 = vmatprep.subr.mxu0 0.0
        %2192 = vmatpush1.msra.mxu0 0.0
        %2193 = vmatprep.subr.mxu0 0.0
        %2194 = vmatpush1.msra.mxu0 0.0
        %2195 = vmatprep.subr.mxu0 0.0
        %2196 = vmatpush1.msra.mxu0 0.0
        %2197 = vmatprep.subr.mxu0 0.0
        %2198 = vmatpush1.msra.mxu0 0.0
        %2199 = vmatprep.subr.mxu0 0.0
        %2200 = vmatpush1.msra.mxu0 0.0
        %2201 = vmatprep.subr.mxu0 0.0
        %2202 = vmatpush1.msra.mxu0 0.0
        %2203 = vmatprep.subr.mxu0 0.0
        %2204 = vmatpush1.msra.mxu0 0.0
        %2205 = vmatprep.subr.mxu0 0.0
        %2206 = vmatpush1.msra.mxu0 0.0
        %2207 = vmatprep.subr.mxu0 0.0
        %2208 = vmatpush1.msra.mxu0 %v2172
        %2209 = vmatprep.subr.mxu0 0.0
        %2210 = vmatpush2.msra.mxu0 0.0
        %2211 = vmatprep.subr.mxu0 0.0
        %2212 = vmatpush2.msra.mxu0 0.0
        %2213 = vmatprep.subr.mxu0 0.0
        %2214 = vmatpush2.msra.mxu0 0.0
        %2215 = vmatprep.subr.mxu0 0.0
        %2216 = vmatpush2.msra.mxu0 0.0
        %2217 = vmatprep.subr.mxu0 0.0
        %2218 = vmatpush2.msra.mxu0 0.0
        %2219 = vmatprep.subr.mxu0 0.0
        %2220 = vmatpush2.msra.mxu0 0.0
        %2221 = vmatprep.subr.mxu0 0.0
        %2222 = vmatpush2.msra.mxu0 0.0
        %2223 = vmatprep.subr.mxu0 0.0
        %2224 = vmatpush2.msra.mxu0 0.0
        %2225 = vmatprep.subr.mxu0 0.0
        %2226 = vmatpush2.msra.mxu0 0.0
        %2227 = vmatprep.subr.mxu0 0.0
        %2228 = vmatpush2.msra.mxu0 0.0
        %2229 = vmatprep.subr.mxu0 0.0
        %2230 = vmatpush2.msra.mxu0 0.0
        %2231 = vmatprep.subr.mxu0 0.0
        %2232 = vmatpush2.msra.mxu0 0.0
        %2233 = vmatprep.subr.mxu0 0.0
        %2234 = vmatpush2.msra.mxu0 0.0
        %2235 = vmatprep.subr.mxu0 0.0
        %2236 = vmatpush2.msra.mxu0 0.0
        %2237 = vmatprep.subr.mxu0 0.0
        %2238 = vmatpush2.msra.mxu0 0.0
        %2239 = vmatprep.subr.mxu0 0.0
        %2240 = vmatpush2.msra.mxu0 0.0
        %2241 = vmatprep.mubr.f32.mxu0 0.0
        %2242 = vmatmul.mubr.f32.gmra.mxu0 %v2175
        %v2243 = vpop.f32.mrf.mxu0
        %v2244 = vadd.f32 0.0, %v2243
        %v2245 = vpop.f32.mrf.mxu0
        %2246 = vdwg.mxu0
        %2247 = vrot.lane.b32.xlu0 %v998, 120
        %v2248 = vpop.permute.xlu0 %2247
        %v2251 = vsel %vm1626, %v1714, 0
        %2253 = vmatprep.subr.mxu0 0.0
        %2254 = vmatpush1.msra.mxu0 0.0
        %2255 = vmatprep.subr.mxu0 0.0
        %2256 = vmatpush1.msra.mxu0 0.0
        %2257 = vmatprep.subr.mxu0 0.0
        %2258 = vmatpush1.msra.mxu0 0.0
        %2259 = vmatprep.subr.mxu0 0.0
        %2260 = vmatpush1.msra.mxu0 0.0
        %2261 = vmatprep.subr.mxu0 0.0
        %2262 = vmatpush1.msra.mxu0 0.0
        %2263 = vmatprep.subr.mxu0 0.0
        %2264 = vmatpush1.msra.mxu0 0.0
        %2265 = vmatprep.subr.mxu0 0.0
        %2266 = vmatpush1.msra.mxu0 0.0
        %2267 = vmatprep.subr.mxu0 0.0
        %2268 = vmatpush1.msra.mxu0 0.0
        %2269 = vmatprep.subr.mxu0 0.0
        %2270 = vmatpush1.msra.mxu0 0.0
        %2271 = vmatprep.subr.mxu0 0.0
        %2272 = vmatpush1.msra.mxu0 0.0
        %2273 = vmatprep.subr.mxu0 0.0
        %2274 = vmatpush1.msra.mxu0 0.0
        %2275 = vmatprep.subr.mxu0 0.0
        %2276 = vmatpush1.msra.mxu0 0.0
        %2277 = vmatprep.subr.mxu0 0.0
        %2278 = vmatpush1.msra.mxu0 0.0
        %2279 = vmatprep.subr.mxu0 0.0
        %2280 = vmatpush1.msra.mxu0 0.0
        %2281 = vmatprep.subr.mxu0 0.0
        %2282 = vmatpush1.msra.mxu0 0.0
        %2283 = vmatprep.subr.mxu0 0.0
        %2284 = vmatpush1.msra.mxu0 %v2248
        %2285 = vmatprep.subr.mxu0 0.0
        %2286 = vmatpush2.msra.mxu0 0.0
        %2287 = vmatprep.subr.mxu0 0.0
        %2288 = vmatpush2.msra.mxu0 0.0
        %2289 = vmatprep.subr.mxu0 0.0
        %2290 = vmatpush2.msra.mxu0 0.0
        %2291 = vmatprep.subr.mxu0 0.0
        %2292 = vmatpush2.msra.mxu0 0.0
        %2293 = vmatprep.subr.mxu0 0.0
        %2294 = vmatpush2.msra.mxu0 0.0
        %2295 = vmatprep.subr.mxu0 0.0
        %2296 = vmatpush2.msra.mxu0 0.0
        %2297 = vmatprep.subr.mxu0 0.0
        %2298 = vmatpush2.msra.mxu0 0.0
        %2299 = vmatprep.subr.mxu0 0.0
        %2300 = vmatpush2.msra.mxu0 0.0
        %2301 = vmatprep.subr.mxu0 0.0
        %2302 = vmatpush2.msra.mxu0 0.0
        %2303 = vmatprep.subr.mxu0 0.0
        %2304 = vmatpush2.msra.mxu0 0.0
        %2305 = vmatprep.subr.mxu0 0.0
        %2306 = vmatpush2.msra.mxu0 0.0
        %2307 = vmatprep.subr.mxu0 0.0
        %2308 = vmatpush2.msra.mxu0 0.0
        %2309 = vmatprep.subr.mxu0 0.0
        %2310 = vmatpush2.msra.mxu0 0.0
        %2311 = vmatprep.subr.mxu0 0.0
        %2312 = vmatpush2.msra.mxu0 0.0
        %2313 = vmatprep.subr.mxu0 0.0
        %2314 = vmatpush2.msra.mxu0 0.0
        %2315 = vmatprep.subr.mxu0 0.0
        %2316 = vmatpush2.msra.mxu0 0.0
        %2317 = vmatprep.mubr.f32.mxu0 0.0
        %2318 = vmatmul.mubr.f32.gmra.mxu0 %v2251
        %v2319 = vpop.f32.mrf.mxu0
        %v2320 = vadd.f32 0.0, %v2319
        %v2321 = vpop.f32.mrf.mxu0
        %2322 = vdwg.mxu0
        %v2324 = vsel %vm1004, %v1788, 0
        %vm2326 = vcmask 1043456
        %v2328 = vsel %vm2326, %v334, 0
        %2330 = vmatprep.subr.mxu0 0.0
        %2331 = vmatpush1.msra.mxu0 0.0
        %2332 = vmatprep.subr.mxu0 0.0
        %2333 = vmatpush1.msra.mxu0 0.0
        %2334 = vmatprep.subr.mxu0 0.0
        %2335 = vmatpush1.msra.mxu0 0.0
        %2336 = vmatprep.subr.mxu0 0.0
        %2337 = vmatpush1.msra.mxu0 0.0
        %2338 = vmatprep.subr.mxu0 0.0
        %2339 = vmatpush1.msra.mxu0 0.0
        %2340 = vmatprep.subr.mxu0 0.0
        %2341 = vmatpush1.msra.mxu0 0.0
        %2342 = vmatprep.subr.mxu0 0.0
        %2343 = vmatpush1.msra.mxu0 0.0
        %2344 = vmatprep.subr.mxu0 0.0
        %2345 = vmatpush1.msra.mxu0 0.0
        %2346 = vmatprep.subr.mxu0 0.0
        %2347 = vmatpush1.msra.mxu0 0.0
        %2348 = vmatprep.subr.mxu0 0.0
        %2349 = vmatpush1.msra.mxu0 0.0
        %2350 = vmatprep.subr.mxu0 0.0
        %2351 = vmatpush1.msra.mxu0 0.0
        %2352 = vmatprep.subr.mxu0 0.0
        %2353 = vmatpush1.msra.mxu0 0.0
        %2354 = vmatprep.subr.mxu0 0.0
        %2355 = vmatpush1.msra.mxu0 0.0
        %2356 = vmatprep.subr.mxu0 0.0
        %2357 = vmatpush1.msra.mxu0 0.0
        %2358 = vmatprep.subr.mxu0 0.0
        %2359 = vmatpush1.msra.mxu0 0.0
        %2360 = vmatprep.subr.mxu0 0.0
        %2361 = vmatpush1.msra.mxu0 %v2328
        %2362 = vmatprep.subr.mxu0 0.0
        %2363 = vmatpush2.msra.mxu0 0.0
        %2364 = vmatprep.subr.mxu0 0.0
        %2365 = vmatpush2.msra.mxu0 0.0
        %2366 = vmatprep.subr.mxu0 0.0
        %2367 = vmatpush2.msra.mxu0 0.0
        %2368 = vmatprep.subr.mxu0 0.0
        %2369 = vmatpush2.msra.mxu0 0.0
        %2370 = vmatprep.subr.mxu0 0.0
        %2371 = vmatpush2.msra.mxu0 0.0
        %2372 = vmatprep.subr.mxu0 0.0
        %2373 = vmatpush2.msra.mxu0 0.0
        %2374 = vmatprep.subr.mxu0 0.0
        %2375 = vmatpush2.msra.mxu0 0.0
        %2376 = vmatprep.subr.mxu0 0.0
        %2377 = vmatpush2.msra.mxu0 0.0
        %2378 = vmatprep.subr.mxu0 0.0
        %2379 = vmatpush2.msra.mxu0 0.0
        %2380 = vmatprep.subr.mxu0 0.0
        %2381 = vmatpush2.msra.mxu0 0.0
        %2382 = vmatprep.subr.mxu0 0.0
        %2383 = vmatpush2.msra.mxu0 0.0
        %2384 = vmatprep.subr.mxu0 0.0
        %2385 = vmatpush2.msra.mxu0 0.0
        %2386 = vmatprep.subr.mxu0 0.0
        %2387 = vmatpush2.msra.mxu0 0.0
        %2388 = vmatprep.subr.mxu0 0.0
        %2389 = vmatpush2.msra.mxu0 0.0
        %2390 = vmatprep.subr.mxu0 0.0
        %2391 = vmatpush2.msra.mxu0 0.0
        %2392 = vmatprep.subr.mxu0 0.0
        %2393 = vmatpush2.msra.mxu0 0.0
        %2394 = vmatprep.mubr.f32.mxu0 0.0
        %2395 = vmatmul.mubr.f32.gmra.mxu0 %v2324
        %v2396 = vpop.f32.mrf.mxu0
        %v2397 = vadd.f32 0.0, %v2396
        %v2398 = vpop.f32.mrf.mxu0
        %2399 = vdwg.mxu0
        %v2401 = vsel %vm1004, %v1864, 0
        %v2404 = vsel %vm2326, %v335, 0
        %2406 = vmatprep.subr.mxu0 0.0
        %2407 = vmatpush1.msra.mxu0 0.0
        %2408 = vmatprep.subr.mxu0 0.0
        %2409 = vmatpush1.msra.mxu0 0.0
        %2410 = vmatprep.subr.mxu0 0.0
        %2411 = vmatpush1.msra.mxu0 0.0
        %2412 = vmatprep.subr.mxu0 0.0
        %2413 = vmatpush1.msra.mxu0 0.0
        %2414 = vmatprep.subr.mxu0 0.0
        %2415 = vmatpush1.msra.mxu0 0.0
        %2416 = vmatprep.subr.mxu0 0.0
        %2417 = vmatpush1.msra.mxu0 0.0
        %2418 = vmatprep.subr.mxu0 0.0
        %2419 = vmatpush1.msra.mxu0 0.0
        %2420 = vmatprep.subr.mxu0 0.0
        %2421 = vmatpush1.msra.mxu0 0.0
        %2422 = vmatprep.subr.mxu0 0.0
        %2423 = vmatpush1.msra.mxu0 0.0
        %2424 = vmatprep.subr.mxu0 0.0
        %2425 = vmatpush1.msra.mxu0 0.0
        %2426 = vmatprep.subr.mxu0 0.0
        %2427 = vmatpush1.msra.mxu0 0.0
        %2428 = vmatprep.subr.mxu0 0.0
        %2429 = vmatpush1.msra.mxu0 0.0
        %2430 = vmatprep.subr.mxu0 0.0
        %2431 = vmatpush1.msra.mxu0 0.0
        %2432 = vmatprep.subr.mxu0 0.0
        %2433 = vmatpush1.msra.mxu0 0.0
        %2434 = vmatprep.subr.mxu0 0.0
        %2435 = vmatpush1.msra.mxu0 0.0
        %2436 = vmatprep.subr.mxu0 0.0
        %2437 = vmatpush1.msra.mxu0 %v2404
        %2438 = vmatprep.subr.mxu0 0.0
        %2439 = vmatpush2.msra.mxu0 0.0
        %2440 = vmatprep.subr.mxu0 0.0
        %2441 = vmatpush2.msra.mxu0 0.0
        %2442 = vmatprep.subr.mxu0 0.0
        %2443 = vmatpush2.msra.mxu0 0.0
        %2444 = vmatprep.subr.mxu0 0.0
        %2445 = vmatpush2.msra.mxu0 0.0
        %2446 = vmatprep.subr.mxu0 0.0
        %2447 = vmatpush2.msra.mxu0 0.0
        %2448 = vmatprep.subr.mxu0 0.0
        %2449 = vmatpush2.msra.mxu0 0.0
        %2450 = vmatprep.subr.mxu0 0.0
        %2451 = vmatpush2.msra.mxu0 0.0
        %2452 = vmatprep.subr.mxu0 0.0
        %2453 = vmatpush2.msra.mxu0 0.0
        %2454 = vmatprep.subr.mxu0 0.0
        %2455 = vmatpush2.msra.mxu0 0.0
        %2456 = vmatprep.subr.mxu0 0.0
        %2457 = vmatpush2.msra.mxu0 0.0
        %2458 = vmatprep.subr.mxu0 0.0
        %2459 = vmatpush2.msra.mxu0 0.0
        %2460 = vmatprep.subr.mxu0 0.0
        %2461 = vmatpush2.msra.mxu0 0.0
        %2462 = vmatprep.subr.mxu0 0.0
        %2463 = vmatpush2.msra.mxu0 0.0
        %2464 = vmatprep.subr.mxu0 0.0
        %2465 = vmatpush2.msra.mxu0 0.0
        %2466 = vmatprep.subr.mxu0 0.0
        %2467 = vmatpush2.msra.mxu0 0.0
        %2468 = vmatprep.subr.mxu0 0.0
        %2469 = vmatpush2.msra.mxu0 0.0
        %2470 = vmatprep.mubr.f32.mxu0 0.0
        %2471 = vmatmul.mubr.f32.gmra.mxu0 %v2401
        %v2472 = vpop.f32.mrf.mxu0
        %v2473 = vadd.f32 0.0, %v2472
        %v2474 = vpop.f32.mrf.mxu0
        %2475 = vdwg.mxu0
        %v2477 = vsel %vm1004, %v1940, 0
        %v2480 = vsel %vm2326, %v336, 0
        %2482 = vmatprep.subr.mxu0 0.0
        %2483 = vmatpush1.msra.mxu0 0.0
        %2484 = vmatprep.subr.mxu0 0.0
        %2485 = vmatpush1.msra.mxu0 0.0
        %2486 = vmatprep.subr.mxu0 0.0
        %2487 = vmatpush1.msra.mxu0 0.0
        %2488 = vmatprep.subr.mxu0 0.0
        %2489 = vmatpush1.msra.mxu0 0.0
        %2490 = vmatprep.subr.mxu0 0.0
        %2491 = vmatpush1.msra.mxu0 0.0
        %2492 = vmatprep.subr.mxu0 0.0
        %2493 = vmatpush1.msra.mxu0 0.0
        %2494 = vmatprep.subr.mxu0 0.0
        %2495 = vmatpush1.msra.mxu0 0.0
        %2496 = vmatprep.subr.mxu0 0.0
        %2497 = vmatpush1.msra.mxu0 0.0
        %2498 = vmatprep.subr.mxu0 0.0
        %2499 = vmatpush1.msra.mxu0 0.0
        %2500 = vmatprep.subr.mxu0 0.0
        %2501 = vmatpush1.msra.mxu0 0.0
        %2502 = vmatprep.subr.mxu0 0.0
        %2503 = vmatpush1.msra.mxu0 0.0
        %2504 = vmatprep.subr.mxu0 0.0
        %2505 = vmatpush1.msra.mxu0 0.0
        %2506 = vmatprep.subr.mxu0 0.0
        %2507 = vmatpush1.msra.mxu0 0.0
        %2508 = vmatprep.subr.mxu0 0.0
        %2509 = vmatpush1.msra.mxu0 0.0
        %2510 = vmatprep.subr.mxu0 0.0
        %2511 = vmatpush1.msra.mxu0 0.0
        %2512 = vmatprep.subr.mxu0 0.0
        %2513 = vmatpush1.msra.mxu0 %v2480
        %2514 = vmatprep.subr.mxu0 0.0
        %2515 = vmatpush2.msra.mxu0 0.0
        %2516 = vmatprep.subr.mxu0 0.0
        %2517 = vmatpush2.msra.mxu0 0.0
        %2518 = vmatprep.subr.mxu0 0.0
        %2519 = vmatpush2.msra.mxu0 0.0
        %2520 = vmatprep.subr.mxu0 0.0
        %2521 = vmatpush2.msra.mxu0 0.0
        %2522 = vmatprep.subr.mxu0 0.0
        %2523 = vmatpush2.msra.mxu0 0.0
        %2524 = vmatprep.subr.mxu0 0.0
        %2525 = vmatpush2.msra.mxu0 0.0
        %2526 = vmatprep.subr.mxu0 0.0
        %2527 = vmatpush2.msra.mxu0 0.0
        %2528 = vmatprep.subr.mxu0 0.0
        %2529 = vmatpush2.msra.mxu0 0.0
        %2530 = vmatprep.subr.mxu0 0.0
        %2531 = vmatpush2.msra.mxu0 0.0
        %2532 = vmatprep.subr.mxu0 0.0
        %2533 = vmatpush2.msra.mxu0 0.0
        %2534 = vmatprep.subr.mxu0 0.0
        %2535 = vmatpush2.msra.mxu0 0.0
        %2536 = vmatprep.subr.mxu0 0.0
        %2537 = vmatpush2.msra.mxu0 0.0
        %2538 = vmatprep.subr.mxu0 0.0
        %2539 = vmatpush2.msra.mxu0 0.0
        %2540 = vmatprep.subr.mxu0 0.0
        %2541 = vmatpush2.msra.mxu0 0.0
        %2542 = vmatprep.subr.mxu0 0.0
        %2543 = vmatpush2.msra.mxu0 0.0
        %2544 = vmatprep.subr.mxu0 0.0
        %2545 = vmatpush2.msra.mxu0 0.0
        %2546 = vmatprep.mubr.f32.mxu0 0.0
        %2547 = vmatmul.mubr.f32.gmra.mxu0 %v2477
        %v2548 = vpop.f32.mrf.mxu0
        %v2549 = vadd.f32 0.0, %v2548
        %v2550 = vpop.f32.mrf.mxu0
        %2551 = vdwg.mxu0
        %v2553 = vsel %vm1004, %v2016, 0
        %v2556 = vsel %vm2326, %v337, 0
        %2558 = vmatprep.subr.mxu0 0.0
        %2559 = vmatpush1.msra.mxu0 0.0
        %2560 = vmatprep.subr.mxu0 0.0
        %2561 = vmatpush1.msra.mxu0 0.0
        %2562 = vmatprep.subr.mxu0 0.0
        %2563 = vmatpush1.msra.mxu0 0.0
        %2564 = vmatprep.subr.mxu0 0.0
        %2565 = vmatpush1.msra.mxu0 0.0
        %2566 = vmatprep.subr.mxu0 0.0
        %2567 = vmatpush1.msra.mxu0 0.0
        %2568 = vmatprep.subr.mxu0 0.0
        %2569 = vmatpush1.msra.mxu0 0.0
        %2570 = vmatprep.subr.mxu0 0.0
        %2571 = vmatpush1.msra.mxu0 0.0
        %2572 = vmatprep.subr.mxu0 0.0
        %2573 = vmatpush1.msra.mxu0 0.0
        %2574 = vmatprep.subr.mxu0 0.0
        %2575 = vmatpush1.msra.mxu0 0.0
        %2576 = vmatprep.subr.mxu0 0.0
        %2577 = vmatpush1.msra.mxu0 0.0
        %2578 = vmatprep.subr.mxu0 0.0
        %2579 = vmatpush1.msra.mxu0 0.0
        %2580 = vmatprep.subr.mxu0 0.0
        %2581 = vmatpush1.msra.mxu0 0.0
        %2582 = vmatprep.subr.mxu0 0.0
        %2583 = vmatpush1.msra.mxu0 0.0
        %2584 = vmatprep.subr.mxu0 0.0
        %2585 = vmatpush1.msra.mxu0 0.0
        %2586 = vmatprep.subr.mxu0 0.0
        %2587 = vmatpush1.msra.mxu0 0.0
        %2588 = vmatprep.subr.mxu0 0.0
        %2589 = vmatpush1.msra.mxu0 %v2556
        %2590 = vmatprep.subr.mxu0 0.0
        %2591 = vmatpush2.msra.mxu0 0.0
        %2592 = vmatprep.subr.mxu0 0.0
        %2593 = vmatpush2.msra.mxu0 0.0
        %2594 = vmatprep.subr.mxu0 0.0
        %2595 = vmatpush2.msra.mxu0 0.0
        %2596 = vmatprep.subr.mxu0 0.0
        %2597 = vmatpush2.msra.mxu0 0.0
        %2598 = vmatprep.subr.mxu0 0.0
        %2599 = vmatpush2.msra.mxu0 0.0
        %2600 = vmatprep.subr.mxu0 0.0
        %2601 = vmatpush2.msra.mxu0 0.0
        %2602 = vmatprep.subr.mxu0 0.0
        %2603 = vmatpush2.msra.mxu0 0.0
        %2604 = vmatprep.subr.mxu0 0.0
        %2605 = vmatpush2.msra.mxu0 0.0
        %2606 = vmatprep.subr.mxu0 0.0
        %2607 = vmatpush2.msra.mxu0 0.0
        %2608 = vmatprep.subr.mxu0 0.0
        %2609 = vmatpush2.msra.mxu0 0.0
        %2610 = vmatprep.subr.mxu0 0.0
        %2611 = vmatpush2.msra.mxu0 0.0
        %2612 = vmatprep.subr.mxu0 0.0
        %2613 = vmatpush2.msra.mxu0 0.0
        %2614 = vmatprep.subr.mxu0 0.0
        %2615 = vmatpush2.msra.mxu0 0.0
        %2616 = vmatprep.subr.mxu0 0.0
        %2617 = vmatpush2.msra.mxu0 0.0
        %2618 = vmatprep.subr.mxu0 0.0
        %2619 = vmatpush2.msra.mxu0 0.0
        %2620 = vmatprep.subr.mxu0 0.0
        %2621 = vmatpush2.msra.mxu0 0.0
        %2622 = vmatprep.mubr.f32.mxu0 0.0
        %2623 = vmatmul.mubr.f32.gmra.mxu0 %v2553
        %v2624 = vpop.f32.mrf.mxu0
        %v2625 = vadd.f32 0.0, %v2624
        %v2626 = vpop.f32.mrf.mxu0
        %2627 = vdwg.mxu0
        %v2629 = vsel %vm1004, %v2092, 0
        %v2632 = vsel %vm2326, %v338, 0
        %2634 = vmatprep.subr.mxu0 0.0
        %2635 = vmatpush1.msra.mxu0 0.0
        %2636 = vmatprep.subr.mxu0 0.0
        %2637 = vmatpush1.msra.mxu0 0.0
        %2638 = vmatprep.subr.mxu0 0.0
        %2639 = vmatpush1.msra.mxu0 0.0
        %2640 = vmatprep.subr.mxu0 0.0
        %2641 = vmatpush1.msra.mxu0 0.0
        %2642 = vmatprep.subr.mxu0 0.0
        %2643 = vmatpush1.msra.mxu0 0.0
        %2644 = vmatprep.subr.mxu0 0.0
        %2645 = vmatpush1.msra.mxu0 0.0
        %2646 = vmatprep.subr.mxu0 0.0
        %2647 = vmatpush1.msra.mxu0 0.0
        %2648 = vmatprep.subr.mxu0 0.0
        %2649 = vmatpush1.msra.mxu0 0.0
        %2650 = vmatprep.subr.mxu0 0.0
        %2651 = vmatpush1.msra.mxu0 0.0
        %2652 = vmatprep.subr.mxu0 0.0
        %2653 = vmatpush1.msra.mxu0 0.0
        %2654 = vmatprep.subr.mxu0 0.0
        %2655 = vmatpush1.msra.mxu0 0.0
        %2656 = vmatprep.subr.mxu0 0.0
        %2657 = vmatpush1.msra.mxu0 0.0
        %2658 = vmatprep.subr.mxu0 0.0
        %2659 = vmatpush1.msra.mxu0 0.0
        %2660 = vmatprep.subr.mxu0 0.0
        %2661 = vmatpush1.msra.mxu0 0.0
        %2662 = vmatprep.subr.mxu0 0.0
        %2663 = vmatpush1.msra.mxu0 0.0
        %2664 = vmatprep.subr.mxu0 0.0
        %2665 = vmatpush1.msra.mxu0 %v2632
        %2666 = vmatprep.subr.mxu0 0.0
        %2667 = vmatpush2.msra.mxu0 0.0
        %2668 = vmatprep.subr.mxu0 0.0
        %2669 = vmatpush2.msra.mxu0 0.0
        %2670 = vmatprep.subr.mxu0 0.0
        %2671 = vmatpush2.msra.mxu0 0.0
        %2672 = vmatprep.subr.mxu0 0.0
        %2673 = vmatpush2.msra.mxu0 0.0
        %2674 = vmatprep.subr.mxu0 0.0
        %2675 = vmatpush2.msra.mxu0 0.0
        %2676 = vmatprep.subr.mxu0 0.0
        %2677 = vmatpush2.msra.mxu0 0.0
        %2678 = vmatprep.subr.mxu0 0.0
        %2679 = vmatpush2.msra.mxu0 0.0
        %2680 = vmatprep.subr.mxu0 0.0
        %2681 = vmatpush2.msra.mxu0 0.0
        %2682 = vmatprep.subr.mxu0 0.0
        %2683 = vmatpush2.msra.mxu0 0.0
        %2684 = vmatprep.subr.mxu0 0.0
        %2685 = vmatpush2.msra.mxu0 0.0
        %2686 = vmatprep.subr.mxu0 0.0
        %2687 = vmatpush2.msra.mxu0 0.0
        %2688 = vmatprep.subr.mxu0 0.0
        %2689 = vmatpush2.msra.mxu0 0.0
        %2690 = vmatprep.subr.mxu0 0.0
        %2691 = vmatpush2.msra.mxu0 0.0
        %2692 = vmatprep.subr.mxu0 0.0
        %2693 = vmatpush2.msra.mxu0 0.0
        %2694 = vmatprep.subr.mxu0 0.0
        %2695 = vmatpush2.msra.mxu0 0.0
        %2696 = vmatprep.subr.mxu0 0.0
        %2697 = vmatpush2.msra.mxu0 0.0
        %2698 = vmatprep.mubr.f32.mxu0 0.0
        %2699 = vmatmul.mubr.f32.gmra.mxu0 %v2629
        %v2700 = vpop.f32.mrf.mxu0
        %v2701 = vadd.f32 0.0, %v2700
        %v2702 = vpop.f32.mrf.mxu0
        %2703 = vdwg.mxu0
        %v2705 = vsel %vm1004, %v2168, 0
        %v2708 = vsel %vm2326, %v339, 0
        %2710 = vmatprep.subr.mxu0 0.0
        %2711 = vmatpush1.msra.mxu0 0.0
        %2712 = vmatprep.subr.mxu0 0.0
        %2713 = vmatpush1.msra.mxu0 0.0
        %2714 = vmatprep.subr.mxu0 0.0
        %2715 = vmatpush1.msra.mxu0 0.0
        %2716 = vmatprep.subr.mxu0 0.0
        %2717 = vmatpush1.msra.mxu0 0.0
        %2718 = vmatprep.subr.mxu0 0.0
        %2719 = vmatpush1.msra.mxu0 0.0
        %2720 = vmatprep.subr.mxu0 0.0
        %2721 = vmatpush1.msra.mxu0 0.0
        %2722 = vmatprep.subr.mxu0 0.0
        %2723 = vmatpush1.msra.mxu0 0.0
        %2724 = vmatprep.subr.mxu0 0.0
        %2725 = vmatpush1.msra.mxu0 0.0
        %2726 = vmatprep.subr.mxu0 0.0
        %2727 = vmatpush1.msra.mxu0 0.0
        %2728 = vmatprep.subr.mxu0 0.0
        %2729 = vmatpush1.msra.mxu0 0.0
        %2730 = vmatprep.subr.mxu0 0.0
        %2731 = vmatpush1.msra.mxu0 0.0
        %2732 = vmatprep.subr.mxu0 0.0
        %2733 = vmatpush1.msra.mxu0 0.0
        %2734 = vmatprep.subr.mxu0 0.0
        %2735 = vmatpush1.msra.mxu0 0.0
        %2736 = vmatprep.subr.mxu0 0.0
        %2737 = vmatpush1.msra.mxu0 0.0
        %2738 = vmatprep.subr.mxu0 0.0
        %2739 = vmatpush1.msra.mxu0 0.0
        %2740 = vmatprep.subr.mxu0 0.0
        %2741 = vmatpush1.msra.mxu0 %v2708
        %2742 = vmatprep.subr.mxu0 0.0
        %2743 = vmatpush2.msra.mxu0 0.0
        %2744 = vmatprep.subr.mxu0 0.0
        %2745 = vmatpush2.msra.mxu0 0.0
        %2746 = vmatprep.subr.mxu0 0.0
        %2747 = vmatpush2.msra.mxu0 0.0
        %2748 = vmatprep.subr.mxu0 0.0
        %2749 = vmatpush2.msra.mxu0 0.0
        %2750 = vmatprep.subr.mxu0 0.0
        %2751 = vmatpush2.msra.mxu0 0.0
        %2752 = vmatprep.subr.mxu0 0.0
        %2753 = vmatpush2.msra.mxu0 0.0
        %2754 = vmatprep.subr.mxu0 0.0
        %2755 = vmatpush2.msra.mxu0 0.0
        %2756 = vmatprep.subr.mxu0 0.0
        %2757 = vmatpush2.msra.mxu0 0.0
        %2758 = vmatprep.subr.mxu0 0.0
        %2759 = vmatpush2.msra.mxu0 0.0
        %2760 = vmatprep.subr.mxu0 0.0
        %2761 = vmatpush2.msra.mxu0 0.0
        %2762 = vmatprep.subr.mxu0 0.0
        %2763 = vmatpush2.msra.mxu0 0.0
        %2764 = vmatprep.subr.mxu0 0.0
        %2765 = vmatpush2.msra.mxu0 0.0
        %2766 = vmatprep.subr.mxu0 0.0
        %2767 = vmatpush2.msra.mxu0 0.0
        %2768 = vmatprep.subr.mxu0 0.0
        %2769 = vmatpush2.msra.mxu0 0.0
        %2770 = vmatprep.subr.mxu0 0.0
        %2771 = vmatpush2.msra.mxu0 0.0
        %2772 = vmatprep.subr.mxu0 0.0
        %2773 = vmatpush2.msra.mxu0 0.0
        %2774 = vmatprep.mubr.f32.mxu0 0.0
        %2775 = vmatmul.mubr.f32.gmra.mxu0 %v2705
        %v2776 = vpop.f32.mrf.mxu0
        %v2777 = vadd.f32 0.0, %v2776
        %v2778 = vpop.f32.mrf.mxu0
        %2779 = vdwg.mxu0
        %v2781 = vsel %vm1004, %v2244, 0
        %v2784 = vsel %vm2326, %v340, 0
        %2786 = vmatprep.subr.mxu0 0.0
        %2787 = vmatpush1.msra.mxu0 0.0
        %2788 = vmatprep.subr.mxu0 0.0
        %2789 = vmatpush1.msra.mxu0 0.0
        %2790 = vmatprep.subr.mxu0 0.0
        %2791 = vmatpush1.msra.mxu0 0.0
        %2792 = vmatprep.subr.mxu0 0.0
        %2793 = vmatpush1.msra.mxu0 0.0
        %2794 = vmatprep.subr.mxu0 0.0
        %2795 = vmatpush1.msra.mxu0 0.0
        %2796 = vmatprep.subr.mxu0 0.0
        %2797 = vmatpush1.msra.mxu0 0.0
        %2798 = vmatprep.subr.mxu0 0.0
        %2799 = vmatpush1.msra.mxu0 0.0
        %2800 = vmatprep.subr.mxu0 0.0
        %2801 = vmatpush1.msra.mxu0 0.0
        %2802 = vmatprep.subr.mxu0 0.0
        %2803 = vmatpush1.msra.mxu0 0.0
        %2804 = vmatprep.subr.mxu0 0.0
        %2805 = vmatpush1.msra.mxu0 0.0
        %2806 = vmatprep.subr.mxu0 0.0
        %2807 = vmatpush1.msra.mxu0 0.0
        %2808 = vmatprep.subr.mxu0 0.0
        %2809 = vmatpush1.msra.mxu0 0.0
        %2810 = vmatprep.subr.mxu0 0.0
        %2811 = vmatpush1.msra.mxu0 0.0
        %2812 = vmatprep.subr.mxu0 0.0
        %2813 = vmatpush1.msra.mxu0 0.0
        %2814 = vmatprep.subr.mxu0 0.0
        %2815 = vmatpush1.msra.mxu0 0.0
        %2816 = vmatprep.subr.mxu0 0.0
        %2817 = vmatpush1.msra.mxu0 %v2784
        %2818 = vmatprep.subr.mxu0 0.0
        %2819 = vmatpush2.msra.mxu0 0.0
        %2820 = vmatprep.subr.mxu0 0.0
        %2821 = vmatpush2.msra.mxu0 0.0
        %2822 = vmatprep.subr.mxu0 0.0
        %2823 = vmatpush2.msra.mxu0 0.0
        %2824 = vmatprep.subr.mxu0 0.0
        %2825 = vmatpush2.msra.mxu0 0.0
        %2826 = vmatprep.subr.mxu0 0.0
        %2827 = vmatpush2.msra.mxu0 0.0
        %2828 = vmatprep.subr.mxu0 0.0
        %2829 = vmatpush2.msra.mxu0 0.0
        %2830 = vmatprep.subr.mxu0 0.0
        %2831 = vmatpush2.msra.mxu0 0.0
        %2832 = vmatprep.subr.mxu0 0.0
        %2833 = vmatpush2.msra.mxu0 0.0
        %2834 = vmatprep.subr.mxu0 0.0
        %2835 = vmatpush2.msra.mxu0 0.0
        %2836 = vmatprep.subr.mxu0 0.0
        %2837 = vmatpush2.msra.mxu0 0.0
        %2838 = vmatprep.subr.mxu0 0.0
        %2839 = vmatpush2.msra.mxu0 0.0
        %2840 = vmatprep.subr.mxu0 0.0
        %2841 = vmatpush2.msra.mxu0 0.0
        %2842 = vmatprep.subr.mxu0 0.0
        %2843 = vmatpush2.msra.mxu0 0.0
        %2844 = vmatprep.subr.mxu0 0.0
        %2845 = vmatpush2.msra.mxu0 0.0
        %2846 = vmatprep.subr.mxu0 0.0
        %2847 = vmatpush2.msra.mxu0 0.0
        %2848 = vmatprep.subr.mxu0 0.0
        %2849 = vmatpush2.msra.mxu0 0.0
        %2850 = vmatprep.mubr.f32.mxu0 0.0
        %2851 = vmatmul.mubr.f32.gmra.mxu0 %v2781
        %v2852 = vpop.f32.mrf.mxu0
        %v2853 = vadd.f32 0.0, %v2852
        %v2854 = vpop.f32.mrf.mxu0
        %2855 = vdwg.mxu0
        %v2857 = vsel %vm1004, %v2320, 0
        %v2860 = vsel %vm2326, %v341, 0
        %2862 = vmatprep.subr.mxu0 0.0
        %2863 = vmatpush1.msra.mxu0 0.0
        %2864 = vmatprep.subr.mxu0 0.0
        %2865 = vmatpush1.msra.mxu0 0.0
        %2866 = vmatprep.subr.mxu0 0.0
        %2867 = vmatpush1.msra.mxu0 0.0
        %2868 = vmatprep.subr.mxu0 0.0
        %2869 = vmatpush1.msra.mxu0 0.0
        %2870 = vmatprep.subr.mxu0 0.0
        %2871 = vmatpush1.msra.mxu0 0.0
        %2872 = vmatprep.subr.mxu0 0.0
        %2873 = vmatpush1.msra.mxu0 0.0
        %2874 = vmatprep.subr.mxu0 0.0
        %2875 = vmatpush1.msra.mxu0 0.0
        %2876 = vmatprep.subr.mxu0 0.0
        %2877 = vmatpush1.msra.mxu0 0.0
        %2878 = vmatprep.subr.mxu0 0.0
        %2879 = vmatpush1.msra.mxu0 0.0
        %2880 = vmatprep.subr.mxu0 0.0
        %2881 = vmatpush1.msra.mxu0 0.0
        %2882 = vmatprep.subr.mxu0 0.0
        %2883 = vmatpush1.msra.mxu0 0.0
        %2884 = vmatprep.subr.mxu0 0.0
        %2885 = vmatpush1.msra.mxu0 0.0
        %2886 = vmatprep.subr.mxu0 0.0
        %2887 = vmatpush1.msra.mxu0 0.0
        %2888 = vmatprep.subr.mxu0 0.0
        %2889 = vmatpush1.msra.mxu0 0.0
        %2890 = vmatprep.subr.mxu0 0.0
        %2891 = vmatpush1.msra.mxu0 0.0
        %2892 = vmatprep.subr.mxu0 0.0
        %2893 = vmatpush1.msra.mxu0 %v2860
        %2894 = vmatprep.subr.mxu0 0.0
        %2895 = vmatpush2.msra.mxu0 0.0
        %2896 = vmatprep.subr.mxu0 0.0
        %2897 = vmatpush2.msra.mxu0 0.0
        %2898 = vmatprep.subr.mxu0 0.0
        %2899 = vmatpush2.msra.mxu0 0.0
        %2900 = vmatprep.subr.mxu0 0.0
        %2901 = vmatpush2.msra.mxu0 0.0
        %2902 = vmatprep.subr.mxu0 0.0
        %2903 = vmatpush2.msra.mxu0 0.0
        %2904 = vmatprep.subr.mxu0 0.0
        %2905 = vmatpush2.msra.mxu0 0.0
        %2906 = vmatprep.subr.mxu0 0.0
        %2907 = vmatpush2.msra.mxu0 0.0
        %2908 = vmatprep.subr.mxu0 0.0
        %2909 = vmatpush2.msra.mxu0 0.0
        %2910 = vmatprep.subr.mxu0 0.0
        %2911 = vmatpush2.msra.mxu0 0.0
        %2912 = vmatprep.subr.mxu0 0.0
        %2913 = vmatpush2.msra.mxu0 0.0
        %2914 = vmatprep.subr.mxu0 0.0
        %2915 = vmatpush2.msra.mxu0 0.0
        %2916 = vmatprep.subr.mxu0 0.0
        %2917 = vmatpush2.msra.mxu0 0.0
        %2918 = vmatprep.subr.mxu0 0.0
        %2919 = vmatpush2.msra.mxu0 0.0
        %2920 = vmatprep.subr.mxu0 0.0
        %2921 = vmatpush2.msra.mxu0 0.0
        %2922 = vmatprep.subr.mxu0 0.0
        %2923 = vmatpush2.msra.mxu0 0.0
        %2924 = vmatprep.subr.mxu0 0.0
        %2925 = vmatpush2.msra.mxu0 0.0
        %2926 = vmatprep.mubr.f32.mxu0 0.0
        %2927 = vmatmul.mubr.f32.gmra.mxu0 %v2857
        %v2928 = vpop.f32.mrf.mxu0
        %v2929 = vadd.f32 0.0, %v2928
        %v2930 = vpop.f32.mrf.mxu0
        %2931 = vdwg.mxu0
        %v2932 = vsel %vm437, %v2397, 0.0
        %v2933 = vsel %vm437, %v2473, 0.0
        %v2934 = vadd.f32 %v2932, %v2933
        %v2935 = vsel %vm437, %v2549, 0.0
        %v2936 = vadd.f32 %v2934, %v2935
        %v2937 = vsel %vm437, %v2625, 0.0
        %v2938 = vadd.f32 %v2936, %v2937
        %v2939 = vsel %vm437, %v2701, 0.0
        %v2940 = vadd.f32 %v2938, %v2939
        %v2941 = vsel %vm437, %v2777, 0.0
        %v2942 = vadd.f32 %v2940, %v2941
        %v2943 = vsel %vm437, %v2853, 0.0
        %v2944 = vadd.f32 %v2942, %v2943
        %v2945 = vsel %vm437, %v2929, 0.0
        %v2946 = vadd.f32 %v2944, %v2945
        %v2947 = vlaneseq
        %v2948 = vshrl.u32 %v2947, 7
        %v2949 = vsub.s32 0, %v2948
        %v2950 = vrot.slane %v346, %v2949
        %v2951 = vadd.f32 %v2946, %v2950
        %v2952 = vadd.f32 %v300, %v2951
        %v2953 = vsel %vm437, %v2952, 0.0
        %2954 = vadd.xlane.f32.xlu0 %v2953
        %v2955 = vpop.xlane.xlu0 %2954
        %v2956 = vrcp.pop 32.0
        %v2957 = vmul.f32 %v2955, %v2956
        %v2958 = vsub.f32 %v2952, %v2957
        %v2959 = vmul.f32 %v2958, %v2958
        %v2960 = vsel %vm437, %v2959, 0.0
        %2961 = vadd.xlane.f32.xlu0 %v2960
        %v2962 = vpop.xlane.xlu0 %2961
        %v2963 = vmul.f32 %v2962, %v2956
        %v2964 = vadd.f32 %v2963, 1e-05
        %v2965 = vrsqrt.pop %v2964
        %v2966 = vmul.f32 %v2958, %v2965
        %v2967 = vlaneseq
        %v2968 = vshrl.u32 %v2967, 7
        %v2969 = vsub.s32 2, %v2968
        %v2970 = vrot.slane %v346, %v2969
        %v2971 = vmul.f32 %v2966, %v2970
        %v2972 = vlaneseq
        %v2973 = vshrl.u32 %v2972, 7
        %v2974 = vsub.s32 3, %v2973
        %v2975 = vrot.slane %v346, %v2974
        %v2976 = vadd.f32 %v2971, %v2975
        %v2977 = vlaneseq
        %v2978 = vshrl.u32 %v2977, 7
        %v2979 = vsub.s32 1, %v2978
        %v2980 = vrot.slane %v346, %v2979
        %v2982 = vsel %vm437, %v2976, 0
        %2984 = vmatprep.subr.mxu0 0.0
        %2985 = vmatpush1.msra.mxu0 0.0
        %2986 = vmatprep.subr.mxu0 0.0
        %2987 = vmatpush1.msra.mxu0 0.0
        %2988 = vmatprep.subr.mxu0 0.0
        %2989 = vmatpush1.msra.mxu0 0.0
        %2990 = vmatprep.subr.mxu0 0.0
        %2991 = vmatpush1.msra.mxu0 0.0
        %2992 = vmatprep.subr.mxu0 0.0
        %2993 = vmatpush1.msra.mxu0 0.0
        %2994 = vmatprep.subr.mxu0 0.0
        %2995 = vmatpush1.msra.mxu0 0.0
        %2996 = vmatprep.subr.mxu0 0.0
        %2997 = vmatpush1.msra.mxu0 0.0
        %2998 = vmatprep.subr.mxu0 0.0
        %2999 = vmatpush1.msra.mxu0 0.0
        %3000 = vmatprep.subr.mxu0 0.0
        %3001 = vmatpush1.msra.mxu0 0.0
        %3002 = vmatprep.subr.mxu0 0.0
        %3003 = vmatpush1.msra.mxu0 0.0
        %3004 = vmatprep.subr.mxu0 0.0
        %3005 = vmatpush1.msra.mxu0 0.0
        %3006 = vmatprep.subr.mxu0 0.0
        %3007 = vmatpush1.msra.mxu0 0.0
        %3008 = vmatprep.subr.mxu0 0.0
        %3009 = vmatpush1.msra.mxu0 %v345
        %3010 = vmatprep.subr.mxu0 0.0
        %3011 = vmatpush1.msra.mxu0 %v344
        %3012 = vmatprep.subr.mxu0 0.0
        %3013 = vmatpush1.msra.mxu0 %v343
        %3014 = vmatprep.subr.mxu0 0.0
        %3015 = vmatpush1.msra.mxu0 %v342
        %3016 = vmatprep.subr.mxu0 0.0
        %3017 = vmatpush2.msra.mxu0 0.0
        %3018 = vmatprep.subr.mxu0 0.0
        %3019 = vmatpush2.msra.mxu0 0.0
        %3020 = vmatprep.subr.mxu0 0.0
        %3021 = vmatpush2.msra.mxu0 0.0
        %3022 = vmatprep.subr.mxu0 0.0
        %3023 = vmatpush2.msra.mxu0 0.0
        %3024 = vmatprep.subr.mxu0 0.0
        %3025 = vmatpush2.msra.mxu0 0.0
        %3026 = vmatprep.subr.mxu0 0.0
        %3027 = vmatpush2.msra.mxu0 0.0
        %3028 = vmatprep.subr.mxu0 0.0
        %3029 = vmatpush2.msra.mxu0 0.0
        %3030 = vmatprep.subr.mxu0 0.0
        %3031 = vmatpush2.msra.mxu0 0.0
        %3032 = vmatprep.subr.mxu0 0.0
        %3033 = vmatpush2.msra.mxu0 0.0
        %3034 = vmatprep.subr.mxu0 0.0
        %3035 = vmatpush2.msra.mxu0 0.0
        %3036 = vmatprep.subr.mxu0 0.0
        %3037 = vmatpush2.msra.mxu0 0.0
        %3038 = vmatprep.subr.mxu0 0.0
        %3039 = vmatpush2.msra.mxu0 0.0
        %3040 = vmatprep.subr.mxu0 0.0
        %3041 = vmatpush2.msra.mxu0 0.0
        %3042 = vmatprep.subr.mxu0 0.0
        %3043 = vmatpush2.msra.mxu0 0.0
        %3044 = vmatprep.subr.mxu0 0.0
        %3045 = vmatpush2.msra.mxu0 0.0
        %3046 = vmatprep.subr.mxu0 0.0
        %3047 = vmatpush2.msra.mxu0 0.0
        %3048 = vmatprep.mubr.f32.mxu0 0.0
        %3049 = vmatmul.mubr.f32.gmra.mxu0 %v2982
        %v3050 = vpop.f32.mrf.mxu0
        %v3051 = vadd.f32 %v2980, %v3050
        %v3052 = vpop.f32.mrf.mxu0
        %3053 = vdwg.mxu0
        %v3054 = vadd.f32 %v2976, %v3051
        %v3055 = vsel %vm437, %v3054, 0.0
        %3056 = vadd.xlane.f32.xlu0 %v3055
        %v3057 = vpop.xlane.xlu0 %3056
        %v3058 = vmul.f32 %v3057, %v2956
        %v3059 = vsub.f32 %v3054, %v3058
        %v3060 = vmul.f32 %v3059, %v3059
        %v3061 = vsel %vm437, %v3060, 0.0
        %3062 = vadd.xlane.f32.xlu0 %v3061
        %v3063 = vpop.xlane.xlu0 %3062
        %v3064 = vmul.f32 %v3063, %v2956
        %v3065 = vadd.f32 %v3064, 1e-05
        %v3066 = vrsqrt.pop %v3065
        %v3067 = vmul.f32 %v3059, %v3066
        %v3068 = vmul.f32 %v3067, %v2970
        %v3069 = vadd.f32 %v3068, %v2975
        %s3070 = scalar_lea.vmem %s1, 256
        %v3071 = vld [vmem:[%s3070] sm:$0xff]
        %v3072 = vld [vmem:[%s3070 + $0x8] sm:$0xff]
        %v3073 = vld [vmem:[%s3070 + $0x10] sm:$0xff]
        %v3074 = vld [vmem:[%s3070 + $0x18] sm:$0xff]
        %v3075 = vld [vmem:[%s3070 + $0x20] sm:$0xff]
        %v3076 = vld [vmem:[%s3070 + $0x28] sm:$0xff]
        %v3077 = vld [vmem:[%s3070 + $0x30] sm:$0xff]
        %v3078 = vld [vmem:[%s3070 + $0x38] sm:$0xff]
        %v3079 = vld [vmem:[%s3070 + $0x40] sm:$0xff]
        %v3080 = vld [vmem:[%s3070 + $0x48] sm:$0xff]
        %v3081 = vld [vmem:[%s3070 + $0x50] sm:$0xff]
        %v3082 = vld [vmem:[%s3070 + $0x58] sm:$0xff]
        %v3083 = vld [vmem:[%s3070 + $0x60] sm:$0xff]
        %v3084 = vld [vmem:[%s3070 + $0x68] sm:$0xff]
        %v3085 = vld [vmem:[%s3070 + $0x70] sm:$0xff]
        %v3086 = vld [vmem:[%s3070 + $0x78] sm:$0xff]
        %v3087 = vld [vmem:[%s3070 + $0x80] sm:$0xff]
        %v3088 = vld [vmem:[%s3070 + $0x88] sm:$0xff]
        %v3089 = vld [vmem:[%s3070 + $0x90] sm:$0xff]
        %v3090 = vld [vmem:[%s3070 + $0x98] sm:$0xff]
        %v3091 = vld [vmem:[%s3070 + $0xa0] sm:$0xff]
        %v3092 = vld [vmem:[%s3070 + $0xa8] sm:$0xff]
        %v3093 = vld [vmem:[%s3070 + $0xb0] sm:$0xff]
        %v3094 = vld [vmem:[%s3070 + $0xb8] sm:$0xff]
        %v3095 = vld [vmem:[%s3070 + $0xc0] sm:$0xff]
        %v3096 = vld [vmem:[%s3070 + $0xc8] sm:$0xff]
        %v3097 = vld [vmem:[%s3070 + $0xd0] sm:$0xff]
        %v3098 = vld [vmem:[%s3070 + $0xd8] sm:$0xff]
        %v3099 = vld [vmem:[%s3070 + $0xe0] sm:$0xff]
        %v3100 = vld [vmem:[%s3070 + $0xe8] sm:$0xff]
        %v3101 = vld [vmem:[%s3070 + $0xf0] sm:$0xff]
        %v3102 = vld [vmem:[%s3070 + $0xf8] sm:$0xff]
        %s3103 = scalar_lea.vmem %s2, 8
        %v3104 = vld [vmem:[%s3103] sm:$0xff]
        %s3105 = scalar_lea.vmem %s3, 32
        %v3106 = vld [vmem:[%s3105] sm:$0xf]
        %v3107 = vld [vmem:[%s3105 + $0x4] sm:$0xf]
        %v3108 = vld [vmem:[%s3105 + $0x8] sm:$0xf]
        %v3109 = vld [vmem:[%s3105 + $0xc] sm:$0xf]
        %v3110 = vld [vmem:[%s3105 + $0x10] sm:$0xf]
        %v3111 = vld [vmem:[%s3105 + $0x14] sm:$0xf]
        %v3112 = vld [vmem:[%s3105 + $0x18] sm:$0xf]
        %v3113 = vld [vmem:[%s3105 + $0x1c] sm:$0xf]
        %s3114 = scalar_lea.vmem %s4, 32
        %v3115 = vld [vmem:[%s3114] sm:$0xff]
        %v3116 = vld [vmem:[%s3114 + $0x8] sm:$0xff]
        %v3117 = vld [vmem:[%s3114 + $0x10] sm:$0xff]
        %v3118 = vld [vmem:[%s3114 + $0x18] sm:$0xff]
        %s3119 = scalar_lea.vmem %s5, 8
        %v3120 = vld [vmem:[%s3119] sm:$0xff]
        %v3122 = vcombine.high %v3104, %v3104
        %v3124 = vunpack.c.l.s4 1966171168
        %v3125 = vunpack.c.0.s8 %v3124
        %v3126 = vlaneseq
        %v3127 = vshrl.u32 %v3126, 7
        %v3128 = vsub.s32 %v3125, %v3127
        %v3129 = vrot.slane %v3104, %v3128
        %v3131 = vunpack.c.l.s4 1966171168
        %v3132 = vunpack.c.0.s8 %v3131
        %v3133 = vlaneseq
        %v3134 = vshrl.u32 %v3133, 7
        %v3135 = vsub.s32 %v3132, %v3134
        %v3136 = vrot.slane %v3122, %v3135
        %v3137 = vcombine.high %v3129, %v3129
        %v3138 = vcombine.high %v3136, %v3136
        %v3140 = vunpack.c.l.s4 1966171168
        %v3141 = vunpack.c.0.s8 %v3140
        %v3142 = vlaneseq
        %v3143 = vshrl.u32 %v3142, 7
        %v3144 = vsub.s32 %v3141, %v3143
        %v3145 = vrot.slane %v3129, %v3144
        %v3147 = vunpack.c.l.s4 1966171168
        %v3148 = vunpack.c.0.s8 %v3147
        %v3149 = vlaneseq
        %v3150 = vshrl.u32 %v3149, 7
        %v3151 = vsub.s32 %v3148, %v3150
        %v3152 = vrot.slane %v3136, %v3151
        %v3154 = vunpack.c.l.s4 1966171168
        %v3155 = vunpack.c.0.s8 %v3154
        %v3156 = vlaneseq
        %v3157 = vshrl.u32 %v3156, 7
        %v3158 = vsub.s32 %v3155, %v3157
        %v3159 = vrot.slane %v3137, %v3158
        %v3161 = vunpack.c.l.s4 1966171168
        %v3162 = vunpack.c.0.s8 %v3161
        %v3163 = vlaneseq
        %v3164 = vshrl.u32 %v3163, 7
        %v3165 = vsub.s32 %v3162, %v3164
        %v3166 = vrot.slane %v3138, %v3165
        %v3167 = vcombine.high %v3145, %v3145
        %v3168 = vcombine.high %v3152, %v3152
        %v3169 = vcombine.high %v3159, %v3159
        %v3170 = vcombine.high %v3166, %v3166
        %v3171 = vlaneseq
        %v3172 = vshrl.u32 %v3171, 7
        %v3173 = vsub.s32 0, %v3172
        %v3174 = vrot.slane %v3145, %v3173
        %v3175 = vlaneseq
        %v3176 = vshrl.u32 %v3175, 7
        %v3177 = vsub.s32 0, %v3176
        %v3178 = vrot.slane %v3159, %v3177
        %v3179 = vlaneseq
        %v3180 = vshrl.u32 %v3179, 7
        %v3181 = vsub.s32 0, %v3180
        %v3182 = vrot.slane %v3167, %v3181
        %v3183 = vlaneseq
        %v3184 = vshrl.u32 %v3183, 7
        %v3185 = vsub.s32 0, %v3184
        %v3186 = vrot.slane %v3169, %v3185
        %v3187 = vlaneseq
        %v3188 = vshrl.u32 %v3187, 7
        %v3189 = vsub.s32 0, %v3188
        %v3190 = vrot.slane %v3152, %v3189
        %v3191 = vlaneseq
        %v3192 = vshrl.u32 %v3191, 7
        %v3193 = vsub.s32 0, %v3192
        %v3194 = vrot.slane %v3166, %v3193
        %v3195 = vlaneseq
        %v3196 = vshrl.u32 %v3195, 7
        %v3197 = vsub.s32 0, %v3196
        %v3198 = vrot.slane %v3168, %v3197
        %v3199 = vlaneseq
        %v3200 = vshrl.u32 %v3199, 7
        %v3201 = vsub.s32 0, %v3200
        %v3202 = vrot.slane %v3170, %v3201
        %v3212 = vsel %vm437, %v3069, 0
        %3214 = vmatprep.subr.mxu0 0.0
        %3215 = vmatpush1.msra.mxu0 0.0
        %3216 = vmatprep.subr.mxu0 0.0
        %3217 = vmatpush1.msra.mxu0 0.0
        %3218 = vmatprep.subr.mxu0 0.0
        %3219 = vmatpush1.msra.mxu0 0.0
        %3220 = vmatprep.subr.mxu0 0.0
        %3221 = vmatpush1.msra.mxu0 0.0
        %3222 = vmatprep.subr.mxu0 0.0
        %3223 = vmatpush1.msra.mxu0 0.0
        %3224 = vmatprep.subr.mxu0 0.0
        %3225 = vmatpush1.msra.mxu0 0.0
        %3226 = vmatprep.subr.mxu0 0.0
        %3227 = vmatpush1.msra.mxu0 0.0
        %3228 = vmatprep.subr.mxu0 0.0
        %3229 = vmatpush1.msra.mxu0 0.0
        %3230 = vmatprep.subr.mxu0 0.0
        %3231 = vmatpush1.msra.mxu0 0.0
        %3232 = vmatprep.subr.mxu0 0.0
        %3233 = vmatpush1.msra.mxu0 0.0
        %3234 = vmatprep.subr.mxu0 0.0
        %3235 = vmatpush1.msra.mxu0 0.0
        %3236 = vmatprep.subr.mxu0 0.0
        %3237 = vmatpush1.msra.mxu0 0.0
        %3238 = vmatprep.subr.mxu0 0.0
        %3239 = vmatpush1.msra.mxu0 %v3074
        %3240 = vmatprep.subr.mxu0 0.0
        %3241 = vmatpush1.msra.mxu0 %v3073
        %3242 = vmatprep.subr.mxu0 0.0
        %3243 = vmatpush1.msra.mxu0 %v3072
        %3244 = vmatprep.subr.mxu0 0.0
        %3245 = vmatpush1.msra.mxu0 %v3071
        %3246 = vmatprep.subr.mxu0 0.0
        %3247 = vmatpush2.msra.mxu0 0.0
        %3248 = vmatprep.subr.mxu0 0.0
        %3249 = vmatpush2.msra.mxu0 0.0
        %3250 = vmatprep.subr.mxu0 0.0
        %3251 = vmatpush2.msra.mxu0 0.0
        %3252 = vmatprep.subr.mxu0 0.0
        %3253 = vmatpush2.msra.mxu0 0.0
        %3254 = vmatprep.subr.mxu0 0.0
        %3255 = vmatpush2.msra.mxu0 0.0
        %3256 = vmatprep.subr.mxu0 0.0
        %3257 = vmatpush2.msra.mxu0 0.0
        %3258 = vmatprep.subr.mxu0 0.0
        %3259 = vmatpush2.msra.mxu0 0.0
        %3260 = vmatprep.subr.mxu0 0.0
        %3261 = vmatpush2.msra.mxu0 0.0
        %3262 = vmatprep.subr.mxu0 0.0
        %3263 = vmatpush2.msra.mxu0 0.0
        %3264 = vmatprep.subr.mxu0 0.0
        %3265 = vmatpush2.msra.mxu0 0.0
        %3266 = vmatprep.subr.mxu0 0.0
        %3267 = vmatpush2.msra.mxu0 0.0
        %3268 = vmatprep.subr.mxu0 0.0
        %3269 = vmatpush2.msra.mxu0 0.0
        %3270 = vmatprep.subr.mxu0 0.0
        %3271 = vmatpush2.msra.mxu0 0.0
        %3272 = vmatprep.subr.mxu0 0.0
        %3273 = vmatpush2.msra.mxu0 0.0
        %3274 = vmatprep.subr.mxu0 0.0
        %3275 = vmatpush2.msra.mxu0 0.0
        %3276 = vmatprep.subr.mxu0 0.0
        %3277 = vmatpush2.msra.mxu0 0.0
        %3278 = vmatprep.mubr.f32.mxu0 0.0
        %3279 = vmatmul.mubr.f32.gmra.mxu0 %v3212
        %v3280 = vpop.f32.mrf.mxu0
        %v3281 = vadd.f32 %v3174, %v3280
        %v3282 = vpop.f32.mrf.mxu0
        %3283 = vdwg.mxu0
        %3284 = vmatprep.subr.mxu0 0.0
        %3285 = vmatpush1.msra.mxu0 0.0
        %3286 = vmatprep.subr.mxu0 0.0
        %3287 = vmatpush1.msra.mxu0 0.0
        %3288 = vmatprep.subr.mxu0 0.0
        %3289 = vmatpush1.msra.mxu0 0.0
        %3290 = vmatprep.subr.mxu0 0.0
        %3291 = vmatpush1.msra.mxu0 0.0
        %3292 = vmatprep.subr.mxu0 0.0
        %3293 = vmatpush1.msra.mxu0 0.0
        %3294 = vmatprep.subr.mxu0 0.0
        %3295 = vmatpush1.msra.mxu0 0.0
        %3296 = vmatprep.subr.mxu0 0.0
        %3297 = vmatpush1.msra.mxu0 0.0
        %3298 = vmatprep.subr.mxu0 0.0
        %3299 = vmatpush1.msra.mxu0 0.0
        %3300 = vmatprep.subr.mxu0 0.0
        %3301 = vmatpush1.msra.mxu0 0.0
        %3302 = vmatprep.subr.mxu0 0.0
        %3303 = vmatpush1.msra.mxu0 0.0
        %3304 = vmatprep.subr.mxu0 0.0
        %3305 = vmatpush1.msra.mxu0 0.0
        %3306 = vmatprep.subr.mxu0 0.0
        %3307 = vmatpush1.msra.mxu0 0.0
        %3308 = vmatprep.subr.mxu0 0.0
        %3309 = vmatpush1.msra.mxu0 %v3078
        %3310 = vmatprep.subr.mxu0 0.0
        %3311 = vmatpush1.msra.mxu0 %v3077
        %3312 = vmatprep.subr.mxu0 0.0
        %3313 = vmatpush1.msra.mxu0 %v3076
        %3314 = vmatprep.subr.mxu0 0.0
        %3315 = vmatpush1.msra.mxu0 %v3075
        %3316 = vmatprep.subr.mxu0 0.0
        %3317 = vmatpush2.msra.mxu0 0.0
        %3318 = vmatprep.subr.mxu0 0.0
        %3319 = vmatpush2.msra.mxu0 0.0
        %3320 = vmatprep.subr.mxu0 0.0
        %3321 = vmatpush2.msra.mxu0 0.0
        %3322 = vmatprep.subr.mxu0 0.0
        %3323 = vmatpush2.msra.mxu0 0.0
        %3324 = vmatprep.subr.mxu0 0.0
        %3325 = vmatpush2.msra.mxu0 0.0
        %3326 = vmatprep.subr.mxu0 0.0
        %3327 = vmatpush2.msra.mxu0 0.0
        %3328 = vmatprep.subr.mxu0 0.0
        %3329 = vmatpush2.msra.mxu0 0.0
        %3330 = vmatprep.subr.mxu0 0.0
        %3331 = vmatpush2.msra.mxu0 0.0
        %3332 = vmatprep.subr.mxu0 0.0
        %3333 = vmatpush2.msra.mxu0 0.0
        %3334 = vmatprep.subr.mxu0 0.0
        %3335 = vmatpush2.msra.mxu0 0.0
        %3336 = vmatprep.subr.mxu0 0.0
        %3337 = vmatpush2.msra.mxu0 0.0
        %3338 = vmatprep.subr.mxu0 0.0
        %3339 = vmatpush2.msra.mxu0 0.0
        %3340 = vmatprep.subr.mxu0 0.0
        %3341 = vmatpush2.msra.mxu0 0.0
        %3342 = vmatprep.subr.mxu0 0.0
        %3343 = vmatpush2.msra.mxu0 0.0
        %3344 = vmatprep.subr.mxu0 0.0
        %3345 = vmatpush2.msra.mxu0 0.0
        %3346 = vmatprep.subr.mxu0 0.0
        %3347 = vmatpush2.msra.mxu0 0.0
        %3348 = vmatprep.mubr.f32.mxu0 0.0
        %3349 = vmatmul.mubr.f32.gmra.mxu0 %v3212
        %v3350 = vpop.f32.mrf.mxu0
        %v3351 = vadd.f32 %v3178, %v3350
        %v3352 = vpop.f32.mrf.mxu0
        %3353 = vdwg.mxu0
        %3354 = vmatprep.subr.mxu0 0.0
        %3355 = vmatpush1.msra.mxu0 0.0
        %3356 = vmatprep.subr.mxu0 0.0
        %3357 = vmatpush1.msra.mxu0 0.0
        %3358 = vmatprep.subr.mxu0 0.0
        %3359 = vmatpush1.msra.mxu0 0.0
        %3360 = vmatprep.subr.mxu0 0.0
        %3361 = vmatpush1.msra.mxu0 0.0
        %3362 = vmatprep.subr.mxu0 0.0
        %3363 = vmatpush1.msra.mxu0 0.0
        %3364 = vmatprep.subr.mxu0 0.0
        %3365 = vmatpush1.msra.mxu0 0.0
        %3366 = vmatprep.subr.mxu0 0.0
        %3367 = vmatpush1.msra.mxu0 0.0
        %3368 = vmatprep.subr.mxu0 0.0
        %3369 = vmatpush1.msra.mxu0 0.0
        %3370 = vmatprep.subr.mxu0 0.0
        %3371 = vmatpush1.msra.mxu0 0.0
        %3372 = vmatprep.subr.mxu0 0.0
        %3373 = vmatpush1.msra.mxu0 0.0
        %3374 = vmatprep.subr.mxu0 0.0
        %3375 = vmatpush1.msra.mxu0 0.0
        %3376 = vmatprep.subr.mxu0 0.0
        %3377 = vmatpush1.msra.mxu0 0.0
        %3378 = vmatprep.subr.mxu0 0.0
        %3379 = vmatpush1.msra.mxu0 %v3082
        %3380 = vmatprep.subr.mxu0 0.0
        %3381 = vmatpush1.msra.mxu0 %v3081
        %3382 = vmatprep.subr.mxu0 0.0
        %3383 = vmatpush1.msra.mxu0 %v3080
        %3384 = vmatprep.subr.mxu0 0.0
        %3385 = vmatpush1.msra.mxu0 %v3079
        %3386 = vmatprep.subr.mxu0 0.0
        %3387 = vmatpush2.msra.mxu0 0.0
        %3388 = vmatprep.subr.mxu0 0.0
        %3389 = vmatpush2.msra.mxu0 0.0
        %3390 = vmatprep.subr.mxu0 0.0
        %3391 = vmatpush2.msra.mxu0 0.0
        %3392 = vmatprep.subr.mxu0 0.0
        %3393 = vmatpush2.msra.mxu0 0.0
        %3394 = vmatprep.subr.mxu0 0.0
        %3395 = vmatpush2.msra.mxu0 0.0
        %3396 = vmatprep.subr.mxu0 0.0
        %3397 = vmatpush2.msra.mxu0 0.0
        %3398 = vmatprep.subr.mxu0 0.0
        %3399 = vmatpush2.msra.mxu0 0.0
        %3400 = vmatprep.subr.mxu0 0.0
        %3401 = vmatpush2.msra.mxu0 0.0
        %3402 = vmatprep.subr.mxu0 0.0
        %3403 = vmatpush2.msra.mxu0 0.0
        %3404 = vmatprep.subr.mxu0 0.0
        %3405 = vmatpush2.msra.mxu0 0.0
        %3406 = vmatprep.subr.mxu0 0.0
        %3407 = vmatpush2.msra.mxu0 0.0
        %3408 = vmatprep.subr.mxu0 0.0
        %3409 = vmatpush2.msra.mxu0 0.0
        %3410 = vmatprep.subr.mxu0 0.0
        %3411 = vmatpush2.msra.mxu0 0.0
        %3412 = vmatprep.subr.mxu0 0.0
        %3413 = vmatpush2.msra.mxu0 0.0
        %3414 = vmatprep.subr.mxu0 0.0
        %3415 = vmatpush2.msra.mxu0 0.0
        %3416 = vmatprep.subr.mxu0 0.0
        %3417 = vmatpush2.msra.mxu0 0.0
        %3418 = vmatprep.mubr.f32.mxu0 0.0
        %3419 = vmatmul.mubr.f32.gmra.mxu0 %v3212
        %v3420 = vpop.f32.mrf.mxu0
        %v3421 = vadd.f32 %v3182, %v3420
        %v3422 = vpop.f32.mrf.mxu0
        %3423 = vdwg.mxu0
        %3424 = vmatprep.subr.mxu0 0.0
        %3425 = vmatpush1.msra.mxu0 0.0
        %3426 = vmatprep.subr.mxu0 0.0
        %3427 = vmatpush1.msra.mxu0 0.0
        %3428 = vmatprep.subr.mxu0 0.0
        %3429 = vmatpush1.msra.mxu0 0.0
        %3430 = vmatprep.subr.mxu0 0.0
        %3431 = vmatpush1.msra.mxu0 0.0
        %3432 = vmatprep.subr.mxu0 0.0
        %3433 = vmatpush1.msra.mxu0 0.0
        %3434 = vmatprep.subr.mxu0 0.0
        %3435 = vmatpush1.msra.mxu0 0.0
        %3436 = vmatprep.subr.mxu0 0.0
        %3437 = vmatpush1.msra.mxu0 0.0
        %3438 = vmatprep.subr.mxu0 0.0
        %3439 = vmatpush1.msra.mxu0 0.0
        %3440 = vmatprep.subr.mxu0 0.0
        %3441 = vmatpush1.msra.mxu0 0.0
        %3442 = vmatprep.subr.mxu0 0.0
        %3443 = vmatpush1.msra.mxu0 0.0
        %3444 = vmatprep.subr.mxu0 0.0
        %3445 = vmatpush1.msra.mxu0 0.0
        %3446 = vmatprep.subr.mxu0 0.0
        %3447 = vmatpush1.msra.mxu0 0.0
        %3448 = vmatprep.subr.mxu0 0.0
        %3449 = vmatpush1.msra.mxu0 %v3086
        %3450 = vmatprep.subr.mxu0 0.0
        %3451 = vmatpush1.msra.mxu0 %v3085
        %3452 = vmatprep.subr.mxu0 0.0
        %3453 = vmatpush1.msra.mxu0 %v3084
        %3454 = vmatprep.subr.mxu0 0.0
        %3455 = vmatpush1.msra.mxu0 %v3083
        %3456 = vmatprep.subr.mxu0 0.0
        %3457 = vmatpush2.msra.mxu0 0.0
        %3458 = vmatprep.subr.mxu0 0.0
        %3459 = vmatpush2.msra.mxu0 0.0
        %3460 = vmatprep.subr.mxu0 0.0
        %3461 = vmatpush2.msra.mxu0 0.0
        %3462 = vmatprep.subr.mxu0 0.0
        %3463 = vmatpush2.msra.mxu0 0.0
        %3464 = vmatprep.subr.mxu0 0.0
        %3465 = vmatpush2.msra.mxu0 0.0
        %3466 = vmatprep.subr.mxu0 0.0
        %3467 = vmatpush2.msra.mxu0 0.0
        %3468 = vmatprep.subr.mxu0 0.0
        %3469 = vmatpush2.msra.mxu0 0.0
        %3470 = vmatprep.subr.mxu0 0.0
        %3471 = vmatpush2.msra.mxu0 0.0
        %3472 = vmatprep.subr.mxu0 0.0
        %3473 = vmatpush2.msra.mxu0 0.0
        %3474 = vmatprep.subr.mxu0 0.0
        %3475 = vmatpush2.msra.mxu0 0.0
        %3476 = vmatprep.subr.mxu0 0.0
        %3477 = vmatpush2.msra.mxu0 0.0
        %3478 = vmatprep.subr.mxu0 0.0
        %3479 = vmatpush2.msra.mxu0 0.0
        %3480 = vmatprep.subr.mxu0 0.0
        %3481 = vmatpush2.msra.mxu0 0.0
        %3482 = vmatprep.subr.mxu0 0.0
        %3483 = vmatpush2.msra.mxu0 0.0
        %3484 = vmatprep.subr.mxu0 0.0
        %3485 = vmatpush2.msra.mxu0 0.0
        %3486 = vmatprep.subr.mxu0 0.0
        %3487 = vmatpush2.msra.mxu0 0.0
        %3488 = vmatprep.mubr.f32.mxu0 0.0
        %3489 = vmatmul.mubr.f32.gmra.mxu0 %v3212
        %v3490 = vpop.f32.mrf.mxu0
        %v3491 = vadd.f32 %v3186, %v3490
        %v3492 = vpop.f32.mrf.mxu0
        %3493 = vdwg.mxu0
        %3494 = vmatprep.subr.mxu0 0.0
        %3495 = vmatpush1.msra.mxu0 0.0
        %3496 = vmatprep.subr.mxu0 0.0
        %3497 = vmatpush1.msra.mxu0 0.0
        %3498 = vmatprep.subr.mxu0 0.0
        %3499 = vmatpush1.msra.mxu0 0.0
        %3500 = vmatprep.subr.mxu0 0.0
        %3501 = vmatpush1.msra.mxu0 0.0
        %3502 = vmatprep.subr.mxu0 0.0
        %3503 = vmatpush1.msra.mxu0 0.0
        %3504 = vmatprep.subr.mxu0 0.0
        %3505 = vmatpush1.msra.mxu0 0.0
        %3506 = vmatprep.subr.mxu0 0.0
        %3507 = vmatpush1.msra.mxu0 0.0
        %3508 = vmatprep.subr.mxu0 0.0
        %3509 = vmatpush1.msra.mxu0 0.0
        %3510 = vmatprep.subr.mxu0 0.0
        %3511 = vmatpush1.msra.mxu0 0.0
        %3512 = vmatprep.subr.mxu0 0.0
        %3513 = vmatpush1.msra.mxu0 0.0
        %3514 = vmatprep.subr.mxu0 0.0
        %3515 = vmatpush1.msra.mxu0 0.0
        %3516 = vmatprep.subr.mxu0 0.0
        %3517 = vmatpush1.msra.mxu0 0.0
        %3518 = vmatprep.subr.mxu0 0.0
        %3519 = vmatpush1.msra.mxu0 %v3090
        %3520 = vmatprep.subr.mxu0 0.0
        %3521 = vmatpush1.msra.mxu0 %v3089
        %3522 = vmatprep.subr.mxu0 0.0
        %3523 = vmatpush1.msra.mxu0 %v3088
        %3524 = vmatprep.subr.mxu0 0.0
        %3525 = vmatpush1.msra.mxu0 %v3087
        %3526 = vmatprep.subr.mxu0 0.0
        %3527 = vmatpush2.msra.mxu0 0.0
        %3528 = vmatprep.subr.mxu0 0.0
        %3529 = vmatpush2.msra.mxu0 0.0
        %3530 = vmatprep.subr.mxu0 0.0
        %3531 = vmatpush2.msra.mxu0 0.0
        %3532 = vmatprep.subr.mxu0 0.0
        %3533 = vmatpush2.msra.mxu0 0.0
        %3534 = vmatprep.subr.mxu0 0.0
        %3535 = vmatpush2.msra.mxu0 0.0
        %3536 = vmatprep.subr.mxu0 0.0
        %3537 = vmatpush2.msra.mxu0 0.0
        %3538 = vmatprep.subr.mxu0 0.0
        %3539 = vmatpush2.msra.mxu0 0.0
        %3540 = vmatprep.subr.mxu0 0.0
        %3541 = vmatpush2.msra.mxu0 0.0
        %3542 = vmatprep.subr.mxu0 0.0
        %3543 = vmatpush2.msra.mxu0 0.0
        %3544 = vmatprep.subr.mxu0 0.0
        %3545 = vmatpush2.msra.mxu0 0.0
        %3546 = vmatprep.subr.mxu0 0.0
        %3547 = vmatpush2.msra.mxu0 0.0
        %3548 = vmatprep.subr.mxu0 0.0
        %3549 = vmatpush2.msra.mxu0 0.0
        %3550 = vmatprep.subr.mxu0 0.0
        %3551 = vmatpush2.msra.mxu0 0.0
        %3552 = vmatprep.subr.mxu0 0.0
        %3553 = vmatpush2.msra.mxu0 0.0
        %3554 = vmatprep.subr.mxu0 0.0
        %3555 = vmatpush2.msra.mxu0 0.0
        %3556 = vmatprep.subr.mxu0 0.0
        %3557 = vmatpush2.msra.mxu0 0.0
        %3558 = vmatprep.mubr.f32.mxu0 0.0
        %3559 = vmatmul.mubr.f32.gmra.mxu0 %v3212
        %v3560 = vpop.f32.mrf.mxu0
        %v3561 = vadd.f32 %v3190, %v3560
        %v3562 = vpop.f32.mrf.mxu0
        %3563 = vdwg.mxu0
        %3564 = vmatprep.subr.mxu0 0.0
        %3565 = vmatpush1.msra.mxu0 0.0
        %3566 = vmatprep.subr.mxu0 0.0
        %3567 = vmatpush1.msra.mxu0 0.0
        %3568 = vmatprep.subr.mxu0 0.0
        %3569 = vmatpush1.msra.mxu0 0.0
        %3570 = vmatprep.subr.mxu0 0.0
        %3571 = vmatpush1.msra.mxu0 0.0
        %3572 = vmatprep.subr.mxu0 0.0
        %3573 = vmatpush1.msra.mxu0 0.0
        %3574 = vmatprep.subr.mxu0 0.0
        %3575 = vmatpush1.msra.mxu0 0.0
        %3576 = vmatprep.subr.mxu0 0.0
        %3577 = vmatpush1.msra.mxu0 0.0
        %3578 = vmatprep.subr.mxu0 0.0
        %3579 = vmatpush1.msra.mxu0 0.0
        %3580 = vmatprep.subr.mxu0 0.0
        %3581 = vmatpush1.msra.mxu0 0.0
        %3582 = vmatprep.subr.mxu0 0.0
        %3583 = vmatpush1.msra.mxu0 0.0
        %3584 = vmatprep.subr.mxu0 0.0
        %3585 = vmatpush1.msra.mxu0 0.0
        %3586 = vmatprep.subr.mxu0 0.0
        %3587 = vmatpush1.msra.mxu0 0.0
        %3588 = vmatprep.subr.mxu0 0.0
        %3589 = vmatpush1.msra.mxu0 %v3094
        %3590 = vmatprep.subr.mxu0 0.0
        %3591 = vmatpush1.msra.mxu0 %v3093
        %3592 = vmatprep.subr.mxu0 0.0
        %3593 = vmatpush1.msra.mxu0 %v3092
        %3594 = vmatprep.subr.mxu0 0.0
        %3595 = vmatpush1.msra.mxu0 %v3091
        %3596 = vmatprep.subr.mxu0 0.0
        %3597 = vmatpush2.msra.mxu0 0.0
        %3598 = vmatprep.subr.mxu0 0.0
        %3599 = vmatpush2.msra.mxu0 0.0
        %3600 = vmatprep.subr.mxu0 0.0
        %3601 = vmatpush2.msra.mxu0 0.0
        %3602 = vmatprep.subr.mxu0 0.0
        %3603 = vmatpush2.msra.mxu0 0.0
        %3604 = vmatprep.subr.mxu0 0.0
        %3605 = vmatpush2.msra.mxu0 0.0
        %3606 = vmatprep.subr.mxu0 0.0
        %3607 = vmatpush2.msra.mxu0 0.0
        %3608 = vmatprep.subr.mxu0 0.0
        %3609 = vmatpush2.msra.mxu0 0.0
        %3610 = vmatprep.subr.mxu0 0.0
        %3611 = vmatpush2.msra.mxu0 0.0
        %3612 = vmatprep.subr.mxu0 0.0
        %3613 = vmatpush2.msra.mxu0 0.0
        %3614 = vmatprep.subr.mxu0 0.0
        %3615 = vmatpush2.msra.mxu0 0.0
        %3616 = vmatprep.subr.mxu0 0.0
        %3617 = vmatpush2.msra.mxu0 0.0
        %3618 = vmatprep.subr.mxu0 0.0
        %3619 = vmatpush2.msra.mxu0 0.0
        %3620 = vmatprep.subr.mxu0 0.0
        %3621 = vmatpush2.msra.mxu0 0.0
        %3622 = vmatprep.subr.mxu0 0.0
        %3623 = vmatpush2.msra.mxu0 0.0
        %3624 = vmatprep.subr.mxu0 0.0
        %3625 = vmatpush2.msra.mxu0 0.0
        %3626 = vmatprep.subr.mxu0 0.0
        %3627 = vmatpush2.msra.mxu0 0.0
        %3628 = vmatprep.mubr.f32.mxu0 0.0
        %3629 = vmatmul.mubr.f32.gmra.mxu0 %v3212
        %v3630 = vpop.f32.mrf.mxu0
        %v3631 = vadd.f32 %v3194, %v3630
        %v3632 = vpop.f32.mrf.mxu0
        %3633 = vdwg.mxu0
        %3634 = vmatprep.subr.mxu0 0.0
        %3635 = vmatpush1.msra.mxu0 0.0
        %3636 = vmatprep.subr.mxu0 0.0
        %3637 = vmatpush1.msra.mxu0 0.0
        %3638 = vmatprep.subr.mxu0 0.0
        %3639 = vmatpush1.msra.mxu0 0.0
        %3640 = vmatprep.subr.mxu0 0.0
        %3641 = vmatpush1.msra.mxu0 0.0
        %3642 = vmatprep.subr.mxu0 0.0
        %3643 = vmatpush1.msra.mxu0 0.0
        %3644 = vmatprep.subr.mxu0 0.0
        %3645 = vmatpush1.msra.mxu0 0.0
        %3646 = vmatprep.subr.mxu0 0.0
        %3647 = vmatpush1.msra.mxu0 0.0
        %3648 = vmatprep.subr.mxu0 0.0
        %3649 = vmatpush1.msra.mxu0 0.0
        %3650 = vmatprep.subr.mxu0 0.0
        %3651 = vmatpush1.msra.mxu0 0.0
        %3652 = vmatprep.subr.mxu0 0.0
        %3653 = vmatpush1.msra.mxu0 0.0
        %3654 = vmatprep.subr.mxu0 0.0
        %3655 = vmatpush1.msra.mxu0 0.0
        %3656 = vmatprep.subr.mxu0 0.0
        %3657 = vmatpush1.msra.mxu0 0.0
        %3658 = vmatprep.subr.mxu0 0.0
        %3659 = vmatpush1.msra.mxu0 %v3098
        %3660 = vmatprep.subr.mxu0 0.0
        %3661 = vmatpush1.msra.mxu0 %v3097
        %3662 = vmatprep.subr.mxu0 0.0
        %3663 = vmatpush1.msra.mxu0 %v3096
        %3664 = vmatprep.subr.mxu0 0.0
        %3665 = vmatpush1.msra.mxu0 %v3095
        %3666 = vmatprep.subr.mxu0 0.0
        %3667 = vmatpush2.msra.mxu0 0.0
        %3668 = vmatprep.subr.mxu0 0.0
        %3669 = vmatpush2.msra.mxu0 0.0
        %3670 = vmatprep.subr.mxu0 0.0
        %3671 = vmatpush2.msra.mxu0 0.0
        %3672 = vmatprep.subr.mxu0 0.0
        %3673 = vmatpush2.msra.mxu0 0.0
        %3674 = vmatprep.subr.mxu0 0.0
        %3675 = vmatpush2.msra.mxu0 0.0
        %3676 = vmatprep.subr.mxu0 0.0
        %3677 = vmatpush2.msra.mxu0 0.0
        %3678 = vmatprep.subr.mxu0 0.0
        %3679 = vmatpush2.msra.mxu0 0.0
        %3680 = vmatprep.subr.mxu0 0.0
        %3681 = vmatpush2.msra.mxu0 0.0
        %3682 = vmatprep.subr.mxu0 0.0
        %3683 = vmatpush2.msra.mxu0 0.0
        %3684 = vmatprep.subr.mxu0 0.0
        %3685 = vmatpush2.msra.mxu0 0.0
        %3686 = vmatprep.subr.mxu0 0.0
        %3687 = vmatpush2.msra.mxu0 0.0
        %3688 = vmatprep.subr.mxu0 0.0
        %3689 = vmatpush2.msra.mxu0 0.0
        %3690 = vmatprep.subr.mxu0 0.0
        %3691 = vmatpush2.msra.mxu0 0.0
        %3692 = vmatprep.subr.mxu0 0.0
        %3693 = vmatpush2.msra.mxu0 0.0
        %3694 = vmatprep.subr.mxu0 0.0
        %3695 = vmatpush2.msra.mxu0 0.0
        %3696 = vmatprep.subr.mxu0 0.0
        %3697 = vmatpush2.msra.mxu0 0.0
        %3698 = vmatprep.mubr.f32.mxu0 0.0
        %3699 = vmatmul.mubr.f32.gmra.mxu0 %v3212
        %v3700 = vpop.f32.mrf.mxu0
        %v3701 = vadd.f32 %v3198, %v3700
        %v3702 = vpop.f32.mrf.mxu0
        %3703 = vdwg.mxu0
        %3704 = vmatprep.subr.mxu0 0.0
        %3705 = vmatpush1.msra.mxu0 0.0
        %3706 = vmatprep.subr.mxu0 0.0
        %3707 = vmatpush1.msra.mxu0 0.0
        %3708 = vmatprep.subr.mxu0 0.0
        %3709 = vmatpush1.msra.mxu0 0.0
        %3710 = vmatprep.subr.mxu0 0.0
        %3711 = vmatpush1.msra.mxu0 0.0
        %3712 = vmatprep.subr.mxu0 0.0
        %3713 = vmatpush1.msra.mxu0 0.0
        %3714 = vmatprep.subr.mxu0 0.0
        %3715 = vmatpush1.msra.mxu0 0.0
        %3716 = vmatprep.subr.mxu0 0.0
        %3717 = vmatpush1.msra.mxu0 0.0
        %3718 = vmatprep.subr.mxu0 0.0
        %3719 = vmatpush1.msra.mxu0 0.0
        %3720 = vmatprep.subr.mxu0 0.0
        %3721 = vmatpush1.msra.mxu0 0.0
        %3722 = vmatprep.subr.mxu0 0.0
        %3723 = vmatpush1.msra.mxu0 0.0
        %3724 = vmatprep.subr.mxu0 0.0
        %3725 = vmatpush1.msra.mxu0 0.0
        %3726 = vmatprep.subr.mxu0 0.0
        %3727 = vmatpush1.msra.mxu0 0.0
        %3728 = vmatprep.subr.mxu0 0.0
        %3729 = vmatpush1.msra.mxu0 %v3102
        %3730 = vmatprep.subr.mxu0 0.0
        %3731 = vmatpush1.msra.mxu0 %v3101
        %3732 = vmatprep.subr.mxu0 0.0
        %3733 = vmatpush1.msra.mxu0 %v3100
        %3734 = vmatprep.subr.mxu0 0.0
        %3735 = vmatpush1.msra.mxu0 %v3099
        %3736 = vmatprep.subr.mxu0 0.0
        %3737 = vmatpush2.msra.mxu0 0.0
        %3738 = vmatprep.subr.mxu0 0.0
        %3739 = vmatpush2.msra.mxu0 0.0
        %3740 = vmatprep.subr.mxu0 0.0
        %3741 = vmatpush2.msra.mxu0 0.0
        %3742 = vmatprep.subr.mxu0 0.0
        %3743 = vmatpush2.msra.mxu0 0.0
        %3744 = vmatprep.subr.mxu0 0.0
        %3745 = vmatpush2.msra.mxu0 0.0
        %3746 = vmatprep.subr.mxu0 0.0
        %3747 = vmatpush2.msra.mxu0 0.0
        %3748 = vmatprep.subr.mxu0 0.0
        %3749 = vmatpush2.msra.mxu0 0.0
        %3750 = vmatprep.subr.mxu0 0.0
        %3751 = vmatpush2.msra.mxu0 0.0
        %3752 = vmatprep.subr.mxu0 0.0
        %3753 = vmatpush2.msra.mxu0 0.0
        %3754 = vmatprep.subr.mxu0 0.0
        %3755 = vmatpush2.msra.mxu0 0.0
        %3756 = vmatprep.subr.mxu0 0.0
        %3757 = vmatpush2.msra.mxu0 0.0
        %3758 = vmatprep.subr.mxu0 0.0
        %3759 = vmatpush2.msra.mxu0 0.0
        %3760 = vmatprep.subr.mxu0 0.0
        %3761 = vmatpush2.msra.mxu0 0.0
        %3762 = vmatprep.subr.mxu0 0.0
        %3763 = vmatpush2.msra.mxu0 0.0
        %3764 = vmatprep.subr.mxu0 0.0
        %3765 = vmatpush2.msra.mxu0 0.0
        %3766 = vmatprep.subr.mxu0 0.0
        %3767 = vmatpush2.msra.mxu0 0.0
        %3768 = vmatprep.mubr.f32.mxu0 0.0
        %3769 = vmatmul.mubr.f32.gmra.mxu0 %v3212
        %v3770 = vpop.f32.mrf.mxu0
        %v3771 = vadd.f32 %v3202, %v3770
        %v3772 = vpop.f32.mrf.mxu0
        %3773 = vdwg.mxu0
        %3775 = vrot.lane.b32.xlu0 %v3281, 124
        %v3776 = vpop.permute.xlu0 %3775
        %v3777 = vsel %vm1004, %v3281, 0
        %v3779 = vsel %vm1004, %v3776, 0
        %3781 = vmatprep.subr.mxu0 0.0
        %3782 = vmatpush1.xpose.msra.mxu0 0.0
        %3783 = vmatprep.subr.mxu0 0.0
        %3784 = vmatpush1.xpose.msra.mxu0 0.0
        %3785 = vmatprep.subr.mxu0 0.0
        %3786 = vmatpush1.xpose.msra.mxu0 0.0
        %3787 = vmatprep.subr.mxu0 0.0
        %3788 = vmatpush1.xpose.msra.mxu0 0.0
        %3789 = vmatprep.subr.mxu0 0.0
        %3790 = vmatpush1.xpose.msra.mxu0 0.0
        %3791 = vmatprep.subr.mxu0 0.0
        %3792 = vmatpush1.xpose.msra.mxu0 0.0
        %3793 = vmatprep.subr.mxu0 0.0
        %3794 = vmatpush1.xpose.msra.mxu0 0.0
        %3795 = vmatprep.subr.mxu0 0.0
        %3796 = vmatpush1.xpose.msra.mxu0 0.0
        %3797 = vmatprep.subr.mxu0 0.0
        %3798 = vmatpush1.xpose.msra.mxu0 0.0
        %3799 = vmatprep.subr.mxu0 0.0
        %3800 = vmatpush1.xpose.msra.mxu0 0.0
        %3801 = vmatprep.subr.mxu0 0.0
        %3802 = vmatpush1.xpose.msra.mxu0 0.0
        %3803 = vmatprep.subr.mxu0 0.0
        %3804 = vmatpush1.xpose.msra.mxu0 0.0
        %3805 = vmatprep.subr.mxu0 0.0
        %3806 = vmatpush1.xpose.msra.mxu0 0.0
        %3807 = vmatprep.subr.mxu0 0.0
        %3808 = vmatpush1.xpose.msra.mxu0 0.0
        %3809 = vmatprep.subr.mxu0 0.0
        %3810 = vmatpush1.xpose.msra.mxu0 0.0
        %3811 = vmatprep.subr.mxu0 0.0
        %3812 = vmatpush1.xpose.msra.mxu0 %v3779
        %3813 = vmatprep.subr.mxu0 0.0
        %3814 = vmatpush2.xpose.msra.mxu0 0.0
        %3815 = vmatprep.subr.mxu0 0.0
        %3816 = vmatpush2.xpose.msra.mxu0 0.0
        %3817 = vmatprep.subr.mxu0 0.0
        %3818 = vmatpush2.xpose.msra.mxu0 0.0
        %3819 = vmatprep.subr.mxu0 0.0
        %3820 = vmatpush2.xpose.msra.mxu0 0.0
        %3821 = vmatprep.subr.mxu0 0.0
        %3822 = vmatpush2.xpose.msra.mxu0 0.0
        %3823 = vmatprep.subr.mxu0 0.0
        %3824 = vmatpush2.xpose.msra.mxu0 0.0
        %3825 = vmatprep.subr.mxu0 0.0
        %3826 = vmatpush2.xpose.msra.mxu0 0.0
        %3827 = vmatprep.subr.mxu0 0.0
        %3828 = vmatpush2.xpose.msra.mxu0 0.0
        %3829 = vmatprep.subr.mxu0 0.0
        %3830 = vmatpush2.xpose.msra.mxu0 0.0
        %3831 = vmatprep.subr.mxu0 0.0
        %3832 = vmatpush2.xpose.msra.mxu0 0.0
        %3833 = vmatprep.subr.mxu0 0.0
        %3834 = vmatpush2.xpose.msra.mxu0 0.0
        %3835 = vmatprep.subr.mxu0 0.0
        %3836 = vmatpush2.xpose.msra.mxu0 0.0
        %3837 = vmatprep.subr.mxu0 0.0
        %3838 = vmatpush2.xpose.msra.mxu0 0.0
        %3839 = vmatprep.subr.mxu0 0.0
        %3840 = vmatpush2.xpose.msra.mxu0 0.0
        %3841 = vmatprep.subr.mxu0 0.0
        %3842 = vmatpush2.xpose.msra.mxu0 0.0
        %3843 = vmatprep.subr.mxu0 0.0
        %3844 = vmatpush2.xpose.msra.mxu0 0.0
        %3845 = vmatprep.mubr.f32.mxu0 0.0
        %3846 = vmatmul.mubr.f32.gmra.mxu0 %v3777
        %v3847 = vpop.f32.mrf.mxu0
        %v3848 = vadd.f32 0.0, %v3847
        %v3849 = vpop.f32.mrf.mxu0
        %3850 = vdwg.mxu0
        %3852 = vrot.lane.b32.xlu0 %v3351, 124
        %v3853 = vpop.permute.xlu0 %3852
        %v3854 = vsel %vm1004, %v3351, 0
        %v3856 = vsel %vm1004, %v3853, 0
        %3858 = vmatprep.subr.mxu0 0.0
        %3859 = vmatpush1.xpose.msra.mxu0 0.0
        %3860 = vmatprep.subr.mxu0 0.0
        %3861 = vmatpush1.xpose.msra.mxu0 0.0
        %3862 = vmatprep.subr.mxu0 0.0
        %3863 = vmatpush1.xpose.msra.mxu0 0.0
        %3864 = vmatprep.subr.mxu0 0.0
        %3865 = vmatpush1.xpose.msra.mxu0 0.0
        %3866 = vmatprep.subr.mxu0 0.0
        %3867 = vmatpush1.xpose.msra.mxu0 0.0
        %3868 = vmatprep.subr.mxu0 0.0
        %3869 = vmatpush1.xpose.msra.mxu0 0.0
        %3870 = vmatprep.subr.mxu0 0.0
        %3871 = vmatpush1.xpose.msra.mxu0 0.0
        %3872 = vmatprep.subr.mxu0 0.0
        %3873 = vmatpush1.xpose.msra.mxu0 0.0
        %3874 = vmatprep.subr.mxu0 0.0
        %3875 = vmatpush1.xpose.msra.mxu0 0.0
        %3876 = vmatprep.subr.mxu0 0.0
        %3877 = vmatpush1.xpose.msra.mxu0 0.0
        %3878 = vmatprep.subr.mxu0 0.0
        %3879 = vmatpush1.xpose.msra.mxu0 0.0
        %3880 = vmatprep.subr.mxu0 0.0
        %3881 = vmatpush1.xpose.msra.mxu0 0.0
        %3882 = vmatprep.subr.mxu0 0.0
        %3883 = vmatpush1.xpose.msra.mxu0 0.0
        %3884 = vmatprep.subr.mxu0 0.0
        %3885 = vmatpush1.xpose.msra.mxu0 0.0
        %3886 = vmatprep.subr.mxu0 0.0
        %3887 = vmatpush1.xpose.msra.mxu0 0.0
        %3888 = vmatprep.subr.mxu0 0.0
        %3889 = vmatpush1.xpose.msra.mxu0 %v3856
        %3890 = vmatprep.subr.mxu0 0.0
        %3891 = vmatpush2.xpose.msra.mxu0 0.0
        %3892 = vmatprep.subr.mxu0 0.0
        %3893 = vmatpush2.xpose.msra.mxu0 0.0
        %3894 = vmatprep.subr.mxu0 0.0
        %3895 = vmatpush2.xpose.msra.mxu0 0.0
        %3896 = vmatprep.subr.mxu0 0.0
        %3897 = vmatpush2.xpose.msra.mxu0 0.0
        %3898 = vmatprep.subr.mxu0 0.0
        %3899 = vmatpush2.xpose.msra.mxu0 0.0
        %3900 = vmatprep.subr.mxu0 0.0
        %3901 = vmatpush2.xpose.msra.mxu0 0.0
        %3902 = vmatprep.subr.mxu0 0.0
        %3903 = vmatpush2.xpose.msra.mxu0 0.0
        %3904 = vmatprep.subr.mxu0 0.0
        %3905 = vmatpush2.xpose.msra.mxu0 0.0
        %3906 = vmatprep.subr.mxu0 0.0
        %3907 = vmatpush2.xpose.msra.mxu0 0.0
        %3908 = vmatprep.subr.mxu0 0.0
        %3909 = vmatpush2.xpose.msra.mxu0 0.0
        %3910 = vmatprep.subr.mxu0 0.0
        %3911 = vmatpush2.xpose.msra.mxu0 0.0
        %3912 = vmatprep.subr.mxu0 0.0
        %3913 = vmatpush2.xpose.msra.mxu0 0.0
        %3914 = vmatprep.subr.mxu0 0.0
        %3915 = vmatpush2.xpose.msra.mxu0 0.0
        %3916 = vmatprep.subr.mxu0 0.0
        %3917 = vmatpush2.xpose.msra.mxu0 0.0
        %3918 = vmatprep.subr.mxu0 0.0
        %3919 = vmatpush2.xpose.msra.mxu0 0.0
        %3920 = vmatprep.subr.mxu0 0.0
        %3921 = vmatpush2.xpose.msra.mxu0 0.0
        %3922 = vmatprep.mubr.f32.mxu0 0.0
        %3923 = vmatmul.mubr.f32.gmra.mxu0 %v3854
        %v3924 = vpop.f32.mrf.mxu0
        %v3925 = vadd.f32 0.0, %v3924
        %v3926 = vpop.f32.mrf.mxu0
        %3927 = vdwg.mxu0
        %3929 = vrot.lane.b32.xlu0 %v3421, 124
        %v3930 = vpop.permute.xlu0 %3929
        %v3931 = vsel %vm1004, %v3421, 0
        %v3933 = vsel %vm1004, %v3930, 0
        %3935 = vmatprep.subr.mxu0 0.0
        %3936 = vmatpush1.xpose.msra.mxu0 0.0
        %3937 = vmatprep.subr.mxu0 0.0
        %3938 = vmatpush1.xpose.msra.mxu0 0.0
        %3939 = vmatprep.subr.mxu0 0.0
        %3940 = vmatpush1.xpose.msra.mxu0 0.0
        %3941 = vmatprep.subr.mxu0 0.0
        %3942 = vmatpush1.xpose.msra.mxu0 0.0
        %3943 = vmatprep.subr.mxu0 0.0
        %3944 = vmatpush1.xpose.msra.mxu0 0.0
        %3945 = vmatprep.subr.mxu0 0.0
        %3946 = vmatpush1.xpose.msra.mxu0 0.0
        %3947 = vmatprep.subr.mxu0 0.0
        %3948 = vmatpush1.xpose.msra.mxu0 0.0
        %3949 = vmatprep.subr.mxu0 0.0
        %3950 = vmatpush1.xpose.msra.mxu0 0.0
        %3951 = vmatprep.subr.mxu0 0.0
        %3952 = vmatpush1.xpose.msra.mxu0 0.0
        %3953 = vmatprep.subr.mxu0 0.0
        %3954 = vmatpush1.xpose.msra.mxu0 0.0
        %3955 = vmatprep.subr.mxu0 0.0
        %3956 = vmatpush1.xpose.msra.mxu0 0.0
        %3957 = vmatprep.subr.mxu0 0.0
        %3958 = vmatpush1.xpose.msra.mxu0 0.0
        %3959 = vmatprep.subr.mxu0 0.0
        %3960 = vmatpush1.xpose.msra.mxu0 0.0
        %3961 = vmatprep.subr.mxu0 0.0
        %3962 = vmatpush1.xpose.msra.mxu0 0.0
        %3963 = vmatprep.subr.mxu0 0.0
        %3964 = vmatpush1.xpose.msra.mxu0 0.0
        %3965 = vmatprep.subr.mxu0 0.0
        %3966 = vmatpush1.xpose.msra.mxu0 %v3933
        %3967 = vmatprep.subr.mxu0 0.0
        %3968 = vmatpush2.xpose.msra.mxu0 0.0
        %3969 = vmatprep.subr.mxu0 0.0
        %3970 = vmatpush2.xpose.msra.mxu0 0.0
        %3971 = vmatprep.subr.mxu0 0.0
        %3972 = vmatpush2.xpose.msra.mxu0 0.0
        %3973 = vmatprep.subr.mxu0 0.0
        %3974 = vmatpush2.xpose.msra.mxu0 0.0
        %3975 = vmatprep.subr.mxu0 0.0
        %3976 = vmatpush2.xpose.msra.mxu0 0.0
        %3977 = vmatprep.subr.mxu0 0.0
        %3978 = vmatpush2.xpose.msra.mxu0 0.0
        %3979 = vmatprep.subr.mxu0 0.0
        %3980 = vmatpush2.xpose.msra.mxu0 0.0
        %3981 = vmatprep.subr.mxu0 0.0
        %3982 = vmatpush2.xpose.msra.mxu0 0.0
        %3983 = vmatprep.subr.mxu0 0.0
        %3984 = vmatpush2.xpose.msra.mxu0 0.0
        %3985 = vmatprep.subr.mxu0 0.0
        %3986 = vmatpush2.xpose.msra.mxu0 0.0
        %3987 = vmatprep.subr.mxu0 0.0
        %3988 = vmatpush2.xpose.msra.mxu0 0.0
        %3989 = vmatprep.subr.mxu0 0.0
        %3990 = vmatpush2.xpose.msra.mxu0 0.0
        %3991 = vmatprep.subr.mxu0 0.0
        %3992 = vmatpush2.xpose.msra.mxu0 0.0
        %3993 = vmatprep.subr.mxu0 0.0
        %3994 = vmatpush2.xpose.msra.mxu0 0.0
        %3995 = vmatprep.subr.mxu0 0.0
        %3996 = vmatpush2.xpose.msra.mxu0 0.0
        %3997 = vmatprep.subr.mxu0 0.0
        %3998 = vmatpush2.xpose.msra.mxu0 0.0
        %3999 = vmatprep.mubr.f32.mxu0 0.0
        %4000 = vmatmul.mubr.f32.gmra.mxu0 %v3931
        %v4001 = vpop.f32.mrf.mxu0
        %v4002 = vadd.f32 0.0, %v4001
        %v4003 = vpop.f32.mrf.mxu0
        %4004 = vdwg.mxu0
        %4006 = vrot.lane.b32.xlu0 %v3491, 124
        %v4007 = vpop.permute.xlu0 %4006
        %v4008 = vsel %vm1004, %v3491, 0
        %v4010 = vsel %vm1004, %v4007, 0
        %4012 = vmatprep.subr.mxu0 0.0
        %4013 = vmatpush1.xpose.msra.mxu0 0.0
        %4014 = vmatprep.subr.mxu0 0.0
        %4015 = vmatpush1.xpose.msra.mxu0 0.0
        %4016 = vmatprep.subr.mxu0 0.0
        %4017 = vmatpush1.xpose.msra.mxu0 0.0
        %4018 = vmatprep.subr.mxu0 0.0
        %4019 = vmatpush1.xpose.msra.mxu0 0.0
        %4020 = vmatprep.subr.mxu0 0.0
        %4021 = vmatpush1.xpose.msra.mxu0 0.0
        %4022 = vmatprep.subr.mxu0 0.0
        %4023 = vmatpush1.xpose.msra.mxu0 0.0
        %4024 = vmatprep.subr.mxu0 0.0
        %4025 = vmatpush1.xpose.msra.mxu0 0.0
        %4026 = vmatprep.subr.mxu0 0.0
        %4027 = vmatpush1.xpose.msra.mxu0 0.0
        %4028 = vmatprep.subr.mxu0 0.0
        %4029 = vmatpush1.xpose.msra.mxu0 0.0
        %4030 = vmatprep.subr.mxu0 0.0
        %4031 = vmatpush1.xpose.msra.mxu0 0.0
        %4032 = vmatprep.subr.mxu0 0.0
        %4033 = vmatpush1.xpose.msra.mxu0 0.0
        %4034 = vmatprep.subr.mxu0 0.0
        %4035 = vmatpush1.xpose.msra.mxu0 0.0
        %4036 = vmatprep.subr.mxu0 0.0
        %4037 = vmatpush1.xpose.msra.mxu0 0.0
        %4038 = vmatprep.subr.mxu0 0.0
        %4039 = vmatpush1.xpose.msra.mxu0 0.0
        %4040 = vmatprep.subr.mxu0 0.0
        %4041 = vmatpush1.xpose.msra.mxu0 0.0
        %4042 = vmatprep.subr.mxu0 0.0
        %4043 = vmatpush1.xpose.msra.mxu0 %v4010
        %4044 = vmatprep.subr.mxu0 0.0
        %4045 = vmatpush2.xpose.msra.mxu0 0.0
        %4046 = vmatprep.subr.mxu0 0.0
        %4047 = vmatpush2.xpose.msra.mxu0 0.0
        %4048 = vmatprep.subr.mxu0 0.0
        %4049 = vmatpush2.xpose.msra.mxu0 0.0
        %4050 = vmatprep.subr.mxu0 0.0
        %4051 = vmatpush2.xpose.msra.mxu0 0.0
        %4052 = vmatprep.subr.mxu0 0.0
        %4053 = vmatpush2.xpose.msra.mxu0 0.0
        %4054 = vmatprep.subr.mxu0 0.0
        %4055 = vmatpush2.xpose.msra.mxu0 0.0
        %4056 = vmatprep.subr.mxu0 0.0
        %4057 = vmatpush2.xpose.msra.mxu0 0.0
        %4058 = vmatprep.subr.mxu0 0.0
        %4059 = vmatpush2.xpose.msra.mxu0 0.0
        %4060 = vmatprep.subr.mxu0 0.0
        %4061 = vmatpush2.xpose.msra.mxu0 0.0
        %4062 = vmatprep.subr.mxu0 0.0
        %4063 = vmatpush2.xpose.msra.mxu0 0.0
        %4064 = vmatprep.subr.mxu0 0.0
        %4065 = vmatpush2.xpose.msra.mxu0 0.0
        %4066 = vmatprep.subr.mxu0 0.0
        %4067 = vmatpush2.xpose.msra.mxu0 0.0
        %4068 = vmatprep.subr.mxu0 0.0
        %4069 = vmatpush2.xpose.msra.mxu0 0.0
        %4070 = vmatprep.subr.mxu0 0.0
        %4071 = vmatpush2.xpose.msra.mxu0 0.0
        %4072 = vmatprep.subr.mxu0 0.0
        %4073 = vmatpush2.xpose.msra.mxu0 0.0
        %4074 = vmatprep.subr.mxu0 0.0
        %4075 = vmatpush2.xpose.msra.mxu0 0.0
        %4076 = vmatprep.mubr.f32.mxu0 0.0
        %4077 = vmatmul.mubr.f32.gmra.mxu0 %v4008
        %v4078 = vpop.f32.mrf.mxu0
        %v4079 = vadd.f32 0.0, %v4078
        %v4080 = vpop.f32.mrf.mxu0
        %4081 = vdwg.mxu0
        %4083 = vrot.lane.b32.xlu0 %v3561, 124
        %v4084 = vpop.permute.xlu0 %4083
        %v4085 = vsel %vm1004, %v3561, 0
        %v4087 = vsel %vm1004, %v4084, 0
        %4089 = vmatprep.subr.mxu0 0.0
        %4090 = vmatpush1.xpose.msra.mxu0 0.0
        %4091 = vmatprep.subr.mxu0 0.0
        %4092 = vmatpush1.xpose.msra.mxu0 0.0
        %4093 = vmatprep.subr.mxu0 0.0
        %4094 = vmatpush1.xpose.msra.mxu0 0.0
        %4095 = vmatprep.subr.mxu0 0.0
        %4096 = vmatpush1.xpose.msra.mxu0 0.0
        %4097 = vmatprep.subr.mxu0 0.0
        %4098 = vmatpush1.xpose.msra.mxu0 0.0
        %4099 = vmatprep.subr.mxu0 0.0
        %4100 = vmatpush1.xpose.msra.mxu0 0.0
        %4101 = vmatprep.subr.mxu0 0.0
        %4102 = vmatpush1.xpose.msra.mxu0 0.0
        %4103 = vmatprep.subr.mxu0 0.0
        %4104 = vmatpush1.xpose.msra.mxu0 0.0
        %4105 = vmatprep.subr.mxu0 0.0
        %4106 = vmatpush1.xpose.msra.mxu0 0.0
        %4107 = vmatprep.subr.mxu0 0.0
        %4108 = vmatpush1.xpose.msra.mxu0 0.0
        %4109 = vmatprep.subr.mxu0 0.0
        %4110 = vmatpush1.xpose.msra.mxu0 0.0
        %4111 = vmatprep.subr.mxu0 0.0
        %4112 = vmatpush1.xpose.msra.mxu0 0.0
        %4113 = vmatprep.subr.mxu0 0.0
        %4114 = vmatpush1.xpose.msra.mxu0 0.0
        %4115 = vmatprep.subr.mxu0 0.0
        %4116 = vmatpush1.xpose.msra.mxu0 0.0
        %4117 = vmatprep.subr.mxu0 0.0
        %4118 = vmatpush1.xpose.msra.mxu0 0.0
        %4119 = vmatprep.subr.mxu0 0.0
        %4120 = vmatpush1.xpose.msra.mxu0 %v4087
        %4121 = vmatprep.subr.mxu0 0.0
        %4122 = vmatpush2.xpose.msra.mxu0 0.0
        %4123 = vmatprep.subr.mxu0 0.0
        %4124 = vmatpush2.xpose.msra.mxu0 0.0
        %4125 = vmatprep.subr.mxu0 0.0
        %4126 = vmatpush2.xpose.msra.mxu0 0.0
        %4127 = vmatprep.subr.mxu0 0.0
        %4128 = vmatpush2.xpose.msra.mxu0 0.0
        %4129 = vmatprep.subr.mxu0 0.0
        %4130 = vmatpush2.xpose.msra.mxu0 0.0
        %4131 = vmatprep.subr.mxu0 0.0
        %4132 = vmatpush2.xpose.msra.mxu0 0.0
        %4133 = vmatprep.subr.mxu0 0.0
        %4134 = vmatpush2.xpose.msra.mxu0 0.0
        %4135 = vmatprep.subr.mxu0 0.0
        %4136 = vmatpush2.xpose.msra.mxu0 0.0
        %4137 = vmatprep.subr.mxu0 0.0
        %4138 = vmatpush2.xpose.msra.mxu0 0.0
        %4139 = vmatprep.subr.mxu0 0.0
        %4140 = vmatpush2.xpose.msra.mxu0 0.0
        %4141 = vmatprep.subr.mxu0 0.0
        %4142 = vmatpush2.xpose.msra.mxu0 0.0
        %4143 = vmatprep.subr.mxu0 0.0
        %4144 = vmatpush2.xpose.msra.mxu0 0.0
        %4145 = vmatprep.subr.mxu0 0.0
        %4146 = vmatpush2.xpose.msra.mxu0 0.0
        %4147 = vmatprep.subr.mxu0 0.0
        %4148 = vmatpush2.xpose.msra.mxu0 0.0
        %4149 = vmatprep.subr.mxu0 0.0
        %4150 = vmatpush2.xpose.msra.mxu0 0.0
        %4151 = vmatprep.subr.mxu0 0.0
        %4152 = vmatpush2.xpose.msra.mxu0 0.0
        %4153 = vmatprep.mubr.f32.mxu0 0.0
        %4154 = vmatmul.mubr.f32.gmra.mxu0 %v4085
        %v4155 = vpop.f32.mrf.mxu0
        %v4156 = vadd.f32 0.0, %v4155
        %v4157 = vpop.f32.mrf.mxu0
        %4158 = vdwg.mxu0
        %4160 = vrot.lane.b32.xlu0 %v3631, 124
        %v4161 = vpop.permute.xlu0 %4160
        %v4162 = vsel %vm1004, %v3631, 0
        %v4164 = vsel %vm1004, %v4161, 0
        %4166 = vmatprep.subr.mxu0 0.0
        %4167 = vmatpush1.xpose.msra.mxu0 0.0
        %4168 = vmatprep.subr.mxu0 0.0
        %4169 = vmatpush1.xpose.msra.mxu0 0.0
        %4170 = vmatprep.subr.mxu0 0.0
        %4171 = vmatpush1.xpose.msra.mxu0 0.0
        %4172 = vmatprep.subr.mxu0 0.0
        %4173 = vmatpush1.xpose.msra.mxu0 0.0
        %4174 = vmatprep.subr.mxu0 0.0
        %4175 = vmatpush1.xpose.msra.mxu0 0.0
        %4176 = vmatprep.subr.mxu0 0.0
        %4177 = vmatpush1.xpose.msra.mxu0 0.0
        %4178 = vmatprep.subr.mxu0 0.0
        %4179 = vmatpush1.xpose.msra.mxu0 0.0
        %4180 = vmatprep.subr.mxu0 0.0
        %4181 = vmatpush1.xpose.msra.mxu0 0.0
        %4182 = vmatprep.subr.mxu0 0.0
        %4183 = vmatpush1.xpose.msra.mxu0 0.0
        %4184 = vmatprep.subr.mxu0 0.0
        %4185 = vmatpush1.xpose.msra.mxu0 0.0
        %4186 = vmatprep.subr.mxu0 0.0
        %4187 = vmatpush1.xpose.msra.mxu0 0.0
        %4188 = vmatprep.subr.mxu0 0.0
        %4189 = vmatpush1.xpose.msra.mxu0 0.0
        %4190 = vmatprep.subr.mxu0 0.0
        %4191 = vmatpush1.xpose.msra.mxu0 0.0
        %4192 = vmatprep.subr.mxu0 0.0
        %4193 = vmatpush1.xpose.msra.mxu0 0.0
        %4194 = vmatprep.subr.mxu0 0.0
        %4195 = vmatpush1.xpose.msra.mxu0 0.0
        %4196 = vmatprep.subr.mxu0 0.0
        %4197 = vmatpush1.xpose.msra.mxu0 %v4164
        %4198 = vmatprep.subr.mxu0 0.0
        %4199 = vmatpush2.xpose.msra.mxu0 0.0
        %4200 = vmatprep.subr.mxu0 0.0
        %4201 = vmatpush2.xpose.msra.mxu0 0.0
        %4202 = vmatprep.subr.mxu0 0.0
        %4203 = vmatpush2.xpose.msra.mxu0 0.0
        %4204 = vmatprep.subr.mxu0 0.0
        %4205 = vmatpush2.xpose.msra.mxu0 0.0
        %4206 = vmatprep.subr.mxu0 0.0
        %4207 = vmatpush2.xpose.msra.mxu0 0.0
        %4208 = vmatprep.subr.mxu0 0.0
        %4209 = vmatpush2.xpose.msra.mxu0 0.0
        %4210 = vmatprep.subr.mxu0 0.0
        %4211 = vmatpush2.xpose.msra.mxu0 0.0
        %4212 = vmatprep.subr.mxu0 0.0
        %4213 = vmatpush2.xpose.msra.mxu0 0.0
        %4214 = vmatprep.subr.mxu0 0.0
        %4215 = vmatpush2.xpose.msra.mxu0 0.0
        %4216 = vmatprep.subr.mxu0 0.0
        %4217 = vmatpush2.xpose.msra.mxu0 0.0
        %4218 = vmatprep.subr.mxu0 0.0
        %4219 = vmatpush2.xpose.msra.mxu0 0.0
        %4220 = vmatprep.subr.mxu0 0.0
        %4221 = vmatpush2.xpose.msra.mxu0 0.0
        %4222 = vmatprep.subr.mxu0 0.0
        %4223 = vmatpush2.xpose.msra.mxu0 0.0
        %4224 = vmatprep.subr.mxu0 0.0
        %4225 = vmatpush2.xpose.msra.mxu0 0.0
        %4226 = vmatprep.subr.mxu0 0.0
        %4227 = vmatpush2.xpose.msra.mxu0 0.0
        %4228 = vmatprep.subr.mxu0 0.0
        %4229 = vmatpush2.xpose.msra.mxu0 0.0
        %4230 = vmatprep.mubr.f32.mxu0 0.0
        %4231 = vmatmul.mubr.f32.gmra.mxu0 %v4162
        %v4232 = vpop.f32.mrf.mxu0
        %v4233 = vadd.f32 0.0, %v4232
        %v4234 = vpop.f32.mrf.mxu0
        %4235 = vdwg.mxu0
        %4237 = vrot.lane.b32.xlu0 %v3701, 124
        %v4238 = vpop.permute.xlu0 %4237
        %v4239 = vsel %vm1004, %v3701, 0
        %v4241 = vsel %vm1004, %v4238, 0
        %4243 = vmatprep.subr.mxu0 0.0
        %4244 = vmatpush1.xpose.msra.mxu0 0.0
        %4245 = vmatprep.subr.mxu0 0.0
        %4246 = vmatpush1.xpose.msra.mxu0 0.0
        %4247 = vmatprep.subr.mxu0 0.0
        %4248 = vmatpush1.xpose.msra.mxu0 0.0
        %4249 = vmatprep.subr.mxu0 0.0
        %4250 = vmatpush1.xpose.msra.mxu0 0.0
        %4251 = vmatprep.subr.mxu0 0.0
        %4252 = vmatpush1.xpose.msra.mxu0 0.0
        %4253 = vmatprep.subr.mxu0 0.0
        %4254 = vmatpush1.xpose.msra.mxu0 0.0
        %4255 = vmatprep.subr.mxu0 0.0
        %4256 = vmatpush1.xpose.msra.mxu0 0.0
        %4257 = vmatprep.subr.mxu0 0.0
        %4258 = vmatpush1.xpose.msra.mxu0 0.0
        %4259 = vmatprep.subr.mxu0 0.0
        %4260 = vmatpush1.xpose.msra.mxu0 0.0
        %4261 = vmatprep.subr.mxu0 0.0
        %4262 = vmatpush1.xpose.msra.mxu0 0.0
        %4263 = vmatprep.subr.mxu0 0.0
        %4264 = vmatpush1.xpose.msra.mxu0 0.0
        %4265 = vmatprep.subr.mxu0 0.0
        %4266 = vmatpush1.xpose.msra.mxu0 0.0
        %4267 = vmatprep.subr.mxu0 0.0
        %4268 = vmatpush1.xpose.msra.mxu0 0.0
        %4269 = vmatprep.subr.mxu0 0.0
        %4270 = vmatpush1.xpose.msra.mxu0 0.0
        %4271 = vmatprep.subr.mxu0 0.0
        %4272 = vmatpush1.xpose.msra.mxu0 0.0
        %4273 = vmatprep.subr.mxu0 0.0
        %4274 = vmatpush1.xpose.msra.mxu0 %v4241
        %4275 = vmatprep.subr.mxu0 0.0
        %4276 = vmatpush2.xpose.msra.mxu0 0.0
        %4277 = vmatprep.subr.mxu0 0.0
        %4278 = vmatpush2.xpose.msra.mxu0 0.0
        %4279 = vmatprep.subr.mxu0 0.0
        %4280 = vmatpush2.xpose.msra.mxu0 0.0
        %4281 = vmatprep.subr.mxu0 0.0
        %4282 = vmatpush2.xpose.msra.mxu0 0.0
        %4283 = vmatprep.subr.mxu0 0.0
        %4284 = vmatpush2.xpose.msra.mxu0 0.0
        %4285 = vmatprep.subr.mxu0 0.0
        %4286 = vmatpush2.xpose.msra.mxu0 0.0
        %4287 = vmatprep.subr.mxu0 0.0
        %4288 = vmatpush2.xpose.msra.mxu0 0.0
        %4289 = vmatprep.subr.mxu0 0.0
        %4290 = vmatpush2.xpose.msra.mxu0 0.0
        %4291 = vmatprep.subr.mxu0 0.0
        %4292 = vmatpush2.xpose.msra.mxu0 0.0
        %4293 = vmatprep.subr.mxu0 0.0
        %4294 = vmatpush2.xpose.msra.mxu0 0.0
        %4295 = vmatprep.subr.mxu0 0.0
        %4296 = vmatpush2.xpose.msra.mxu0 0.0
        %4297 = vmatprep.subr.mxu0 0.0
        %4298 = vmatpush2.xpose.msra.mxu0 0.0
        %4299 = vmatprep.subr.mxu0 0.0
        %4300 = vmatpush2.xpose.msra.mxu0 0.0
        %4301 = vmatprep.subr.mxu0 0.0
        %4302 = vmatpush2.xpose.msra.mxu0 0.0
        %4303 = vmatprep.subr.mxu0 0.0
        %4304 = vmatpush2.xpose.msra.mxu0 0.0
        %4305 = vmatprep.subr.mxu0 0.0
        %4306 = vmatpush2.xpose.msra.mxu0 0.0
        %4307 = vmatprep.mubr.f32.mxu0 0.0
        %4308 = vmatmul.mubr.f32.gmra.mxu0 %v4239
        %v4309 = vpop.f32.mrf.mxu0
        %v4310 = vadd.f32 0.0, %v4309
        %v4311 = vpop.f32.mrf.mxu0
        %4312 = vdwg.mxu0
        %4314 = vrot.lane.b32.xlu0 %v3771, 124
        %v4315 = vpop.permute.xlu0 %4314
        %v4316 = vsel %vm1004, %v3771, 0
        %v4318 = vsel %vm1004, %v4315, 0
        %4320 = vmatprep.subr.mxu0 0.0
        %4321 = vmatpush1.xpose.msra.mxu0 0.0
        %4322 = vmatprep.subr.mxu0 0.0
        %4323 = vmatpush1.xpose.msra.mxu0 0.0
        %4324 = vmatprep.subr.mxu0 0.0
        %4325 = vmatpush1.xpose.msra.mxu0 0.0
        %4326 = vmatprep.subr.mxu0 0.0
        %4327 = vmatpush1.xpose.msra.mxu0 0.0
        %4328 = vmatprep.subr.mxu0 0.0
        %4329 = vmatpush1.xpose.msra.mxu0 0.0
        %4330 = vmatprep.subr.mxu0 0.0
        %4331 = vmatpush1.xpose.msra.mxu0 0.0
        %4332 = vmatprep.subr.mxu0 0.0
        %4333 = vmatpush1.xpose.msra.mxu0 0.0
        %4334 = vmatprep.subr.mxu0 0.0
        %4335 = vmatpush1.xpose.msra.mxu0 0.0
        %4336 = vmatprep.subr.mxu0 0.0
        %4337 = vmatpush1.xpose.msra.mxu0 0.0
        %4338 = vmatprep.subr.mxu0 0.0
        %4339 = vmatpush1.xpose.msra.mxu0 0.0
        %4340 = vmatprep.subr.mxu0 0.0
        %4341 = vmatpush1.xpose.msra.mxu0 0.0
        %4342 = vmatprep.subr.mxu0 0.0
        %4343 = vmatpush1.xpose.msra.mxu0 0.0
        %4344 = vmatprep.subr.mxu0 0.0
        %4345 = vmatpush1.xpose.msra.mxu0 0.0
        %4346 = vmatprep.subr.mxu0 0.0
        %4347 = vmatpush1.xpose.msra.mxu0 0.0
        %4348 = vmatprep.subr.mxu0 0.0
        %4349 = vmatpush1.xpose.msra.mxu0 0.0
        %4350 = vmatprep.subr.mxu0 0.0
        %4351 = vmatpush1.xpose.msra.mxu0 %v4318
        %4352 = vmatprep.subr.mxu0 0.0
        %4353 = vmatpush2.xpose.msra.mxu0 0.0
        %4354 = vmatprep.subr.mxu0 0.0
        %4355 = vmatpush2.xpose.msra.mxu0 0.0
        %4356 = vmatprep.subr.mxu0 0.0
        %4357 = vmatpush2.xpose.msra.mxu0 0.0
        %4358 = vmatprep.subr.mxu0 0.0
        %4359 = vmatpush2.xpose.msra.mxu0 0.0
        %4360 = vmatprep.subr.mxu0 0.0
        %4361 = vmatpush2.xpose.msra.mxu0 0.0
        %4362 = vmatprep.subr.mxu0 0.0
        %4363 = vmatpush2.xpose.msra.mxu0 0.0
        %4364 = vmatprep.subr.mxu0 0.0
        %4365 = vmatpush2.xpose.msra.mxu0 0.0
        %4366 = vmatprep.subr.mxu0 0.0
        %4367 = vmatpush2.xpose.msra.mxu0 0.0
        %4368 = vmatprep.subr.mxu0 0.0
        %4369 = vmatpush2.xpose.msra.mxu0 0.0
        %4370 = vmatprep.subr.mxu0 0.0
        %4371 = vmatpush2.xpose.msra.mxu0 0.0
        %4372 = vmatprep.subr.mxu0 0.0
        %4373 = vmatpush2.xpose.msra.mxu0 0.0
        %4374 = vmatprep.subr.mxu0 0.0
        %4375 = vmatpush2.xpose.msra.mxu0 0.0
        %4376 = vmatprep.subr.mxu0 0.0
        %4377 = vmatpush2.xpose.msra.mxu0 0.0
        %4378 = vmatprep.subr.mxu0 0.0
        %4379 = vmatpush2.xpose.msra.mxu0 0.0
        %4380 = vmatprep.subr.mxu0 0.0
        %4381 = vmatpush2.xpose.msra.mxu0 0.0
        %4382 = vmatprep.subr.mxu0 0.0
        %4383 = vmatpush2.xpose.msra.mxu0 0.0
        %4384 = vmatprep.mubr.f32.mxu0 0.0
        %4385 = vmatmul.mubr.f32.gmra.mxu0 %v4316
        %v4386 = vpop.f32.mrf.mxu0
        %v4387 = vadd.f32 0.0, %v4386
        %v4388 = vpop.f32.mrf.mxu0
        %4389 = vdwg.mxu0
        %v4390 = vmul.f32 %v3848, 0.5
        %v4391 = vmul.f32 %v3925, 0.5
        %v4392 = vmul.f32 %v4002, 0.5
        %v4393 = vmul.f32 %v4079, 0.5
        %v4394 = vmul.f32 %v4156, 0.5
        %v4395 = vmul.f32 %v4233, 0.5
        %v4396 = vmul.f32 %v4310, 0.5
        %v4397 = vmul.f32 %v4387, 0.5
        %v4398 = vsel %vm1626, %v4390, -inf
        %4399 = vmax.xlane.f32.xlu0 %v4398
        %v4400 = vpop.xlane.xlu0 %4399
        %v4401 = vsel %vm1626, %v4391, -inf
        %4402 = vmax.xlane.f32.xlu0 %v4401
        %v4403 = vpop.xlane.xlu0 %4402
        %v4404 = vsel %vm1626, %v4392, -inf
        %4405 = vmax.xlane.f32.xlu0 %v4404
        %v4406 = vpop.xlane.xlu0 %4405
        %v4407 = vsel %vm1626, %v4393, -inf
        %4408 = vmax.xlane.f32.xlu0 %v4407
        %v4409 = vpop.xlane.xlu0 %4408
        %v4410 = vsel %vm1626, %v4394, -inf
        %4411 = vmax.xlane.f32.xlu0 %v4410
        %v4412 = vpop.xlane.xlu0 %4411
        %v4413 = vsel %vm1626, %v4395, -inf
        %4414 = vmax.xlane.f32.xlu0 %v4413
        %v4415 = vpop.xlane.xlu0 %4414
        %v4416 = vsel %vm1626, %v4396, -inf
        %4417 = vmax.xlane.f32.xlu0 %v4416
        %v4418 = vpop.xlane.xlu0 %4417
        %v4419 = vsel %vm1626, %v4397, -inf
        %4420 = vmax.xlane.f32.xlu0 %v4419
        %v4421 = vpop.xlane.xlu0 %4420
        %v4422 = vsub.f32 %v4390, %v4400
        %v4423 = vsub.f32 %v4391, %v4403
        %v4424 = vsub.f32 %v4392, %v4406
        %v4425 = vsub.f32 %v4393, %v4409
        %v4426 = vsub.f32 %v4394, %v4412
        %v4427 = vsub.f32 %v4395, %v4415
        %v4428 = vsub.f32 %v4396, %v4418
        %v4429 = vsub.f32 %v4397, %v4421
        %v4430 = vmul.f32 %v4422, 1.442695
        %v4431 = vpow.pop %v4430
        %v4432 = vmul.f32 %v4423, 1.442695
        %v4433 = vpow.pop %v4432
        %v4434 = vmul.f32 %v4424, 1.442695
        %v4435 = vpow.pop %v4434
        %v4436 = vmul.f32 %v4425, 1.442695
        %v4437 = vpow.pop %v4436
        %v4438 = vmul.f32 %v4426, 1.442695
        %v4439 = vpow.pop %v4438
        %v4440 = vmul.f32 %v4427, 1.442695
        %v4441 = vpow.pop %v4440
        %v4442 = vmul.f32 %v4428, 1.442695
        %v4443 = vpow.pop %v4442
        %v4444 = vmul.f32 %v4429, 1.442695
        %v4445 = vpow.pop %v4444
        %v4446 = vsel %vm1626, %v4431, 0.0
        %4447 = vadd.xlane.f32.xlu0 %v4446
        %v4448 = vpop.xlane.xlu0 %4447
        %v4449 = vsel %vm1626, %v4433, 0.0
        %4450 = vadd.xlane.f32.xlu0 %v4449
        %v4451 = vpop.xlane.xlu0 %4450
        %v4452 = vsel %vm1626, %v4435, 0.0
        %4453 = vadd.xlane.f32.xlu0 %v4452
        %v4454 = vpop.xlane.xlu0 %4453
        %v4455 = vsel %vm1626, %v4437, 0.0
        %4456 = vadd.xlane.f32.xlu0 %v4455
        %v4457 = vpop.xlane.xlu0 %4456
        %v4458 = vsel %vm1626, %v4439, 0.0
        %4459 = vadd.xlane.f32.xlu0 %v4458
        %v4460 = vpop.xlane.xlu0 %4459
        %v4461 = vsel %vm1626, %v4441, 0.0
        %4462 = vadd.xlane.f32.xlu0 %v4461
        %v4463 = vpop.xlane.xlu0 %4462
        %v4464 = vsel %vm1626, %v4443, 0.0
        %4465 = vadd.xlane.f32.xlu0 %v4464
        %v4466 = vpop.xlane.xlu0 %4465
        %v4467 = vsel %vm1626, %v4445, 0.0
        %4468 = vadd.xlane.f32.xlu0 %v4467
        %v4469 = vpop.xlane.xlu0 %4468
        %v4470 = vrcp.pop %v4448
        %v4471 = vrcp.pop %v4451
        %v4472 = vrcp.pop %v4454
        %v4473 = vrcp.pop %v4457
        %v4474 = vrcp.pop %v4460
        %v4475 = vrcp.pop %v4463
        %v4476 = vrcp.pop %v4466
        %v4477 = vrcp.pop %v4469
        %v4478 = vmul.f32 %v4431, %v4470
        %v4479 = vmul.f32 %v4433, %v4471
        %v4480 = vmul.f32 %v4435, %v4472
        %v4481 = vmul.f32 %v4437, %v4473
        %v4482 = vmul.f32 %v4439, %v4474
        %v4483 = vmul.f32 %v4441, %v4475
        %v4484 = vmul.f32 %v4443, %v4476
        %v4485 = vmul.f32 %v4445, %v4477
        %4486 = vrot.lane.b32.xlu0 %v3281, 120
        %v4487 = vpop.permute.xlu0 %4486
        %v4490 = vsel %vm1626, %v4478, 0
        %4492 = vmatprep.subr.mxu0 0.0
        %4493 = vmatpush1.msra.mxu0 0.0
        %4494 = vmatprep.subr.mxu0 0.0
        %4495 = vmatpush1.msra.mxu0 0.0
        %4496 = vmatprep.subr.mxu0 0.0
        %4497 = vmatpush1.msra.mxu0 0.0
        %4498 = vmatprep.subr.mxu0 0.0
        %4499 = vmatpush1.msra.mxu0 0.0
        %4500 = vmatprep.subr.mxu0 0.0
        %4501 = vmatpush1.msra.mxu0 0.0
        %4502 = vmatprep.subr.mxu0 0.0
        %4503 = vmatpush1.msra.mxu0 0.0
        %4504 = vmatprep.subr.mxu0 0.0
        %4505 = vmatpush1.msra.mxu0 0.0
        %4506 = vmatprep.subr.mxu0 0.0
        %4507 = vmatpush1.msra.mxu0 0.0
        %4508 = vmatprep.subr.mxu0 0.0
        %4509 = vmatpush1.msra.mxu0 0.0
        %4510 = vmatprep.subr.mxu0 0.0
        %4511 = vmatpush1.msra.mxu0 0.0
        %4512 = vmatprep.subr.mxu0 0.0
        %4513 = vmatpush1.msra.mxu0 0.0
        %4514 = vmatprep.subr.mxu0 0.0
        %4515 = vmatpush1.msra.mxu0 0.0
        %4516 = vmatprep.subr.mxu0 0.0
        %4517 = vmatpush1.msra.mxu0 0.0
        %4518 = vmatprep.subr.mxu0 0.0
        %4519 = vmatpush1.msra.mxu0 0.0
        %4520 = vmatprep.subr.mxu0 0.0
        %4521 = vmatpush1.msra.mxu0 0.0
        %4522 = vmatprep.subr.mxu0 0.0
        %4523 = vmatpush1.msra.mxu0 %v4487
        %4524 = vmatprep.subr.mxu0 0.0
        %4525 = vmatpush2.msra.mxu0 0.0
        %4526 = vmatprep.subr.mxu0 0.0
        %4527 = vmatpush2.msra.mxu0 0.0
        %4528 = vmatprep.subr.mxu0 0.0
        %4529 = vmatpush2.msra.mxu0 0.0
        %4530 = vmatprep.subr.mxu0 0.0
        %4531 = vmatpush2.msra.mxu0 0.0
        %4532 = vmatprep.subr.mxu0 0.0
        %4533 = vmatpush2.msra.mxu0 0.0
        %4534 = vmatprep.subr.mxu0 0.0
        %4535 = vmatpush2.msra.mxu0 0.0
        %4536 = vmatprep.subr.mxu0 0.0
        %4537 = vmatpush2.msra.mxu0 0.0
        %4538 = vmatprep.subr.mxu0 0.0
        %4539 = vmatpush2.msra.mxu0 0.0
        %4540 = vmatprep.subr.mxu0 0.0
        %4541 = vmatpush2.msra.mxu0 0.0
        %4542 = vmatprep.subr.mxu0 0.0
        %4543 = vmatpush2.msra.mxu0 0.0
        %4544 = vmatprep.subr.mxu0 0.0
        %4545 = vmatpush2.msra.mxu0 0.0
        %4546 = vmatprep.subr.mxu0 0.0
        %4547 = vmatpush2.msra.mxu0 0.0
        %4548 = vmatprep.subr.mxu0 0.0
        %4549 = vmatpush2.msra.mxu0 0.0
        %4550 = vmatprep.subr.mxu0 0.0
        %4551 = vmatpush2.msra.mxu0 0.0
        %4552 = vmatprep.subr.mxu0 0.0
        %4553 = vmatpush2.msra.mxu0 0.0
        %4554 = vmatprep.subr.mxu0 0.0
        %4555 = vmatpush2.msra.mxu0 0.0
        %4556 = vmatprep.mubr.f32.mxu0 0.0
        %4557 = vmatmul.mubr.f32.gmra.mxu0 %v4490
        %v4558 = vpop.f32.mrf.mxu0
        %v4559 = vadd.f32 0.0, %v4558
        %v4560 = vpop.f32.mrf.mxu0
        %4561 = vdwg.mxu0
        %4562 = vrot.lane.b32.xlu0 %v3351, 120
        %v4563 = vpop.permute.xlu0 %4562
        %v4566 = vsel %vm1626, %v4479, 0
        %4568 = vmatprep.subr.mxu0 0.0
        %4569 = vmatpush1.msra.mxu0 0.0
        %4570 = vmatprep.subr.mxu0 0.0
        %4571 = vmatpush1.msra.mxu0 0.0
        %4572 = vmatprep.subr.mxu0 0.0
        %4573 = vmatpush1.msra.mxu0 0.0
        %4574 = vmatprep.subr.mxu0 0.0
        %4575 = vmatpush1.msra.mxu0 0.0
        %4576 = vmatprep.subr.mxu0 0.0
        %4577 = vmatpush1.msra.mxu0 0.0
        %4578 = vmatprep.subr.mxu0 0.0
        %4579 = vmatpush1.msra.mxu0 0.0
        %4580 = vmatprep.subr.mxu0 0.0
        %4581 = vmatpush1.msra.mxu0 0.0
        %4582 = vmatprep.subr.mxu0 0.0
        %4583 = vmatpush1.msra.mxu0 0.0
        %4584 = vmatprep.subr.mxu0 0.0
        %4585 = vmatpush1.msra.mxu0 0.0
        %4586 = vmatprep.subr.mxu0 0.0
        %4587 = vmatpush1.msra.mxu0 0.0
        %4588 = vmatprep.subr.mxu0 0.0
        %4589 = vmatpush1.msra.mxu0 0.0
        %4590 = vmatprep.subr.mxu0 0.0
        %4591 = vmatpush1.msra.mxu0 0.0
        %4592 = vmatprep.subr.mxu0 0.0
        %4593 = vmatpush1.msra.mxu0 0.0
        %4594 = vmatprep.subr.mxu0 0.0
        %4595 = vmatpush1.msra.mxu0 0.0
        %4596 = vmatprep.subr.mxu0 0.0
        %4597 = vmatpush1.msra.mxu0 0.0
        %4598 = vmatprep.subr.mxu0 0.0
        %4599 = vmatpush1.msra.mxu0 %v4563
        %4600 = vmatprep.subr.mxu0 0.0
        %4601 = vmatpush2.msra.mxu0 0.0
        %4602 = vmatprep.subr.mxu0 0.0
        %4603 = vmatpush2.msra.mxu0 0.0
        %4604 = vmatprep.subr.mxu0 0.0
        %4605 = vmatpush2.msra.mxu0 0.0
        %4606 = vmatprep.subr.mxu0 0.0
        %4607 = vmatpush2.msra.mxu0 0.0
        %4608 = vmatprep.subr.mxu0 0.0
        %4609 = vmatpush2.msra.mxu0 0.0
        %4610 = vmatprep.subr.mxu0 0.0
        %4611 = vmatpush2.msra.mxu0 0.0
        %4612 = vmatprep.subr.mxu0 0.0
        %4613 = vmatpush2.msra.mxu0 0.0
        %4614 = vmatprep.subr.mxu0 0.0
        %4615 = vmatpush2.msra.mxu0 0.0
        %4616 = vmatprep.subr.mxu0 0.0
        %4617 = vmatpush2.msra.mxu0 0.0
        %4618 = vmatprep.subr.mxu0 0.0
        %4619 = vmatpush2.msra.mxu0 0.0
        %4620 = vmatprep.subr.mxu0 0.0
        %4621 = vmatpush2.msra.mxu0 0.0
        %4622 = vmatprep.subr.mxu0 0.0
        %4623 = vmatpush2.msra.mxu0 0.0
        %4624 = vmatprep.subr.mxu0 0.0
        %4625 = vmatpush2.msra.mxu0 0.0
        %4626 = vmatprep.subr.mxu0 0.0
        %4627 = vmatpush2.msra.mxu0 0.0
        %4628 = vmatprep.subr.mxu0 0.0
        %4629 = vmatpush2.msra.mxu0 0.0
        %4630 = vmatprep.subr.mxu0 0.0
        %4631 = vmatpush2.msra.mxu0 0.0
        %4632 = vmatprep.mubr.f32.mxu0 0.0
        %4633 = vmatmul.mubr.f32.gmra.mxu0 %v4566
        %v4634 = vpop.f32.mrf.mxu0
        %v4635 = vadd.f32 0.0, %v4634
        %v4636 = vpop.f32.mrf.mxu0
        %4637 = vdwg.mxu0
        %4638 = vrot.lane.b32.xlu0 %v3421, 120
        %v4639 = vpop.permute.xlu0 %4638
        %v4642 = vsel %vm1626, %v4480, 0
        %4644 = vmatprep.subr.mxu0 0.0
        %4645 = vmatpush1.msra.mxu0 0.0
        %4646 = vmatprep.subr.mxu0 0.0
        %4647 = vmatpush1.msra.mxu0 0.0
        %4648 = vmatprep.subr.mxu0 0.0
        %4649 = vmatpush1.msra.mxu0 0.0
        %4650 = vmatprep.subr.mxu0 0.0
        %4651 = vmatpush1.msra.mxu0 0.0
        %4652 = vmatprep.subr.mxu0 0.0
        %4653 = vmatpush1.msra.mxu0 0.0
        %4654 = vmatprep.subr.mxu0 0.0
        %4655 = vmatpush1.msra.mxu0 0.0
        %4656 = vmatprep.subr.mxu0 0.0
        %4657 = vmatpush1.msra.mxu0 0.0
        %4658 = vmatprep.subr.mxu0 0.0
        %4659 = vmatpush1.msra.mxu0 0.0
        %4660 = vmatprep.subr.mxu0 0.0
        %4661 = vmatpush1.msra.mxu0 0.0
        %4662 = vmatprep.subr.mxu0 0.0
        %4663 = vmatpush1.msra.mxu0 0.0
        %4664 = vmatprep.subr.mxu0 0.0
        %4665 = vmatpush1.msra.mxu0 0.0
        %4666 = vmatprep.subr.mxu0 0.0
        %4667 = vmatpush1.msra.mxu0 0.0
        %4668 = vmatprep.subr.mxu0 0.0
        %4669 = vmatpush1.msra.mxu0 0.0
        %4670 = vmatprep.subr.mxu0 0.0
        %4671 = vmatpush1.msra.mxu0 0.0
        %4672 = vmatprep.subr.mxu0 0.0
        %4673 = vmatpush1.msra.mxu0 0.0
        %4674 = vmatprep.subr.mxu0 0.0
        %4675 = vmatpush1.msra.mxu0 %v4639
        %4676 = vmatprep.subr.mxu0 0.0
        %4677 = vmatpush2.msra.mxu0 0.0
        %4678 = vmatprep.subr.mxu0 0.0
        %4679 = vmatpush2.msra.mxu0 0.0
        %4680 = vmatprep.subr.mxu0 0.0
        %4681 = vmatpush2.msra.mxu0 0.0
        %4682 = vmatprep.subr.mxu0 0.0
        %4683 = vmatpush2.msra.mxu0 0.0
        %4684 = vmatprep.subr.mxu0 0.0
        %4685 = vmatpush2.msra.mxu0 0.0
        %4686 = vmatprep.subr.mxu0 0.0
        %4687 = vmatpush2.msra.mxu0 0.0
        %4688 = vmatprep.subr.mxu0 0.0
        %4689 = vmatpush2.msra.mxu0 0.0
        %4690 = vmatprep.subr.mxu0 0.0
        %4691 = vmatpush2.msra.mxu0 0.0
        %4692 = vmatprep.subr.mxu0 0.0
        %4693 = vmatpush2.msra.mxu0 0.0
        %4694 = vmatprep.subr.mxu0 0.0
        %4695 = vmatpush2.msra.mxu0 0.0
        %4696 = vmatprep.subr.mxu0 0.0
        %4697 = vmatpush2.msra.mxu0 0.0
        %4698 = vmatprep.subr.mxu0 0.0
        %4699 = vmatpush2.msra.mxu0 0.0
        %4700 = vmatprep.subr.mxu0 0.0
        %4701 = vmatpush2.msra.mxu0 0.0
        %4702 = vmatprep.subr.mxu0 0.0
        %4703 = vmatpush2.msra.mxu0 0.0
        %4704 = vmatprep.subr.mxu0 0.0
        %4705 = vmatpush2.msra.mxu0 0.0
        %4706 = vmatprep.subr.mxu0 0.0
        %4707 = vmatpush2.msra.mxu0 0.0
        %4708 = vmatprep.mubr.f32.mxu0 0.0
        %4709 = vmatmul.mubr.f32.gmra.mxu0 %v4642
        %v4710 = vpop.f32.mrf.mxu0
        %v4711 = vadd.f32 0.0, %v4710
        %v4712 = vpop.f32.mrf.mxu0
        %4713 = vdwg.mxu0
        %4714 = vrot.lane.b32.xlu0 %v3491, 120
        %v4715 = vpop.permute.xlu0 %4714
        %v4718 = vsel %vm1626, %v4481, 0
        %4720 = vmatprep.subr.mxu0 0.0
        %4721 = vmatpush1.msra.mxu0 0.0
        %4722 = vmatprep.subr.mxu0 0.0
        %4723 = vmatpush1.msra.mxu0 0.0
        %4724 = vmatprep.subr.mxu0 0.0
        %4725 = vmatpush1.msra.mxu0 0.0
        %4726 = vmatprep.subr.mxu0 0.0
        %4727 = vmatpush1.msra.mxu0 0.0
        %4728 = vmatprep.subr.mxu0 0.0
        %4729 = vmatpush1.msra.mxu0 0.0
        %4730 = vmatprep.subr.mxu0 0.0
        %4731 = vmatpush1.msra.mxu0 0.0
        %4732 = vmatprep.subr.mxu0 0.0
        %4733 = vmatpush1.msra.mxu0 0.0
        %4734 = vmatprep.subr.mxu0 0.0
        %4735 = vmatpush1.msra.mxu0 0.0
        %4736 = vmatprep.subr.mxu0 0.0
        %4737 = vmatpush1.msra.mxu0 0.0
        %4738 = vmatprep.subr.mxu0 0.0
        %4739 = vmatpush1.msra.mxu0 0.0
        %4740 = vmatprep.subr.mxu0 0.0
        %4741 = vmatpush1.msra.mxu0 0.0
        %4742 = vmatprep.subr.mxu0 0.0
        %4743 = vmatpush1.msra.mxu0 0.0
        %4744 = vmatprep.subr.mxu0 0.0
        %4745 = vmatpush1.msra.mxu0 0.0
        %4746 = vmatprep.subr.mxu0 0.0
        %4747 = vmatpush1.msra.mxu0 0.0
        %4748 = vmatprep.subr.mxu0 0.0
        %4749 = vmatpush1.msra.mxu0 0.0
        %4750 = vmatprep.subr.mxu0 0.0
        %4751 = vmatpush1.msra.mxu0 %v4715
        %4752 = vmatprep.subr.mxu0 0.0
        %4753 = vmatpush2.msra.mxu0 0.0
        %4754 = vmatprep.subr.mxu0 0.0
        %4755 = vmatpush2.msra.mxu0 0.0
        %4756 = vmatprep.subr.mxu0 0.0
        %4757 = vmatpush2.msra.mxu0 0.0
        %4758 = vmatprep.subr.mxu0 0.0
        %4759 = vmatpush2.msra.mxu0 0.0
        %4760 = vmatprep.subr.mxu0 0.0
        %4761 = vmatpush2.msra.mxu0 0.0
        %4762 = vmatprep.subr.mxu0 0.0
        %4763 = vmatpush2.msra.mxu0 0.0
        %4764 = vmatprep.subr.mxu0 0.0
        %4765 = vmatpush2.msra.mxu0 0.0
        %4766 = vmatprep.subr.mxu0 0.0
        %4767 = vmatpush2.msra.mxu0 0.0
        %4768 = vmatprep.subr.mxu0 0.0
        %4769 = vmatpush2.msra.mxu0 0.0
        %4770 = vmatprep.subr.mxu0 0.0
        %4771 = vmatpush2.msra.mxu0 0.0
        %4772 = vmatprep.subr.mxu0 0.0
        %4773 = vmatpush2.msra.mxu0 0.0
        %4774 = vmatprep.subr.mxu0 0.0
        %4775 = vmatpush2.msra.mxu0 0.0
        %4776 = vmatprep.subr.mxu0 0.0
        %4777 = vmatpush2.msra.mxu0 0.0
        %4778 = vmatprep.subr.mxu0 0.0
        %4779 = vmatpush2.msra.mxu0 0.0
        %4780 = vmatprep.subr.mxu0 0.0
        %4781 = vmatpush2.msra.mxu0 0.0
        %4782 = vmatprep.subr.mxu0 0.0
        %4783 = vmatpush2.msra.mxu0 0.0
        %4784 = vmatprep.mubr.f32.mxu0 0.0
        %4785 = vmatmul.mubr.f32.gmra.mxu0 %v4718
        %v4786 = vpop.f32.mrf.mxu0
        %v4787 = vadd.f32 0.0, %v4786
        %v4788 = vpop.f32.mrf.mxu0
        %4789 = vdwg.mxu0
        %4790 = vrot.lane.b32.xlu0 %v3561, 120
        %v4791 = vpop.permute.xlu0 %4790
        %v4794 = vsel %vm1626, %v4482, 0
        %4796 = vmatprep.subr.mxu0 0.0
        %4797 = vmatpush1.msra.mxu0 0.0
        %4798 = vmatprep.subr.mxu0 0.0
        %4799 = vmatpush1.msra.mxu0 0.0
        %4800 = vmatprep.subr.mxu0 0.0
        %4801 = vmatpush1.msra.mxu0 0.0
        %4802 = vmatprep.subr.mxu0 0.0
        %4803 = vmatpush1.msra.mxu0 0.0
        %4804 = vmatprep.subr.mxu0 0.0
        %4805 = vmatpush1.msra.mxu0 0.0
        %4806 = vmatprep.subr.mxu0 0.0
        %4807 = vmatpush1.msra.mxu0 0.0
        %4808 = vmatprep.subr.mxu0 0.0
        %4809 = vmatpush1.msra.mxu0 0.0
        %4810 = vmatprep.subr.mxu0 0.0
        %4811 = vmatpush1.msra.mxu0 0.0
        %4812 = vmatprep.subr.mxu0 0.0
        %4813 = vmatpush1.msra.mxu0 0.0
        %4814 = vmatprep.subr.mxu0 0.0
        %4815 = vmatpush1.msra.mxu0 0.0
        %4816 = vmatprep.subr.mxu0 0.0
        %4817 = vmatpush1.msra.mxu0 0.0
        %4818 = vmatprep.subr.mxu0 0.0
        %4819 = vmatpush1.msra.mxu0 0.0
        %4820 = vmatprep.subr.mxu0 0.0
        %4821 = vmatpush1.msra.mxu0 0.0
        %4822 = vmatprep.subr.mxu0 0.0
        %4823 = vmatpush1.msra.mxu0 0.0
        %4824 = vmatprep.subr.mxu0 0.0
        %4825 = vmatpush1.msra.mxu0 0.0
        %4826 = vmatprep.subr.mxu0 0.0
        %4827 = vmatpush1.msra.mxu0 %v4791
        %4828 = vmatprep.subr.mxu0 0.0
        %4829 = vmatpush2.msra.mxu0 0.0
        %4830 = vmatprep.subr.mxu0 0.0
        %4831 = vmatpush2.msra.mxu0 0.0
        %4832 = vmatprep.subr.mxu0 0.0
        %4833 = vmatpush2.msra.mxu0 0.0
        %4834 = vmatprep.subr.mxu0 0.0
        %4835 = vmatpush2.msra.mxu0 0.0
        %4836 = vmatprep.subr.mxu0 0.0
        %4837 = vmatpush2.msra.mxu0 0.0
        %4838 = vmatprep.subr.mxu0 0.0
        %4839 = vmatpush2.msra.mxu0 0.0
        %4840 = vmatprep.subr.mxu0 0.0
        %4841 = vmatpush2.msra.mxu0 0.0
        %4842 = vmatprep.subr.mxu0 0.0
        %4843 = vmatpush2.msra.mxu0 0.0
        %4844 = vmatprep.subr.mxu0 0.0
        %4845 = vmatpush2.msra.mxu0 0.0
        %4846 = vmatprep.subr.mxu0 0.0
        %4847 = vmatpush2.msra.mxu0 0.0
        %4848 = vmatprep.subr.mxu0 0.0
        %4849 = vmatpush2.msra.mxu0 0.0
        %4850 = vmatprep.subr.mxu0 0.0
        %4851 = vmatpush2.msra.mxu0 0.0
        %4852 = vmatprep.subr.mxu0 0.0
        %4853 = vmatpush2.msra.mxu0 0.0
        %4854 = vmatprep.subr.mxu0 0.0
        %4855 = vmatpush2.msra.mxu0 0.0
        %4856 = vmatprep.subr.mxu0 0.0
        %4857 = vmatpush2.msra.mxu0 0.0
        %4858 = vmatprep.subr.mxu0 0.0
        %4859 = vmatpush2.msra.mxu0 0.0
        %4860 = vmatprep.mubr.f32.mxu0 0.0
        %4861 = vmatmul.mubr.f32.gmra.mxu0 %v4794
        %v4862 = vpop.f32.mrf.mxu0
        %v4863 = vadd.f32 0.0, %v4862
        %v4864 = vpop.f32.mrf.mxu0
        %4865 = vdwg.mxu0
        %4866 = vrot.lane.b32.xlu0 %v3631, 120
        %v4867 = vpop.permute.xlu0 %4866
        %v4870 = vsel %vm1626, %v4483, 0
        %4872 = vmatprep.subr.mxu0 0.0
        %4873 = vmatpush1.msra.mxu0 0.0
        %4874 = vmatprep.subr.mxu0 0.0
        %4875 = vmatpush1.msra.mxu0 0.0
        %4876 = vmatprep.subr.mxu0 0.0
        %4877 = vmatpush1.msra.mxu0 0.0
        %4878 = vmatprep.subr.mxu0 0.0
        %4879 = vmatpush1.msra.mxu0 0.0
        %4880 = vmatprep.subr.mxu0 0.0
        %4881 = vmatpush1.msra.mxu0 0.0
        %4882 = vmatprep.subr.mxu0 0.0
        %4883 = vmatpush1.msra.mxu0 0.0
        %4884 = vmatprep.subr.mxu0 0.0
        %4885 = vmatpush1.msra.mxu0 0.0
        %4886 = vmatprep.subr.mxu0 0.0
        %4887 = vmatpush1.msra.mxu0 0.0
        %4888 = vmatprep.subr.mxu0 0.0
        %4889 = vmatpush1.msra.mxu0 0.0
        %4890 = vmatprep.subr.mxu0 0.0
        %4891 = vmatpush1.msra.mxu0 0.0
        %4892 = vmatprep.subr.mxu0 0.0
        %4893 = vmatpush1.msra.mxu0 0.0
        %4894 = vmatprep.subr.mxu0 0.0
        %4895 = vmatpush1.msra.mxu0 0.0
        %4896 = vmatprep.subr.mxu0 0.0
        %4897 = vmatpush1.msra.mxu0 0.0
        %4898 = vmatprep.subr.mxu0 0.0
        %4899 = vmatpush1.msra.mxu0 0.0
        %4900 = vmatprep.subr.mxu0 0.0
        %4901 = vmatpush1.msra.mxu0 0.0
        %4902 = vmatprep.subr.mxu0 0.0
        %4903 = vmatpush1.msra.mxu0 %v4867
        %4904 = vmatprep.subr.mxu0 0.0
        %4905 = vmatpush2.msra.mxu0 0.0
        %4906 = vmatprep.subr.mxu0 0.0
        %4907 = vmatpush2.msra.mxu0 0.0
        %4908 = vmatprep.subr.mxu0 0.0
        %4909 = vmatpush2.msra.mxu0 0.0
        %4910 = vmatprep.subr.mxu0 0.0
        %4911 = vmatpush2.msra.mxu0 0.0
        %4912 = vmatprep.subr.mxu0 0.0
        %4913 = vmatpush2.msra.mxu0 0.0
        %4914 = vmatprep.subr.mxu0 0.0
        %4915 = vmatpush2.msra.mxu0 0.0
        %4916 = vmatprep.subr.mxu0 0.0
        %4917 = vmatpush2.msra.mxu0 0.0
        %4918 = vmatprep.subr.mxu0 0.0
        %4919 = vmatpush2.msra.mxu0 0.0
        %4920 = vmatprep.subr.mxu0 0.0
        %4921 = vmatpush2.msra.mxu0 0.0
        %4922 = vmatprep.subr.mxu0 0.0
        %4923 = vmatpush2.msra.mxu0 0.0
        %4924 = vmatprep.subr.mxu0 0.0
        %4925 = vmatpush2.msra.mxu0 0.0
        %4926 = vmatprep.subr.mxu0 0.0
        %4927 = vmatpush2.msra.mxu0 0.0
        %4928 = vmatprep.subr.mxu0 0.0
        %4929 = vmatpush2.msra.mxu0 0.0
        %4930 = vmatprep.subr.mxu0 0.0
        %4931 = vmatpush2.msra.mxu0 0.0
        %4932 = vmatprep.subr.mxu0 0.0
        %4933 = vmatpush2.msra.mxu0 0.0
        %4934 = vmatprep.subr.mxu0 0.0
        %4935 = vmatpush2.msra.mxu0 0.0
        %4936 = vmatprep.mubr.f32.mxu0 0.0
        %4937 = vmatmul.mubr.f32.gmra.mxu0 %v4870
        %v4938 = vpop.f32.mrf.mxu0
        %v4939 = vadd.f32 0.0, %v4938
        %v4940 = vpop.f32.mrf.mxu0
        %4941 = vdwg.mxu0
        %4942 = vrot.lane.b32.xlu0 %v3701, 120
        %v4943 = vpop.permute.xlu0 %4942
        %v4946 = vsel %vm1626, %v4484, 0
        %4948 = vmatprep.subr.mxu0 0.0
        %4949 = vmatpush1.msra.mxu0 0.0
        %4950 = vmatprep.subr.mxu0 0.0
        %4951 = vmatpush1.msra.mxu0 0.0
        %4952 = vmatprep.subr.mxu0 0.0
        %4953 = vmatpush1.msra.mxu0 0.0
        %4954 = vmatprep.subr.mxu0 0.0
        %4955 = vmatpush1.msra.mxu0 0.0
        %4956 = vmatprep.subr.mxu0 0.0
        %4957 = vmatpush1.msra.mxu0 0.0
        %4958 = vmatprep.subr.mxu0 0.0
        %4959 = vmatpush1.msra.mxu0 0.0
        %4960 = vmatprep.subr.mxu0 0.0
        %4961 = vmatpush1.msra.mxu0 0.0
        %4962 = vmatprep.subr.mxu0 0.0
        %4963 = vmatpush1.msra.mxu0 0.0
        %4964 = vmatprep.subr.mxu0 0.0
        %4965 = vmatpush1.msra.mxu0 0.0
        %4966 = vmatprep.subr.mxu0 0.0
        %4967 = vmatpush1.msra.mxu0 0.0
        %4968 = vmatprep.subr.mxu0 0.0
        %4969 = vmatpush1.msra.mxu0 0.0
        %4970 = vmatprep.subr.mxu0 0.0
        %4971 = vmatpush1.msra.mxu0 0.0
        %4972 = vmatprep.subr.mxu0 0.0
        %4973 = vmatpush1.msra.mxu0 0.0
        %4974 = vmatprep.subr.mxu0 0.0
        %4975 = vmatpush1.msra.mxu0 0.0
        %4976 = vmatprep.subr.mxu0 0.0
        %4977 = vmatpush1.msra.mxu0 0.0
        %4978 = vmatprep.subr.mxu0 0.0
        %4979 = vmatpush1.msra.mxu0 %v4943
        %4980 = vmatprep.subr.mxu0 0.0
        %4981 = vmatpush2.msra.mxu0 0.0
        %4982 = vmatprep.subr.mxu0 0.0
        %4983 = vmatpush2.msra.mxu0 0.0
        %4984 = vmatprep.subr.mxu0 0.0
        %4985 = vmatpush2.msra.mxu0 0.0
        %4986 = vmatprep.subr.mxu0 0.0
        %4987 = vmatpush2.msra.mxu0 0.0
        %4988 = vmatprep.subr.mxu0 0.0
        %4989 = vmatpush2.msra.mxu0 0.0
        %4990 = vmatprep.subr.mxu0 0.0
        %4991 = vmatpush2.msra.mxu0 0.0
        %4992 = vmatprep.subr.mxu0 0.0
        %4993 = vmatpush2.msra.mxu0 0.0
        %4994 = vmatprep.subr.mxu0 0.0
        %4995 = vmatpush2.msra.mxu0 0.0
        %4996 = vmatprep.subr.mxu0 0.0
        %4997 = vmatpush2.msra.mxu0 0.0
        %4998 = vmatprep.subr.mxu0 0.0
        %4999 = vmatpush2.msra.mxu0 0.0
        %5000 = vmatprep.subr.mxu0 0.0
        %5001 = vmatpush2.msra.mxu0 0.0
        %5002 = vmatprep.subr.mxu0 0.0
        %5003 = vmatpush2.msra.mxu0 0.0
        %5004 = vmatprep.subr.mxu0 0.0
        %5005 = vmatpush2.msra.mxu0 0.0
        %5006 = vmatprep.subr.mxu0 0.0
        %5007 = vmatpush2.msra.mxu0 0.0
        %5008 = vmatprep.subr.mxu0 0.0
        %5009 = vmatpush2.msra.mxu0 0.0
        %5010 = vmatprep.subr.mxu0 0.0
        %5011 = vmatpush2.msra.mxu0 0.0
        %5012 = vmatprep.mubr.f32.mxu0 0.0
        %5013 = vmatmul.mubr.f32.gmra.mxu0 %v4946
        %v5014 = vpop.f32.mrf.mxu0
        %v5015 = vadd.f32 0.0, %v5014
        %v5016 = vpop.f32.mrf.mxu0
        %5017 = vdwg.mxu0
        %5018 = vrot.lane.b32.xlu0 %v3771, 120
        %v5019 = vpop.permute.xlu0 %5018
        %v5022 = vsel %vm1626, %v4485, 0
        %5024 = vmatprep.subr.mxu0 0.0
        %5025 = vmatpush1.msra.mxu0 0.0
        %5026 = vmatprep.subr.mxu0 0.0
        %5027 = vmatpush1.msra.mxu0 0.0
        %5028 = vmatprep.subr.mxu0 0.0
        %5029 = vmatpush1.msra.mxu0 0.0
        %5030 = vmatprep.subr.mxu0 0.0
        %5031 = vmatpush1.msra.mxu0 0.0
        %5032 = vmatprep.subr.mxu0 0.0
        %5033 = vmatpush1.msra.mxu0 0.0
        %5034 = vmatprep.subr.mxu0 0.0
        %5035 = vmatpush1.msra.mxu0 0.0
        %5036 = vmatprep.subr.mxu0 0.0
        %5037 = vmatpush1.msra.mxu0 0.0
        %5038 = vmatprep.subr.mxu0 0.0
        %5039 = vmatpush1.msra.mxu0 0.0
        %5040 = vmatprep.subr.mxu0 0.0
        %5041 = vmatpush1.msra.mxu0 0.0
        %5042 = vmatprep.subr.mxu0 0.0
        %5043 = vmatpush1.msra.mxu0 0.0
        %5044 = vmatprep.subr.mxu0 0.0
        %5045 = vmatpush1.msra.mxu0 0.0
        %5046 = vmatprep.subr.mxu0 0.0
        %5047 = vmatpush1.msra.mxu0 0.0
        %5048 = vmatprep.subr.mxu0 0.0
        %5049 = vmatpush1.msra.mxu0 0.0
        %5050 = vmatprep.subr.mxu0 0.0
        %5051 = vmatpush1.msra.mxu0 0.0
        %5052 = vmatprep.subr.mxu0 0.0
        %5053 = vmatpush1.msra.mxu0 0.0
        %5054 = vmatprep.subr.mxu0 0.0
        %5055 = vmatpush1.msra.mxu0 %v5019
        %5056 = vmatprep.subr.mxu0 0.0
        %5057 = vmatpush2.msra.mxu0 0.0
        %5058 = vmatprep.subr.mxu0 0.0
        %5059 = vmatpush2.msra.mxu0 0.0
        %5060 = vmatprep.subr.mxu0 0.0
        %5061 = vmatpush2.msra.mxu0 0.0
        %5062 = vmatprep.subr.mxu0 0.0
        %5063 = vmatpush2.msra.mxu0 0.0
        %5064 = vmatprep.subr.mxu0 0.0
        %5065 = vmatpush2.msra.mxu0 0.0
        %5066 = vmatprep.subr.mxu0 0.0
        %5067 = vmatpush2.msra.mxu0 0.0
        %5068 = vmatprep.subr.mxu0 0.0
        %5069 = vmatpush2.msra.mxu0 0.0
        %5070 = vmatprep.subr.mxu0 0.0
        %5071 = vmatpush2.msra.mxu0 0.0
        %5072 = vmatprep.subr.mxu0 0.0
        %5073 = vmatpush2.msra.mxu0 0.0
        %5074 = vmatprep.subr.mxu0 0.0
        %5075 = vmatpush2.msra.mxu0 0.0
        %5076 = vmatprep.subr.mxu0 0.0
        %5077 = vmatpush2.msra.mxu0 0.0
        %5078 = vmatprep.subr.mxu0 0.0
        %5079 = vmatpush2.msra.mxu0 0.0
        %5080 = vmatprep.subr.mxu0 0.0
        %5081 = vmatpush2.msra.mxu0 0.0
        %5082 = vmatprep.subr.mxu0 0.0
        %5083 = vmatpush2.msra.mxu0 0.0
        %5084 = vmatprep.subr.mxu0 0.0
        %5085 = vmatpush2.msra.mxu0 0.0
        %5086 = vmatprep.subr.mxu0 0.0
        %5087 = vmatpush2.msra.mxu0 0.0
        %5088 = vmatprep.mubr.f32.mxu0 0.0
        %5089 = vmatmul.mubr.f32.gmra.mxu0 %v5022
        %v5090 = vpop.f32.mrf.mxu0
        %v5091 = vadd.f32 0.0, %v5090
        %v5092 = vpop.f32.mrf.mxu0
        %5093 = vdwg.mxu0
        %v5095 = vsel %vm1004, %v4559, 0
        %v5098 = vsel %vm2326, %v3106, 0
        %5100 = vmatprep.subr.mxu0 0.0
        %5101 = vmatpush1.msra.mxu0 0.0
        %5102 = vmatprep.subr.mxu0 0.0
        %5103 = vmatpush1.msra.mxu0 0.0
        %5104 = vmatprep.subr.mxu0 0.0
        %5105 = vmatpush1.msra.mxu0 0.0
        %5106 = vmatprep.subr.mxu0 0.0
        %5107 = vmatpush1.msra.mxu0 0.0
        %5108 = vmatprep.subr.mxu0 0.0
        %5109 = vmatpush1.msra.mxu0 0.0
        %5110 = vmatprep.subr.mxu0 0.0
        %5111 = vmatpush1.msra.mxu0 0.0
        %5112 = vmatprep.subr.mxu0 0.0
        %5113 = vmatpush1.msra.mxu0 0.0
        %5114 = vmatprep.subr.mxu0 0.0
        %5115 = vmatpush1.msra.mxu0 0.0
        %5116 = vmatprep.subr.mxu0 0.0
        %5117 = vmatpush1.msra.mxu0 0.0
        %5118 = vmatprep.subr.mxu0 0.0
        %5119 = vmatpush1.msra.mxu0 0.0
        %5120 = vmatprep.subr.mxu0 0.0
        %5121 = vmatpush1.msra.mxu0 0.0
        %5122 = vmatprep.subr.mxu0 0.0
        %5123 = vmatpush1.msra.mxu0 0.0
        %5124 = vmatprep.subr.mxu0 0.0
        %5125 = vmatpush1.msra.mxu0 0.0
        %5126 = vmatprep.subr.mxu0 0.0
        %5127 = vmatpush1.msra.mxu0 0.0
        %5128 = vmatprep.subr.mxu0 0.0
        %5129 = vmatpush1.msra.mxu0 0.0
        %5130 = vmatprep.subr.mxu0 0.0
        %5131 = vmatpush1.msra.mxu0 %v5098
        %5132 = vmatprep.subr.mxu0 0.0
        %5133 = vmatpush2.msra.mxu0 0.0
        %5134 = vmatprep.subr.mxu0 0.0
        %5135 = vmatpush2.msra.mxu0 0.0
        %5136 = vmatprep.subr.mxu0 0.0
        %5137 = vmatpush2.msra.mxu0 0.0
        %5138 = vmatprep.subr.mxu0 0.0
        %5139 = vmatpush2.msra.mxu0 0.0
        %5140 = vmatprep.subr.mxu0 0.0
        %5141 = vmatpush2.msra.mxu0 0.0
        %5142 = vmatprep.subr.mxu0 0.0
        %5143 = vmatpush2.msra.mxu0 0.0
        %5144 = vmatprep.subr.mxu0 0.0
        %5145 = vmatpush2.msra.mxu0 0.0
        %5146 = vmatprep.subr.mxu0 0.0
        %5147 = vmatpush2.msra.mxu0 0.0
        %5148 = vmatprep.subr.mxu0 0.0
        %5149 = vmatpush2.msra.mxu0 0.0
        %5150 = vmatprep.subr.mxu0 0.0
        %5151 = vmatpush2.msra.mxu0 0.0
        %5152 = vmatprep.subr.mxu0 0.0
        %5153 = vmatpush2.msra.mxu0 0.0
        %5154 = vmatprep.subr.mxu0 0.0
        %5155 = vmatpush2.msra.mxu0 0.0
        %5156 = vmatprep.subr.mxu0 0.0
        %5157 = vmatpush2.msra.mxu0 0.0
        %5158 = vmatprep.subr.mxu0 0.0
        %5159 = vmatpush2.msra.mxu0 0.0
        %5160 = vmatprep.subr.mxu0 0.0
        %5161 = vmatpush2.msra.mxu0 0.0
        %5162 = vmatprep.subr.mxu0 0.0
        %5163 = vmatpush2.msra.mxu0 0.0
        %5164 = vmatprep.mubr.f32.mxu0 0.0
        %5165 = vmatmul.mubr.f32.gmra.mxu0 %v5095
        %v5166 = vpop.f32.mrf.mxu0
        %v5167 = vadd.f32 0.0, %v5166
        %v5168 = vpop.f32.mrf.mxu0
        %5169 = vdwg.mxu0
        %v5171 = vsel %vm1004, %v4635, 0
        %v5174 = vsel %vm2326, %v3107, 0
        %5176 = vmatprep.subr.mxu0 0.0
        %5177 = vmatpush1.msra.mxu0 0.0
        %5178 = vmatprep.subr.mxu0 0.0
        %5179 = vmatpush1.msra.mxu0 0.0
        %5180 = vmatprep.subr.mxu0 0.0
        %5181 = vmatpush1.msra.mxu0 0.0
        %5182 = vmatprep.subr.mxu0 0.0
        %5183 = vmatpush1.msra.mxu0 0.0
        %5184 = vmatprep.subr.mxu0 0.0
        %5185 = vmatpush1.msra.mxu0 0.0
        %5186 = vmatprep.subr.mxu0 0.0
        %5187 = vmatpush1.msra.mxu0 0.0
        %5188 = vmatprep.subr.mxu0 0.0
        %5189 = vmatpush1.msra.mxu0 0.0
        %5190 = vmatprep.subr.mxu0 0.0
        %5191 = vmatpush1.msra.mxu0 0.0
        %5192 = vmatprep.subr.mxu0 0.0
        %5193 = vmatpush1.msra.mxu0 0.0
        %5194 = vmatprep.subr.mxu0 0.0
        %5195 = vmatpush1.msra.mxu0 0.0
        %5196 = vmatprep.subr.mxu0 0.0
        %5197 = vmatpush1.msra.mxu0 0.0
        %5198 = vmatprep.subr.mxu0 0.0
        %5199 = vmatpush1.msra.mxu0 0.0
        %5200 = vmatprep.subr.mxu0 0.0
        %5201 = vmatpush1.msra.mxu0 0.0
        %5202 = vmatprep.subr.mxu0 0.0
        %5203 = vmatpush1.msra.mxu0 0.0
        %5204 = vmatprep.subr.mxu0 0.0
        %5205 = vmatpush1.msra.mxu0 0.0
        %5206 = vmatprep.subr.mxu0 0.0
        %5207 = vmatpush1.msra.mxu0 %v5174
        %5208 = vmatprep.subr.mxu0 0.0
        %5209 = vmatpush2.msra.mxu0 0.0
        %5210 = vmatprep.subr.mxu0 0.0
        %5211 = vmatpush2.msra.mxu0 0.0
        %5212 = vmatprep.subr.mxu0 0.0
        %5213 = vmatpush2.msra.mxu0 0.0
        %5214 = vmatprep.subr.mxu0 0.0
        %5215 = vmatpush2.msra.mxu0 0.0
        %5216 = vmatprep.subr.mxu0 0.0
        %5217 = vmatpush2.msra.mxu0 0.0
        %5218 = vmatprep.subr.mxu0 0.0
        %5219 = vmatpush2.msra.mxu0 0.0
        %5220 = vmatprep.subr.mxu0 0.0
        %5221 = vmatpush2.msra.mxu0 0.0
        %5222 = vmatprep.subr.mxu0 0.0
        %5223 = vmatpush2.msra.mxu0 0.0
        %5224 = vmatprep.subr.mxu0 0.0
        %5225 = vmatpush2.msra.mxu0 0.0
        %5226 = vmatprep.subr.mxu0 0.0
        %5227 = vmatpush2.msra.mxu0 0.0
        %5228 = vmatprep.subr.mxu0 0.0
        %5229 = vmatpush2.msra.mxu0 0.0
        %5230 = vmatprep.subr.mxu0 0.0
        %5231 = vmatpush2.msra.mxu0 0.0
        %5232 = vmatprep.subr.mxu0 0.0
        %5233 = vmatpush2.msra.mxu0 0.0
        %5234 = vmatprep.subr.mxu0 0.0
        %5235 = vmatpush2.msra.mxu0 0.0
        %5236 = vmatprep.subr.mxu0 0.0
        %5237 = vmatpush2.msra.mxu0 0.0
        %5238 = vmatprep.subr.mxu0 0.0
        %5239 = vmatpush2.msra.mxu0 0.0
        %5240 = vmatprep.mubr.f32.mxu0 0.0
        %5241 = vmatmul.mubr.f32.gmra.mxu0 %v5171
        %v5242 = vpop.f32.mrf.mxu0
        %v5243 = vadd.f32 0.0, %v5242
        %v5244 = vpop.f32.mrf.mxu0
        %5245 = vdwg.mxu0
        %v5247 = vsel %vm1004, %v4711, 0
        %v5250 = vsel %vm2326, %v3108, 0
        %5252 = vmatprep.subr.mxu0 0.0
        %5253 = vmatpush1.msra.mxu0 0.0
        %5254 = vmatprep.subr.mxu0 0.0
        %5255 = vmatpush1.msra.mxu0 0.0
        %5256 = vmatprep.subr.mxu0 0.0
        %5257 = vmatpush1.msra.mxu0 0.0
        %5258 = vmatprep.subr.mxu0 0.0
        %5259 = vmatpush1.msra.mxu0 0.0
        %5260 = vmatprep.subr.mxu0 0.0
        %5261 = vmatpush1.msra.mxu0 0.0
        %5262 = vmatprep.subr.mxu0 0.0
        %5263 = vmatpush1.msra.mxu0 0.0
        %5264 = vmatprep.subr.mxu0 0.0
        %5265 = vmatpush1.msra.mxu0 0.0
        %5266 = vmatprep.subr.mxu0 0.0
        %5267 = vmatpush1.msra.mxu0 0.0
        %5268 = vmatprep.subr.mxu0 0.0
        %5269 = vmatpush1.msra.mxu0 0.0
        %5270 = vmatprep.subr.mxu0 0.0
        %5271 = vmatpush1.msra.mxu0 0.0
        %5272 = vmatprep.subr.mxu0 0.0
        %5273 = vmatpush1.msra.mxu0 0.0
        %5274 = vmatprep.subr.mxu0 0.0
        %5275 = vmatpush1.msra.mxu0 0.0
        %5276 = vmatprep.subr.mxu0 0.0
        %5277 = vmatpush1.msra.mxu0 0.0
        %5278 = vmatprep.subr.mxu0 0.0
        %5279 = vmatpush1.msra.mxu0 0.0
        %5280 = vmatprep.subr.mxu0 0.0
        %5281 = vmatpush1.msra.mxu0 0.0
        %5282 = vmatprep.subr.mxu0 0.0
        %5283 = vmatpush1.msra.mxu0 %v5250
        %5284 = vmatprep.subr.mxu0 0.0
        %5285 = vmatpush2.msra.mxu0 0.0
        %5286 = vmatprep.subr.mxu0 0.0
        %5287 = vmatpush2.msra.mxu0 0.0
        %5288 = vmatprep.subr.mxu0 0.0
        %5289 = vmatpush2.msra.mxu0 0.0
        %5290 = vmatprep.subr.mxu0 0.0
        %5291 = vmatpush2.msra.mxu0 0.0
        %5292 = vmatprep.subr.mxu0 0.0
        %5293 = vmatpush2.msra.mxu0 0.0
        %5294 = vmatprep.subr.mxu0 0.0
        %5295 = vmatpush2.msra.mxu0 0.0
        %5296 = vmatprep.subr.mxu0 0.0
        %5297 = vmatpush2.msra.mxu0 0.0
        %5298 = vmatprep.subr.mxu0 0.0
        %5299 = vmatpush2.msra.mxu0 0.0
        %5300 = vmatprep.subr.mxu0 0.0
        %5301 = vmatpush2.msra.mxu0 0.0
        %5302 = vmatprep.subr.mxu0 0.0
        %5303 = vmatpush2.msra.mxu0 0.0
        %5304 = vmatprep.subr.mxu0 0.0
        %5305 = vmatpush2.msra.mxu0 0.0
        %5306 = vmatprep.subr.mxu0 0.0
        %5307 = vmatpush2.msra.mxu0 0.0
        %5308 = vmatprep.subr.mxu0 0.0
        %5309 = vmatpush2.msra.mxu0 0.0
        %5310 = vmatprep.subr.mxu0 0.0
        %5311 = vmatpush2.msra.mxu0 0.0
        %5312 = vmatprep.subr.mxu0 0.0
        %5313 = vmatpush2.msra.mxu0 0.0
        %5314 = vmatprep.subr.mxu0 0.0
        %5315 = vmatpush2.msra.mxu0 0.0
        %5316 = vmatprep.mubr.f32.mxu0 0.0
        %5317 = vmatmul.mubr.f32.gmra.mxu0 %v5247
        %v5318 = vpop.f32.mrf.mxu0
        %v5319 = vadd.f32 0.0, %v5318
        %v5320 = vpop.f32.mrf.mxu0
        %5321 = vdwg.mxu0
        %v5323 = vsel %vm1004, %v4787, 0
        %v5326 = vsel %vm2326, %v3109, 0
        %5328 = vmatprep.subr.mxu0 0.0
        %5329 = vmatpush1.msra.mxu0 0.0
        %5330 = vmatprep.subr.mxu0 0.0
        %5331 = vmatpush1.msra.mxu0 0.0
        %5332 = vmatprep.subr.mxu0 0.0
        %5333 = vmatpush1.msra.mxu0 0.0
        %5334 = vmatprep.subr.mxu0 0.0
        %5335 = vmatpush1.msra.mxu0 0.0
        %5336 = vmatprep.subr.mxu0 0.0
        %5337 = vmatpush1.msra.mxu0 0.0
        %5338 = vmatprep.subr.mxu0 0.0
        %5339 = vmatpush1.msra.mxu0 0.0
        %5340 = vmatprep.subr.mxu0 0.0
        %5341 = vmatpush1.msra.mxu0 0.0
        %5342 = vmatprep.subr.mxu0 0.0
        %5343 = vmatpush1.msra.mxu0 0.0
        %5344 = vmatprep.subr.mxu0 0.0
        %5345 = vmatpush1.msra.mxu0 0.0
        %5346 = vmatprep.subr.mxu0 0.0
        %5347 = vmatpush1.msra.mxu0 0.0
        %5348 = vmatprep.subr.mxu0 0.0
        %5349 = vmatpush1.msra.mxu0 0.0
        %5350 = vmatprep.subr.mxu0 0.0
        %5351 = vmatpush1.msra.mxu0 0.0
        %5352 = vmatprep.subr.mxu0 0.0
        %5353 = vmatpush1.msra.mxu0 0.0
        %5354 = vmatprep.subr.mxu0 0.0
        %5355 = vmatpush1.msra.mxu0 0.0
        %5356 = vmatprep.subr.mxu0 0.0
        %5357 = vmatpush1.msra.mxu0 0.0
        %5358 = vmatprep.subr.mxu0 0.0
        %5359 = vmatpush1.msra.mxu0 %v5326
        %5360 = vmatprep.subr.mxu0 0.0
        %5361 = vmatpush2.msra.mxu0 0.0
        %5362 = vmatprep.subr.mxu0 0.0
        %5363 = vmatpush2.msra.mxu0 0.0
        %5364 = vmatprep.subr.mxu0 0.0
        %5365 = vmatpush2.msra.mxu0 0.0
        %5366 = vmatprep.subr.mxu0 0.0
        %5367 = vmatpush2.msra.mxu0 0.0
        %5368 = vmatprep.subr.mxu0 0.0
        %5369 = vmatpush2.msra.mxu0 0.0
        %5370 = vmatprep.subr.mxu0 0.0
        %5371 = vmatpush2.msra.mxu0 0.0
        %5372 = vmatprep.subr.mxu0 0.0
        %5373 = vmatpush2.msra.mxu0 0.0
        %5374 = vmatprep.subr.mxu0 0.0
        %5375 = vmatpush2.msra.mxu0 0.0
        %5376 = vmatprep.subr.mxu0 0.0
        %5377 = vmatpush2.msra.mxu0 0.0
        %5378 = vmatprep.subr.mxu0 0.0
        %5379 = vmatpush2.msra.mxu0 0.0
        %5380 = vmatprep.subr.mxu0 0.0
        %5381 = vmatpush2.msra.mxu0 0.0
        %5382 = vmatprep.subr.mxu0 0.0
        %5383 = vmatpush2.msra.mxu0 0.0
        %5384 = vmatprep.subr.mxu0 0.0
        %5385 = vmatpush2.msra.mxu0 0.0
        %5386 = vmatprep.subr.mxu0 0.0
        %5387 = vmatpush2.msra.mxu0 0.0
        %5388 = vmatprep.subr.mxu0 0.0
        %5389 = vmatpush2.msra.mxu0 0.0
        %5390 = vmatprep.subr.mxu0 0.0
        %5391 = vmatpush2.msra.mxu0 0.0
        %5392 = vmatprep.mubr.f32.mxu0 0.0
        %5393 = vmatmul.mubr.f32.gmra.mxu0 %v5323
        %v5394 = vpop.f32.mrf.mxu0
        %v5395 = vadd.f32 0.0, %v5394
        %v5396 = vpop.f32.mrf.mxu0
        %5397 = vdwg.mxu0
        %v5399 = vsel %vm1004, %v4863, 0
        %v5402 = vsel %vm2326, %v3110, 0
        %5404 = vmatprep.subr.mxu0 0.0
        %5405 = vmatpush1.msra.mxu0 0.0
        %5406 = vmatprep.subr.mxu0 0.0
        %5407 = vmatpush1.msra.mxu0 0.0
        %5408 = vmatprep.subr.mxu0 0.0
        %5409 = vmatpush1.msra.mxu0 0.0
        %5410 = vmatprep.subr.mxu0 0.0
        %5411 = vmatpush1.msra.mxu0 0.0
        %5412 = vmatprep.subr.mxu0 0.0
        %5413 = vmatpush1.msra.mxu0 0.0
        %5414 = vmatprep.subr.mxu0 0.0
        %5415 = vmatpush1.msra.mxu0 0.0
        %5416 = vmatprep.subr.mxu0 0.0
        %5417 = vmatpush1.msra.mxu0 0.0
        %5418 = vmatprep.subr.mxu0 0.0
        %5419 = vmatpush1.msra.mxu0 0.0
        %5420 = vmatprep.subr.mxu0 0.0
        %5421 = vmatpush1.msra.mxu0 0.0
        %5422 = vmatprep.subr.mxu0 0.0
        %5423 = vmatpush1.msra.mxu0 0.0
        %5424 = vmatprep.subr.mxu0 0.0
        %5425 = vmatpush1.msra.mxu0 0.0
        %5426 = vmatprep.subr.mxu0 0.0
        %5427 = vmatpush1.msra.mxu0 0.0
        %5428 = vmatprep.subr.mxu0 0.0
        %5429 = vmatpush1.msra.mxu0 0.0
        %5430 = vmatprep.subr.mxu0 0.0
        %5431 = vmatpush1.msra.mxu0 0.0
        %5432 = vmatprep.subr.mxu0 0.0
        %5433 = vmatpush1.msra.mxu0 0.0
        %5434 = vmatprep.subr.mxu0 0.0
        %5435 = vmatpush1.msra.mxu0 %v5402
        %5436 = vmatprep.subr.mxu0 0.0
        %5437 = vmatpush2.msra.mxu0 0.0
        %5438 = vmatprep.subr.mxu0 0.0
        %5439 = vmatpush2.msra.mxu0 0.0
        %5440 = vmatprep.subr.mxu0 0.0
        %5441 = vmatpush2.msra.mxu0 0.0
        %5442 = vmatprep.subr.mxu0 0.0
        %5443 = vmatpush2.msra.mxu0 0.0
        %5444 = vmatprep.subr.mxu0 0.0
        %5445 = vmatpush2.msra.mxu0 0.0
        %5446 = vmatprep.subr.mxu0 0.0
        %5447 = vmatpush2.msra.mxu0 0.0
        %5448 = vmatprep.subr.mxu0 0.0
        %5449 = vmatpush2.msra.mxu0 0.0
        %5450 = vmatprep.subr.mxu0 0.0
        %5451 = vmatpush2.msra.mxu0 0.0
        %5452 = vmatprep.subr.mxu0 0.0
        %5453 = vmatpush2.msra.mxu0 0.0
        %5454 = vmatprep.subr.mxu0 0.0
        %5455 = vmatpush2.msra.mxu0 0.0
        %5456 = vmatprep.subr.mxu0 0.0
        %5457 = vmatpush2.msra.mxu0 0.0
        %5458 = vmatprep.subr.mxu0 0.0
        %5459 = vmatpush2.msra.mxu0 0.0
        %5460 = vmatprep.subr.mxu0 0.0
        %5461 = vmatpush2.msra.mxu0 0.0
        %5462 = vmatprep.subr.mxu0 0.0
        %5463 = vmatpush2.msra.mxu0 0.0
        %5464 = vmatprep.subr.mxu0 0.0
        %5465 = vmatpush2.msra.mxu0 0.0
        %5466 = vmatprep.subr.mxu0 0.0
        %5467 = vmatpush2.msra.mxu0 0.0
        %5468 = vmatprep.mubr.f32.mxu0 0.0
        %5469 = vmatmul.mubr.f32.gmra.mxu0 %v5399
        %v5470 = vpop.f32.mrf.mxu0
        %v5471 = vadd.f32 0.0, %v5470
        %v5472 = vpop.f32.mrf.mxu0
        %5473 = vdwg.mxu0
        %v5475 = vsel %vm1004, %v4939, 0
        %v5478 = vsel %vm2326, %v3111, 0
        %5480 = vmatprep.subr.mxu0 0.0
        %5481 = vmatpush1.msra.mxu0 0.0
        %5482 = vmatprep.subr.mxu0 0.0
        %5483 = vmatpush1.msra.mxu0 0.0
        %5484 = vmatprep.subr.mxu0 0.0
        %5485 = vmatpush1.msra.mxu0 0.0
        %5486 = vmatprep.subr.mxu0 0.0
        %5487 = vmatpush1.msra.mxu0 0.0
        %5488 = vmatprep.subr.mxu0 0.0
        %5489 = vmatpush1.msra.mxu0 0.0
        %5490 = vmatprep.subr.mxu0 0.0
        %5491 = vmatpush1.msra.mxu0 0.0
        %5492 = vmatprep.subr.mxu0 0.0
        %5493 = vmatpush1.msra.mxu0 0.0
        %5494 = vmatprep.subr.mxu0 0.0
        %5495 = vmatpush1.msra.mxu0 0.0
        %5496 = vmatprep.subr.mxu0 0.0
        %5497 = vmatpush1.msra.mxu0 0.0
        %5498 = vmatprep.subr.mxu0 0.0
        %5499 = vmatpush1.msra.mxu0 0.0
        %5500 = vmatprep.subr.mxu0 0.0
        %5501 = vmatpush1.msra.mxu0 0.0
        %5502 = vmatprep.subr.mxu0 0.0
        %5503 = vmatpush1.msra.mxu0 0.0
        %5504 = vmatprep.subr.mxu0 0.0
        %5505 = vmatpush1.msra.mxu0 0.0
        %5506 = vmatprep.subr.mxu0 0.0
        %5507 = vmatpush1.msra.mxu0 0.0
        %5508 = vmatprep.subr.mxu0 0.0
        %5509 = vmatpush1.msra.mxu0 0.0
        %5510 = vmatprep.subr.mxu0 0.0
        %5511 = vmatpush1.msra.mxu0 %v5478
        %5512 = vmatprep.subr.mxu0 0.0
        %5513 = vmatpush2.msra.mxu0 0.0
        %5514 = vmatprep.subr.mxu0 0.0
        %5515 = vmatpush2.msra.mxu0 0.0
        %5516 = vmatprep.subr.mxu0 0.0
        %5517 = vmatpush2.msra.mxu0 0.0
        %5518 = vmatprep.subr.mxu0 0.0
        %5519 = vmatpush2.msra.mxu0 0.0
        %5520 = vmatprep.subr.mxu0 0.0
        %5521 = vmatpush2.msra.mxu0 0.0
        %5522 = vmatprep.subr.mxu0 0.0
        %5523 = vmatpush2.msra.mxu0 0.0
        %5524 = vmatprep.subr.mxu0 0.0
        %5525 = vmatpush2.msra.mxu0 0.0
        %5526 = vmatprep.subr.mxu0 0.0
        %5527 = vmatpush2.msra.mxu0 0.0
        %5528 = vmatprep.subr.mxu0 0.0
        %5529 = vmatpush2.msra.mxu0 0.0
        %5530 = vmatprep.subr.mxu0 0.0
        %5531 = vmatpush2.msra.mxu0 0.0
        %5532 = vmatprep.subr.mxu0 0.0
        %5533 = vmatpush2.msra.mxu0 0.0
        %5534 = vmatprep.subr.mxu0 0.0
        %5535 = vmatpush2.msra.mxu0 0.0
        %5536 = vmatprep.subr.mxu0 0.0
        %5537 = vmatpush2.msra.mxu0 0.0
        %5538 = vmatprep.subr.mxu0 0.0
        %5539 = vmatpush2.msra.mxu0 0.0
        %5540 = vmatprep.subr.mxu0 0.0
        %5541 = vmatpush2.msra.mxu0 0.0
        %5542 = vmatprep.subr.mxu0 0.0
        %5543 = vmatpush2.msra.mxu0 0.0
        %5544 = vmatprep.mubr.f32.mxu0 0.0
        %5545 = vmatmul.mubr.f32.gmra.mxu0 %v5475
        %v5546 = vpop.f32.mrf.mxu0
        %v5547 = vadd.f32 0.0, %v5546
        %v5548 = vpop.f32.mrf.mxu0
        %5549 = vdwg.mxu0
        %v5551 = vsel %vm1004, %v5015, 0
        %v5554 = vsel %vm2326, %v3112, 0
        %5556 = vmatprep.subr.mxu0 0.0
        %5557 = vmatpush1.msra.mxu0 0.0
        %5558 = vmatprep.subr.mxu0 0.0
        %5559 = vmatpush1.msra.mxu0 0.0
        %5560 = vmatprep.subr.mxu0 0.0
        %5561 = vmatpush1.msra.mxu0 0.0
        %5562 = vmatprep.subr.mxu0 0.0
        %5563 = vmatpush1.msra.mxu0 0.0
        %5564 = vmatprep.subr.mxu0 0.0
        %5565 = vmatpush1.msra.mxu0 0.0
        %5566 = vmatprep.subr.mxu0 0.0
        %5567 = vmatpush1.msra.mxu0 0.0
        %5568 = vmatprep.subr.mxu0 0.0
        %5569 = vmatpush1.msra.mxu0 0.0
        %5570 = vmatprep.subr.mxu0 0.0
        %5571 = vmatpush1.msra.mxu0 0.0
        %5572 = vmatprep.subr.mxu0 0.0
        %5573 = vmatpush1.msra.mxu0 0.0
        %5574 = vmatprep.subr.mxu0 0.0
        %5575 = vmatpush1.msra.mxu0 0.0
        %5576 = vmatprep.subr.mxu0 0.0
        %5577 = vmatpush1.msra.mxu0 0.0
        %5578 = vmatprep.subr.mxu0 0.0
        %5579 = vmatpush1.msra.mxu0 0.0
        %5580 = vmatprep.subr.mxu0 0.0
        %5581 = vmatpush1.msra.mxu0 0.0
        %5582 = vmatprep.subr.mxu0 0.0
        %5583 = vmatpush1.msra.mxu0 0.0
        %5584 = vmatprep.subr.mxu0 0.0
        %5585 = vmatpush1.msra.mxu0 0.0
        %5586 = vmatprep.subr.mxu0 0.0
        %5587 = vmatpush1.msra.mxu0 %v5554
        %5588 = vmatprep.subr.mxu0 0.0
        %5589 = vmatpush2.msra.mxu0 0.0
        %5590 = vmatprep.subr.mxu0 0.0
        %5591 = vmatpush2.msra.mxu0 0.0
        %5592 = vmatprep.subr.mxu0 0.0
        %5593 = vmatpush2.msra.mxu0 0.0
        %5594 = vmatprep.subr.mxu0 0.0
        %5595 = vmatpush2.msra.mxu0 0.0
        %5596 = vmatprep.subr.mxu0 0.0
        %5597 = vmatpush2.msra.mxu0 0.0
        %5598 = vmatprep.subr.mxu0 0.0
        %5599 = vmatpush2.msra.mxu0 0.0
        %5600 = vmatprep.subr.mxu0 0.0
        %5601 = vmatpush2.msra.mxu0 0.0
        %5602 = vmatprep.subr.mxu0 0.0
        %5603 = vmatpush2.msra.mxu0 0.0
        %5604 = vmatprep.subr.mxu0 0.0
        %5605 = vmatpush2.msra.mxu0 0.0
        %5606 = vmatprep.subr.mxu0 0.0
        %5607 = vmatpush2.msra.mxu0 0.0
        %5608 = vmatprep.subr.mxu0 0.0
        %5609 = vmatpush2.msra.mxu0 0.0
        %5610 = vmatprep.subr.mxu0 0.0
        %5611 = vmatpush2.msra.mxu0 0.0
        %5612 = vmatprep.subr.mxu0 0.0
        %5613 = vmatpush2.msra.mxu0 0.0
        %5614 = vmatprep.subr.mxu0 0.0
        %5615 = vmatpush2.msra.mxu0 0.0
        %5616 = vmatprep.subr.mxu0 0.0
        %5617 = vmatpush2.msra.mxu0 0.0
        %5618 = vmatprep.subr.mxu0 0.0
        %5619 = vmatpush2.msra.mxu0 0.0
        %5620 = vmatprep.mubr.f32.mxu0 0.0
        %5621 = vmatmul.mubr.f32.gmra.mxu0 %v5551
        %v5622 = vpop.f32.mrf.mxu0
        %v5623 = vadd.f32 0.0, %v5622
        %v5624 = vpop.f32.mrf.mxu0
        %5625 = vdwg.mxu0
        %v5627 = vsel %vm1004, %v5091, 0
        %v5630 = vsel %vm2326, %v3113, 0
        %5632 = vmatprep.subr.mxu0 0.0
        %5633 = vmatpush1.msra.mxu0 0.0
        %5634 = vmatprep.subr.mxu0 0.0
        %5635 = vmatpush1.msra.mxu0 0.0
        %5636 = vmatprep.subr.mxu0 0.0
        %5637 = vmatpush1.msra.mxu0 0.0
        %5638 = vmatprep.subr.mxu0 0.0
        %5639 = vmatpush1.msra.mxu0 0.0
        %5640 = vmatprep.subr.mxu0 0.0
        %5641 = vmatpush1.msra.mxu0 0.0
        %5642 = vmatprep.subr.mxu0 0.0
        %5643 = vmatpush1.msra.mxu0 0.0
        %5644 = vmatprep.subr.mxu0 0.0
        %5645 = vmatpush1.msra.mxu0 0.0
        %5646 = vmatprep.subr.mxu0 0.0
        %5647 = vmatpush1.msra.mxu0 0.0
        %5648 = vmatprep.subr.mxu0 0.0
        %5649 = vmatpush1.msra.mxu0 0.0
        %5650 = vmatprep.subr.mxu0 0.0
        %5651 = vmatpush1.msra.mxu0 0.0
        %5652 = vmatprep.subr.mxu0 0.0
        %5653 = vmatpush1.msra.mxu0 0.0
        %5654 = vmatprep.subr.mxu0 0.0
        %5655 = vmatpush1.msra.mxu0 0.0
        %5656 = vmatprep.subr.mxu0 0.0
        %5657 = vmatpush1.msra.mxu0 0.0
        %5658 = vmatprep.subr.mxu0 0.0
        %5659 = vmatpush1.msra.mxu0 0.0
        %5660 = vmatprep.subr.mxu0 0.0
        %5661 = vmatpush1.msra.mxu0 0.0
        %5662 = vmatprep.subr.mxu0 0.0
        %5663 = vmatpush1.msra.mxu0 %v5630
        %5664 = vmatprep.subr.mxu0 0.0
        %5665 = vmatpush2.msra.mxu0 0.0
        %5666 = vmatprep.subr.mxu0 0.0
        %5667 = vmatpush2.msra.mxu0 0.0
        %5668 = vmatprep.subr.mxu0 0.0
        %5669 = vmatpush2.msra.mxu0 0.0
        %5670 = vmatprep.subr.mxu0 0.0
        %5671 = vmatpush2.msra.mxu0 0.0
        %5672 = vmatprep.subr.mxu0 0.0
        %5673 = vmatpush2.msra.mxu0 0.0
        %5674 = vmatprep.subr.mxu0 0.0
        %5675 = vmatpush2.msra.mxu0 0.0
        %5676 = vmatprep.subr.mxu0 0.0
        %5677 = vmatpush2.msra.mxu0 0.0
        %5678 = vmatprep.subr.mxu0 0.0
        %5679 = vmatpush2.msra.mxu0 0.0
        %5680 = vmatprep.subr.mxu0 0.0
        %5681 = vmatpush2.msra.mxu0 0.0
        %5682 = vmatprep.subr.mxu0 0.0
        %5683 = vmatpush2.msra.mxu0 0.0
        %5684 = vmatprep.subr.mxu0 0.0
        %5685 = vmatpush2.msra.mxu0 0.0
        %5686 = vmatprep.subr.mxu0 0.0
        %5687 = vmatpush2.msra.mxu0 0.0
        %5688 = vmatprep.subr.mxu0 0.0
        %5689 = vmatpush2.msra.mxu0 0.0
        %5690 = vmatprep.subr.mxu0 0.0
        %5691 = vmatpush2.msra.mxu0 0.0
        %5692 = vmatprep.subr.mxu0 0.0
        %5693 = vmatpush2.msra.mxu0 0.0
        %5694 = vmatprep.subr.mxu0 0.0
        %5695 = vmatpush2.msra.mxu0 0.0
        %5696 = vmatprep.mubr.f32.mxu0 0.0
        %5697 = vmatmul.mubr.f32.gmra.mxu0 %v5627
        %v5698 = vpop.f32.mrf.mxu0
        %v5699 = vadd.f32 0.0, %v5698
        %v5700 = vpop.f32.mrf.mxu0
        %5701 = vdwg.mxu0
        %v5702 = vsel %vm437, %v5167, 0.0
        %v5703 = vsel %vm437, %v5243, 0.0
        %v5704 = vadd.f32 %v5702, %v5703
        %v5705 = vsel %vm437, %v5319, 0.0
        %v5706 = vadd.f32 %v5704, %v5705
        %v5707 = vsel %vm437, %v5395, 0.0
        %v5708 = vadd.f32 %v5706, %v5707
        %v5709 = vsel %vm437, %v5471, 0.0
        %v5710 = vadd.f32 %v5708, %v5709
        %v5711 = vsel %vm437, %v5547, 0.0
        %v5712 = vadd.f32 %v5710, %v5711
        %v5713 = vsel %vm437, %v5623, 0.0
        %v5714 = vadd.f32 %v5712, %v5713
        %v5715 = vsel %vm437, %v5699, 0.0
        %v5716 = vadd.f32 %v5714, %v5715
        %v5717 = vlaneseq
        %v5718 = vshrl.u32 %v5717, 7
        %v5719 = vsub.s32 0, %v5718
        %v5720 = vrot.slane %v3120, %v5719
        %v5721 = vadd.f32 %v5716, %v5720
        %v5722 = vadd.f32 %v3069, %v5721
        %v5723 = vsel %vm437, %v5722, 0.0
        %5724 = vadd.xlane.f32.xlu0 %v5723
        %v5725 = vpop.xlane.xlu0 %5724
        %v5726 = vmul.f32 %v5725, %v2956
        %v5727 = vsub.f32 %v5722, %v5726
        %v5728 = vmul.f32 %v5727, %v5727
        %v5729 = vsel %vm437, %v5728, 0.0
        %5730 = vadd.xlane.f32.xlu0 %v5729
        %v5731 = vpop.xlane.xlu0 %5730
        %v5732 = vmul.f32 %v5731, %v2956
        %v5733 = vadd.f32 %v5732, 1e-05
        %v5734 = vrsqrt.pop %v5733
        %v5735 = vmul.f32 %v5727, %v5734
        %v5736 = vlaneseq
        %v5737 = vshrl.u32 %v5736, 7
        %v5738 = vsub.s32 2, %v5737
        %v5739 = vrot.slane %v3120, %v5738
        %v5740 = vmul.f32 %v5735, %v5739
        %v5741 = vlaneseq
        %v5742 = vshrl.u32 %v5741, 7
        %v5743 = vsub.s32 3, %v5742
        %v5744 = vrot.slane %v3120, %v5743
        %v5745 = vadd.f32 %v5740, %v5744
        %v5746 = vlaneseq
        %v5747 = vshrl.u32 %v5746, 7
        %v5748 = vsub.s32 1, %v5747
        %v5749 = vrot.slane %v3120, %v5748
        %v5751 = vsel %vm437, %v5745, 0
        %5753 = vmatprep.subr.mxu0 0.0
        %5754 = vmatpush1.msra.mxu0 0.0
        %5755 = vmatprep.subr.mxu0 0.0
        %5756 = vmatpush1.msra.mxu0 0.0
        %5757 = vmatprep.subr.mxu0 0.0
        %5758 = vmatpush1.msra.mxu0 0.0
        %5759 = vmatprep.subr.mxu0 0.0
        %5760 = vmatpush1.msra.mxu0 0.0
        %5761 = vmatprep.subr.mxu0 0.0
        %5762 = vmatpush1.msra.mxu0 0.0
        %5763 = vmatprep.subr.mxu0 0.0
        %5764 = vmatpush1.msra.mxu0 0.0
        %5765 = vmatprep.subr.mxu0 0.0
        %5766 = vmatpush1.msra.mxu0 0.0
        %5767 = vmatprep.subr.mxu0 0.0
        %5768 = vmatpush1.msra.mxu0 0.0
        %5769 = vmatprep.subr.mxu0 0.0
        %5770 = vmatpush1.msra.mxu0 0.0
        %5771 = vmatprep.subr.mxu0 0.0
        %5772 = vmatpush1.msra.mxu0 0.0
        %5773 = vmatprep.subr.mxu0 0.0
        %5774 = vmatpush1.msra.mxu0 0.0
        %5775 = vmatprep.subr.mxu0 0.0
        %5776 = vmatpush1.msra.mxu0 0.0
        %5777 = vmatprep.subr.mxu0 0.0
        %5778 = vmatpush1.msra.mxu0 %v3118
        %5779 = vmatprep.subr.mxu0 0.0
        %5780 = vmatpush1.msra.mxu0 %v3117
        %5781 = vmatprep.subr.mxu0 0.0
        %5782 = vmatpush1.msra.mxu0 %v3116
        %5783 = vmatprep.subr.mxu0 0.0
        %5784 = vmatpush1.msra.mxu0 %v3115
        %5785 = vmatprep.subr.mxu0 0.0
        %5786 = vmatpush2.msra.mxu0 0.0
        %5787 = vmatprep.subr.mxu0 0.0
        %5788 = vmatpush2.msra.mxu0 0.0
        %5789 = vmatprep.subr.mxu0 0.0
        %5790 = vmatpush2.msra.mxu0 0.0
        %5791 = vmatprep.subr.mxu0 0.0
        %5792 = vmatpush2.msra.mxu0 0.0
        %5793 = vmatprep.subr.mxu0 0.0
        %5794 = vmatpush2.msra.mxu0 0.0
        %5795 = vmatprep.subr.mxu0 0.0
        %5796 = vmatpush2.msra.mxu0 0.0
        %5797 = vmatprep.subr.mxu0 0.0
        %5798 = vmatpush2.msra.mxu0 0.0
        %5799 = vmatprep.subr.mxu0 0.0
        %5800 = vmatpush2.msra.mxu0 0.0
        %5801 = vmatprep.subr.mxu0 0.0
        %5802 = vmatpush2.msra.mxu0 0.0
        %5803 = vmatprep.subr.mxu0 0.0
        %5804 = vmatpush2.msra.mxu0 0.0
        %5805 = vmatprep.subr.mxu0 0.0
        %5806 = vmatpush2.msra.mxu0 0.0
        %5807 = vmatprep.subr.mxu0 0.0
        %5808 = vmatpush2.msra.mxu0 0.0
        %5809 = vmatprep.subr.mxu0 0.0
        %5810 = vmatpush2.msra.mxu0 0.0
        %5811 = vmatprep.subr.mxu0 0.0
        %5812 = vmatpush2.msra.mxu0 0.0
        %5813 = vmatprep.subr.mxu0 0.0
        %5814 = vmatpush2.msra.mxu0 0.0
        %5815 = vmatprep.subr.mxu0 0.0
        %5816 = vmatpush2.msra.mxu0 0.0
        %5817 = vmatprep.mubr.f32.mxu0 0.0
        %5818 = vmatmul.mubr.f32.gmra.mxu0 %v5751
        %v5819 = vpop.f32.mrf.mxu0
        %v5820 = vadd.f32 %v5749, %v5819
        %v5821 = vpop.f32.mrf.mxu0
        %5822 = vdwg.mxu0
        %v5823 = vadd.f32 %v5745, %v5820
        %v5824 = vsel %vm437, %v5823, 0.0
        %5825 = vadd.xlane.f32.xlu0 %v5824
        %v5826 = vpop.xlane.xlu0 %5825
        %v5827 = vmul.f32 %v5826, %v2956
        %v5828 = vsub.f32 %v5823, %v5827
        %v5829 = vmul.f32 %v5828, %v5828
        %v5830 = vsel %vm437, %v5829, 0.0
        %5831 = vadd.xlane.f32.xlu0 %v5830
        %v5832 = vpop.xlane.xlu0 %5831
        %v5833 = vmul.f32 %v5832, %v2956
        %v5834 = vadd.f32 %v5833, 1e-05
        %v5835 = vrsqrt.pop %v5834
        %v5836 = vmul.f32 %v5828, %v5835
        %v5837 = vmul.f32 %v5836, %v5739
        %v5838 = vadd.f32 %v5837, %v5744
        %v5839 = vld [vmem:[%s6] sm:$0xff]
        %v5840 = vld [vmem:[%s6 + $0x8] sm:$0xff]
        %v5841 = vld [vmem:[%s6 + $0x10] sm:$0xff]
        %v5842 = vld [vmem:[%s6 + $0x18] sm:$0xff]
        %v5843 = vld [vmem:[%s7] sm:$0x1]
        %v5845 = vlaneseq
        %v5846 = vshrl.u32 %v5845, 7
        %v5847 = vsub.s32 0, %v5846
        %v5848 = vrot.slane %v5843, %v5847
        %v5851 = vsel %vm437, %v5838, 0
        %5853 = vmatprep.subr.mxu0 0.0
        %5854 = vmatpush1.msra.mxu0 0.0
        %5855 = vmatprep.subr.mxu0 0.0
        %5856 = vmatpush1.msra.mxu0 0.0
        %5857 = vmatprep.subr.mxu0 0.0
        %5858 = vmatpush1.msra.mxu0 0.0
        %5859 = vmatprep.subr.mxu0 0.0
        %5860 = vmatpush1.msra.mxu0 0.0
        %5861 = vmatprep.subr.mxu0 0.0
        %5862 = vmatpush1.msra.mxu0 0.0
        %5863 = vmatprep.subr.mxu0 0.0
        %5864 = vmatpush1.msra.mxu0 0.0
        %5865 = vmatprep.subr.mxu0 0.0
        %5866 = vmatpush1.msra.mxu0 0.0
        %5867 = vmatprep.subr.mxu0 0.0
        %5868 = vmatpush1.msra.mxu0 0.0
        %5869 = vmatprep.subr.mxu0 0.0
        %5870 = vmatpush1.msra.mxu0 0.0
        %5871 = vmatprep.subr.mxu0 0.0
        %5872 = vmatpush1.msra.mxu0 0.0
        %5873 = vmatprep.subr.mxu0 0.0
        %5874 = vmatpush1.msra.mxu0 0.0
        %5875 = vmatprep.subr.mxu0 0.0
        %5876 = vmatpush1.msra.mxu0 0.0
        %5877 = vmatprep.subr.mxu0 0.0
        %5878 = vmatpush1.msra.mxu0 %v5842
        %5879 = vmatprep.subr.mxu0 0.0
        %5880 = vmatpush1.msra.mxu0 %v5841
        %5881 = vmatprep.subr.mxu0 0.0
        %5882 = vmatpush1.msra.mxu0 %v5840
        %5883 = vmatprep.subr.mxu0 0.0
        %5884 = vmatpush1.msra.mxu0 %v5839
        %5885 = vmatprep.subr.mxu0 0.0
        %5886 = vmatpush2.msra.mxu0 0.0
        %5887 = vmatprep.subr.mxu0 0.0
        %5888 = vmatpush2.msra.mxu0 0.0
        %5889 = vmatprep.subr.mxu0 0.0
        %5890 = vmatpush2.msra.mxu0 0.0
        %5891 = vmatprep.subr.mxu0 0.0
        %5892 = vmatpush2.msra.mxu0 0.0
        %5893 = vmatprep.subr.mxu0 0.0
        %5894 = vmatpush2.msra.mxu0 0.0
        %5895 = vmatprep.subr.mxu0 0.0
        %5896 = vmatpush2.msra.mxu0 0.0
        %5897 = vmatprep.subr.mxu0 0.0
        %5898 = vmatpush2.msra.mxu0 0.0
        %5899 = vmatprep.subr.mxu0 0.0
        %5900 = vmatpush2.msra.mxu0 0.0
        %5901 = vmatprep.subr.mxu0 0.0
        %5902 = vmatpush2.msra.mxu0 0.0
        %5903 = vmatprep.subr.mxu0 0.0
        %5904 = vmatpush2.msra.mxu0 0.0
        %5905 = vmatprep.subr.mxu0 0.0
        %5906 = vmatpush2.msra.mxu0 0.0
        %5907 = vmatprep.subr.mxu0 0.0
        %5908 = vmatpush2.msra.mxu0 0.0
        %5909 = vmatprep.subr.mxu0 0.0
        %5910 = vmatpush2.msra.mxu0 0.0
        %5911 = vmatprep.subr.mxu0 0.0
        %5912 = vmatpush2.msra.mxu0 0.0
        %5913 = vmatprep.subr.mxu0 0.0
        %5914 = vmatpush2.msra.mxu0 0.0
        %5915 = vmatprep.subr.mxu0 0.0
        %5916 = vmatpush2.msra.mxu0 0.0
        %5917 = vmatprep.mubr.f32.mxu0 0.0
        %5918 = vmatmul.mubr.f32.gmra.mxu0 %v5851
        %v5919 = vpop.f32.mrf.mxu0
        %v5920 = vadd.f32 %v5848, %v5919
        %v5921 = vpop.f32.mrf.mxu0
        %5922 = vdwg.mxu0
        %vm5923 = vcmask 523264
        %v5924 = vsel %vm5923, %v5920, -inf
        %5925 = vmax.index.xlane.f32.xlu0 %v5924
        %v5926 = vpop.xlane.xlu0 %5925
        %v5927 = vlaneseq
        %v5928 = vand.u32 %v5927, 127
        %v5929 = vlaneseq
        %v5930 = vshrl.u32 %v5929, 7
        %v5931 = vsub.s32 %v5928, %v5930
        %v5932 = vrot.slane %v5926, %v5931
        %vm5933 = vcmask 57344
        %5934 = vst.msk [vmem:[%s295] sm:$0x1] %vm5933, %v5932
        %s5935 = sand.u32 %s203, 1
        %s5936 = scalar_lea.sflag [#allocation3], %s5935
        %s5937 = sand.u32 %s203, 1
        %s5938 = scalar_lea.vmem [#allocation2], %s5937
        // Predicated region
        $region53: #{nano_transformer_forward.1} parent=51 // pred_check
          %p5939 = pneg %p213
        $region54: #{nano_transformer_forward.1} parent=51 // pred_check_branch
          %5941 = sbr.rel (%p5939) target = $region56
        $region55: #{nano_transformer_forward.1} parent=51 // pred_region
          %s5943 = ssub.s32 16, 16
          %5944 = vsyncadd %s5936, %s5943
          %s5945 = smul.addr %s22, 16
          %s5946 = scalar_lea.hbm %s8, %s5945
          %s5948 = sshll.u32 %s5938, 4
          %s5949 = int_to_ptr.vmem [resolvable:$true] %s5948
          %5951 = dma.vmem_to_hbm [thread:$0]  %s5949, 16, %s5946, %s5936
        $region56: #{nano_transformer_forward.1} parent=51 // pred_fallthru
          _
      $region52: #{nano_transformer_forward.1} parent=5 // pred_fallthru
        _
      %p5952 = scmp.le.s32.totalorder 2, %s17
      // Predicated region
      $region57: #{nano_transformer_forward.1} parent=5 // pred_check
        %p5953 = pneg %p5952
      $region58: #{nano_transformer_forward.1} parent=5 // pred_check_branch
        %5955 = sbr.rel (%p5953) target = $region60
      $region59: #{nano_transformer_forward.1} parent=5 // pred_region
        %s5956 = ssub.s32 %s17, 2
        // Predicated region
        $region61: #{nano_transformer_forward.1} parent=59 // pred_check
          %p5957 = pneg %p219
        $region62: #{nano_transformer_forward.1} parent=59 // pred_check_branch
          %5959 = sbr.rel (%p5957) target = $region64
        $region63: #{nano_transformer_forward.1} parent=59 // pred_region
          %s5960 = sand.u32 %s204, 1
          %s5961 = scalar_lea.sflag [#allocation3], %s5960
          %s5962 = sand.u32 %s204, 1
          %s5963 = scalar_lea.vmem [#allocation2], %s5962
          %5964 = dma.done %s5961, 16
        $region64: #{nano_transformer_forward.1} parent=59 // pred_fallthru
          _
      $region60: #{nano_transformer_forward.1} parent=5 // pred_fallthru
        _
    $region6: #{nano_transformer_forward.1} parent=1 // loop_footer
      %s21 = sadd.s32 1, %s17
    $region7: #{nano_transformer_forward.1} parent=1 // loop_footer_branch
      %16 = sbr.rel target = $region3
    $region8: #{nano_transformer_forward.1} parent=1 // loop_exit
      _
    %5965 = vsyncpa [#allocation3], 1
    %s5966 = scalar_lea.sflag [#allocation3], 1
    %5967 = vsyncpa %s5966, 1

</llo_original>
